<compile_context>
chip_gen: v7x
topology: tpu7x:2x2x1
jax: 0.10.0
libtpu: 0.0.40
codegen_flags: <defaults>
</compile_context>

<pallas_src>
import functools

import jax
import jax.numpy as jnp
import numpy as np
from jax import lax
from jax.experimental import pallas as pl
from jax.experimental.pallas import tpu as pltpu


def _linear_bottleneck_kernel(
    x_ref,      # (C_in, NbHW)   activations, Nb images concatenated on lanes
    w1_ref,     # (dw, C_in)     expand 1x1 weight, BN1 scale folded in (mxu dtype)
    chan_ref,   # (dw, 12)       cols 0..8: depthwise tap weights * BN2 scale,
                #                col 9: BN1 bias, col 10: BN2 bias, col 11: SE fc2 bias
    mask_ref,   # (9, NbHW)      0/1 spatial validity mask per tap (tiled per image)
    wse1_ref,   # (dwr, dw)      SE fc1 weight (SE-BN scale folded in)
    bse1_ref,   # (dwr, 1)       SE fc1 bias (SE-BN folded in)
    wse2_ref,   # (dw, dwr)      SE fc2 weight
    w3_ref,     # (C_out, dw)    projection 1x1 weight, BN3 scale folded in (mxu dtype)
    b3_ref,     # (C_out, 1)     BN3 bias
    o_ref,      # (C_out, NbHW)
    *, W, HW, images_per_block, use_shortcut, mxu_dtype,
):
    C_in = x_ref.shape[0]
    NbHW = x_ref.shape[1]
    dw = w1_ref.shape[0]
    C_out = w3_ref.shape[0]
    Nb = images_per_block

    # ---- 1x1 expand conv (BN1 scale pre-folded) + bias + Swish ----
    t = jnp.dot(w1_ref[...], x_ref[...].astype(mxu_dtype),
                preferred_element_type=jnp.float32)                 # (dw, NbHW) f32
    t = t + chan_ref[:, pl.ds(9, 1)]                                # BN1 bias
    t = t * jax.nn.sigmoid(t)                                       # Swish

    # ---- depthwise 3x3, stride=1, pad=1 ----
    # Circular lane roll; the mask zeroes every tap that wraps across a row or
    # image boundary, so valid taps always read in-image neighbors.
    acc = jnp.zeros((dw, NbHW), jnp.float32)
    k = 0
    for dy in (-1, 0, 1):
        for dx in (-1, 0, 1):
            off = dy * W + dx
            shifted = t if off == 0 else pltpu.roll(t, (-off) % NbHW, axis=1)
            m_k = mask_ref[pl.ds(k, 1), :]                          # (1, NbHW) sublane-bcast
            w_k = chan_ref[:, pl.ds(k, 1)]                          # (dw, 1)   lane-bcast
            acc = acc + (shifted * m_k) * w_k
            k += 1
    acc = acc + chan_ref[:, pl.ds(10, 1)]                           # BN2 bias (no activation)

    # ---- SE block, per image (static small loop over aligned lane chunks) ----
    # TODO(synk): the two tiny SE matvecs could be moved off the MXU
    # (VPU mul + XLU lane-reduce) to shave the serial SE latency.
    bse2 = chan_ref[:, pl.ds(11, 1)]                                # (dw, 1)
    gated = []
    for n in range(Nb):
        a_n = acc[:, n * HW:(n + 1) * HW]                           # 128-aligned lane slice
        pooled = jnp.sum(a_n, axis=-1, keepdims=True) * (1.0 / HW)  # (dw, 1)
        h1 = jnp.dot(wse1_ref[...], pooled,
                     preferred_element_type=jnp.float32) + bse1_ref[...]
        h1 = jnp.maximum(h1, 0.0)                                   # ReLU
        h2 = jnp.dot(wse2_ref[...], h1,
                     preferred_element_type=jnp.float32) + bse2
        gated.append(a_n * jax.nn.sigmoid(h2))                      # gate bcast over lanes
    acc = gated[0] if Nb == 1 else jnp.concatenate(gated, axis=-1)  # lane-axis, aligned

    # ---- ReLU6 ----
    acc = jnp.clip(acc, 0.0, 6.0)

    # ---- 1x1 projection conv (BN3 scale pre-folded) + bias ----
    out = jnp.dot(w3_ref[...], acc.astype(mxu_dtype),
                  preferred_element_type=jnp.float32) + b3_ref[...]

    # ---- residual shortcut: two aligned lane-dense stores (x reloaded here
    # instead of being held live through the 9-tap loop) ----
    if use_shortcut:
        o_ref[0:C_in, :] = (out[0:C_in, :] + x_ref[...]).astype(o_ref.dtype)
        if C_out > C_in:
            o_ref[C_in:, :] = out[C_in:, :].astype(o_ref.dtype)
    else:
        o_ref[...] = out.astype(o_ref.dtype)


def _fold_bn(bn, eps=1e-5):
    scale = bn['gamma'] * lax.rsqrt(bn['var'] + eps)
    bias = bn['beta'] - bn['mean'] * scale
    return scale, bias


def linear_bottleneck_forward(x_nchw, params, *, stride=1, images_per_block=None,
                              matmul_dtype=jnp.float32):
    """x_nchw: (N, C_in, H, W) float32. Returns (N, C_out, H, W) float32.

    matmul_dtype=jnp.bfloat16 feeds the two 1x1-conv MXU matmuls bf16 operands
    (f32 accumulation) — the v6e/v7x fast path; f32 (default) for tight tolerances.
    """
    # TODO(synk): only the stride=1 depthwise path is implemented (matches this config).
    assert stride == 1
    N, C_in, H, W = x_nchw.shape
    HW = H * W
    assert HW % 128 == 0, "lane-dense layout assumes H*W is a multiple of 128"
    dw = params['w_exp'].shape[1]
    dwr = params['w_se1'].shape[1]
    C_out = params['w_proj'].shape[1]
    use_shortcut = (stride == 1) and (C_in <= C_out)

    if images_per_block is None:
        images_per_block = 2 if N % 2 == 0 else 1
    Nb = images_per_block
    assert N % Nb == 0
    NbHW = Nb * HW

    # Fold eval-mode BatchNorms; fold the scales straight into the conv weights.
    s1, b1 = _fold_bn(params['bn1'])
    s2, b2 = _fold_bn(params['bn2'])
    se_s, se_b = _fold_bn(params['bn_se'])
    s3, b3 = _fold_bn(params['bn3'])

    w1_eff = (params['w_exp'] * s1[None, :]).T.astype(matmul_dtype)      # (dw, C_in)
    w3_eff = (params['w_proj'] * s3[None, :]).T.astype(matmul_dtype)     # (C_out, dw)
    wse1_eff = (params['w_se1'] * se_s[None, :]).T                       # (dwr, dw) f32
    bse1_eff = params['b_se1'] * se_s + se_b                             # (dwr,)
    wse2_t = params['w_se2'].T                                           # (dw, dwr) f32
    wdw9 = params['w_dw'].reshape(9, dw) * s2[None, :]                   # (9, dw)

    # Pack all per-dw-channel columns (9 tap weights + 3 biases) into one
    # lane-dense array -> one DMA instead of several tiny padded ones.
    chan = jnp.concatenate(
        [wdw9.T,                               # cols 0..8: tap weights
         b1.reshape(dw, 1),                    # col 9
         b2.reshape(dw, 1),                    # col 10
         params['b_se2'].reshape(dw, 1)],      # col 11
        axis=1).astype(jnp.float32)            # (dw, 12)

    # 9 spatial validity masks (depend only on H, W, tap), tiled per image in
    # the block.  Tiny compared to the old (9, dw, HW) blown-up weights.
    hh = np.arange(HW) // W
    ww = np.arange(HW) % W
    masks = np.stack([
        ((hh + dy >= 0) & (hh + dy < H) & (ww + dx >= 0) & (ww + dx < W)).astype(np.float32)
        for dy in (-1, 0, 1) for dx in (-1, 0, 1)])                      # (9, HW)
    mask9 = jnp.asarray(np.tile(masks, (1, Nb)))                         # (9, NbHW)

    # NCHW -> (C, N*HW): images share the lane axis so the 1x1 convs are one
    # wide matmul per grid step (host-side layout plumbing, outside the kernel).
    x2d = jnp.transpose(x_nchw.reshape(N, C_in, HW), (1, 0, 2)).reshape(C_in, N * HW)

    kernel = functools.partial(_linear_bottleneck_kernel, W=W, HW=HW,
                               images_per_block=Nb, use_shortcut=use_shortcut,
                               mxu_dtype=matmul_dtype)

    def const(shape):
        nd = len(shape)
        return pl.BlockSpec(shape, lambda i, _nd=nd: (0,) * _nd)

    out2d = pl.pallas_call(
        kernel,
        out_shape=jax.ShapeDtypeStruct((C_out, N * HW), jnp.float32),
        grid=(N // Nb,),
        in_specs=[
            pl.BlockSpec((C_in, NbHW), lambda i: (0, i)),
            const((dw, C_in)),
            const((dw, 12)),
            const((9, NbHW)),
            const((dwr, dw)),
            const((dwr, 1)),
            const((dw, dwr)),
            const((C_out, dw)),
            const((C_out, 1)),
        ],
        out_specs=pl.BlockSpec((C_out, NbHW), lambda i: (0, i)),
        compiler_params=pltpu.CompilerParams(dimension_semantics=("parallel",)),
    )(x2d, w1_eff, chan, mask9, wse1_eff, bse1_eff.reshape(dwr, 1), wse2_t,
      w3_eff, b3.reshape(C_out, 1))

    # (C_out, N*HW) -> NCHW.
    return jnp.transpose(out2d.reshape(C_out, N, HW), (1, 0, 2)).reshape(N, C_out, H, W)


def reference_forward(x, p, eps=1e-5):
    """Pure-JAX (lax.conv) NCHW reference mirroring the PyTorch module (eval mode)."""
    dn = ('NCHW', 'OIHW', 'NCHW')
    C_in = x.shape[1]
    dw = p['w_exp'].shape[1]

    def bn(z, b):
        g = b['gamma'][None, :, None, None]
        bt = b['beta'][None, :, None, None]
        m = b['mean'][None, :, None, None]
        v = b['var'][None, :, None, None]
        return (z - m) * lax.rsqrt(v + eps) * g + bt

    w1 = jnp.transpose(p['w_exp'], (1, 0))[:, :, None, None]
    y = lax.conv_general_dilated(x, w1, (1, 1), 'VALID', dimension_numbers=dn)
    y = bn(y, p['bn1'])
    y = y * jax.nn.sigmoid(y)

    wd = jnp.transpose(p['w_dw'], (2, 0, 1))[:, None, :, :]
    y = lax.conv_general_dilated(y, wd, (1, 1), ((1, 1), (1, 1)),
                                 dimension_numbers=dn, feature_group_count=dw)
    y = bn(y, p['bn2'])

    s = jnp.mean(y, axis=(2, 3), keepdims=True)
    ws1 = jnp.transpose(p['w_se1'], (1, 0))[:, :, None, None]
    s = lax.conv_general_dilated(s, ws1, (1, 1), 'VALID', dimension_numbers=dn)
    s = s + p['b_se1'][None, :, None, None]
    s = bn(s, p['bn_se'])
    s = jnp.maximum(s, 0.0)
    ws2 = jnp.transpose(p['w_se2'], (1, 0))[:, :, None, None]
    s = lax.conv_general_dilated(s, ws2, (1, 1), 'VALID', dimension_numbers=dn)
    s = s + p['b_se2'][None, :, None, None]
    s = jax.nn.sigmoid(s)
    y = y * s

    y = jnp.clip(y, 0.0, 6.0)

    w3 = jnp.transpose(p['w_proj'], (1, 0))[:, :, None, None]
    y = lax.conv_general_dilated(y, w3, (1, 1), 'VALID', dimension_numbers=dn)
    y = bn(y, p['bn3'])

    return y.at[:, 0:C_in].add(x)   # use_shortcut


if __name__ == "__main__":
    # LinearBottleneck(in_channels=8, channels=16, t=6, stride=1, use_se=True, se_ratio=12)
    C_in, C_out, t_exp, se_ratio = 8, 16, 6, 12
    N, H, W = 4, 16, 16
    dw = C_in * t_exp        # 48
    dwr = dw // se_ratio     # 4

    key = jax.random.PRNGKey(0)
    ks = jax.random.split(key, 12)

    def bn_init(k, c):
        k1, k2, k3, k4 = jax.random.split(k, 4)
        return {'gamma': 1.0 + 0.1 * jax.random.normal(k1, (c,), jnp.float32),
                'beta': 0.1 * jax.random.normal(k2, (c,), jnp.float32),
                'mean': 0.1 * jax.random.normal(k3, (c,), jnp.float32),
                'var': 1.0 + 0.1 * jax.random.uniform(k4, (c,), jnp.float32)}

    params = {
        'w_exp': 0.3 * jax.random.normal(ks[0], (C_in, dw), jnp.float32),
        'bn1': bn_init(ks[1], dw),
        'w_dw': 0.3 * jax.random.normal(ks[2], (3, 3, dw), jnp.float32),
        'bn2': bn_init(ks[3], dw),
        'w_se1': 0.3 * jax.random.normal(ks[4], (dw, dwr), jnp.float32),
        'b_se1': 0.1 * jax.random.normal(ks[5], (dwr,), jnp.float32),
        'bn_se': bn_init(ks[6], dwr),
        'w_se2': 0.3 * jax.random.normal(ks[7], (dwr, dw), jnp.float32),
        'b_se2': 0.1 * jax.random.normal(ks[8], (dw,), jnp.float32),
        'w_proj': 0.3 * jax.random.normal(ks[9], (dw, C_out), jnp.float32),
        'bn3': bn_init(ks[10], C_out),
    }

    x = jax.random.normal(ks[11], (N, C_in, H, W), jnp.float32)
    ref = reference_forward(x, params)

    # f32 MXU-operand path: tight tolerance vs the f32 reference.
    out = linear_bottleneck_forward(x, params, stride=1, images_per_block=2)
    out = jax.block_until_ready(out)
    np.testing.assert_allclose(np.asarray(out), np.asarray(ref), rtol=2e-3, atol=2e-3)

    # bf16 MXU-operand path (v6e/v7x fast path): loose tolerance, smoke check
    # only — bf16 operand rounding (~0.4% rel) exceeds the 2e-3 budget.
    out_bf16 = linear_bottleneck_forward(x, params, stride=1, images_per_block=2,
                                         matmul_dtype=jnp.bfloat16)
    out_bf16 = jax.block_until_ready(out_bf16)
    np.testing.assert_allclose(np.asarray(out_bf16), np.asarray(ref), rtol=5e-2, atol=5e-2)

    print("KERNEL_OK")
</pallas_src>

<mosaic_0001>
module attributes {stable_mosaic.version = 11 : i64} {
  func.func @_linear_bottleneck_kernel(%arg0: i32, %arg1: memref<8x512xf32, #tpu.memory_space<vmem>>, %arg2: memref<48x8xf32, #tpu.memory_space<vmem>>, %arg3: memref<48x12xf32, #tpu.memory_space<vmem>>, %arg4: memref<9x512xf32, #tpu.memory_space<vmem>>, %arg5: memref<4x48xf32, #tpu.memory_space<vmem>>, %arg6: memref<4x1xf32, #tpu.memory_space<vmem>>, %arg7: memref<48x4xf32, #tpu.memory_space<vmem>>, %arg8: memref<16x48xf32, #tpu.memory_space<vmem>>, %arg9: memref<16x1xf32, #tpu.memory_space<vmem>>, %arg10: memref<16x512xf32, #tpu.memory_space<vmem>>) attributes {dimension_semantics = [#tpu.dimension_semantics<parallel>], iteration_bounds = array<i64: 2>, scalar_prefetch = 0 : i64, scratch_operands = 0 : i64, tpu.core_type = #tpu.core_type<tc>, window_params = [{transform_indices = @transform_0, window_bounds = array<i64: 8, 512>}, {pipeline_mode = #tpu.pipeline_mode<synchronous>, transform_indices = @transform_1, window_bounds = array<i64: 48, 8>}, {pipeline_mode = #tpu.pipeline_mode<synchronous>, transform_indices = @transform_2, window_bounds = array<i64: 48, 12>}, {pipeline_mode = #tpu.pipeline_mode<synchronous>, transform_indices = @transform_3, window_bounds = array<i64: 9, 512>}, {pipeline_mode = #tpu.pipeline_mode<synchronous>, transform_indices = @transform_4, window_bounds = array<i64: 4, 48>}, {pipeline_mode = #tpu.pipeline_mode<synchronous>, transform_indices = @transform_5, window_bounds = array<i64: 4, 1>}, {pipeline_mode = #tpu.pipeline_mode<synchronous>, transform_indices = @transform_6, window_bounds = array<i64: 48, 4>}, {pipeline_mode = #tpu.pipeline_mode<synchronous>, transform_indices = @transform_7, window_bounds = array<i64: 16, 48>}, {pipeline_mode = #tpu.pipeline_mode<synchronous>, transform_indices = @transform_8, window_bounds = array<i64: 16, 1>}, {transform_indices = @transform_9, window_bounds = array<i64: 16, 512>}]} {
    %c0 = arith.constant 0 : index
    %c0_0 = arith.constant 0 : index
    %0 = vector.load %arg2[%c0, %c0_0] : memref<48x8xf32, #tpu.memory_space<vmem>>, vector<48x8xf32>
    %c0_1 = arith.constant 0 : index
    %c0_2 = arith.constant 0 : index
    %1 = vector.load %arg1[%c0_1, %c0_2] : memref<8x512xf32, #tpu.memory_space<vmem>>, vector<8x512xf32>
    %cst = arith.constant dense<0.000000e+00> : vector<48x512xf32>
    %2 = tpu.matmul %0, %1, %cst {dimension_numbers = #tpu.dot_dimension_numbers<[1], [0], [0], [1], [0, 0, 1, 1], [], []>} : vector<48x8xf32>, vector<8x512xf32>, vector<48x512xf32> -> vector<48x512xf32>
    %c0_3 = arith.constant 0 : index
    %c9 = arith.constant 9 : index
    %3 = vector.load %arg3[%c0_3, %c9] : memref<48x12xf32, #tpu.memory_space<vmem>>, vector<48x1xf32>
    %4 = vector.broadcast %3 : vector<48x1xf32> to vector<48x512xf32>
    %5 = arith.addf %2, %4 : vector<48x512xf32>
    %6 = arith.negf %5 : vector<48x512xf32>
    %7 = math.exp %6 : vector<48x512xf32>
    %cst_4 = arith.constant 1.000000e+00 : f32
    %8 = vector.broadcast %cst_4 : f32 to vector<48x512xf32>
    %9 = arith.addf %8, %7 : vector<48x512xf32>
    %10 = arith.divf %8, %9 : vector<48x512xf32>
    %11 = arith.mulf %5, %10 : vector<48x512xf32>
    %cst_5 = arith.constant 0.000000e+00 : f32
    %12 = vector.broadcast %cst_5 : f32 to vector<48x512xf32>
    %c17_i32 = arith.constant 17 : i32
    %13 = tpu.dynamic_rotate %11 by %c17_i32 dim 1 : vector<48x512xf32>, i32 -> vector<48x512xf32>
    %c0_6 = arith.constant 0 : index
    %c0_7 = arith.constant 0 : index
    %14 = vector.load %arg4[%c0_6, %c0_7] : memref<9x512xf32, #tpu.memory_space<vmem>>, vector<1x512xf32>
    %c0_8 = arith.constant 0 : index
    %c0_9 = arith.constant 0 : index
    %15 = vector.load %arg3[%c0_8, %c0_9] : memref<48x12xf32, #tpu.memory_space<vmem>>, vector<48x1xf32>
    %16 = vector.broadcast %14 : vector<1x512xf32> to vector<48x512xf32>
    %17 = arith.mulf %13, %16 : vector<48x512xf32>
    %18 = vector.broadcast %15 : vector<48x1xf32> to vector<48x512xf32>
    %19 = arith.mulf %17, %18 : vector<48x512xf32>
    %20 = arith.addf %12, %19 : vector<48x512xf32>
    %c16_i32 = arith.constant 16 : i32
    %21 = tpu.dynamic_rotate %11 by %c16_i32 dim 1 : vector<48x512xf32>, i32 -> vector<48x512xf32>
    %c1 = arith.constant 1 : index
    %c0_10 = arith.constant 0 : index
    %22 = vector.load %arg4[%c1, %c0_10] : memref<9x512xf32, #tpu.memory_space<vmem>>, vector<1x512xf32>
    %c0_11 = arith.constant 0 : index
    %c1_12 = arith.constant 1 : index
    %23 = vector.load %arg3[%c0_11, %c1_12] : memref<48x12xf32, #tpu.memory_space<vmem>>, vector<48x1xf32>
    %24 = vector.broadcast %22 : vector<1x512xf32> to vector<48x512xf32>
    %25 = arith.mulf %21, %24 : vector<48x512xf32>
    %26 = vector.broadcast %23 : vector<48x1xf32> to vector<48x512xf32>
    %27 = arith.mulf %25, %26 : vector<48x512xf32>
    %28 = arith.addf %20, %27 : vector<48x512xf32>
    %c15_i32 = arith.constant 15 : i32
    %29 = tpu.dynamic_rotate %11 by %c15_i32 dim 1 : vector<48x512xf32>, i32 -> vector<48x512xf32>
    %c2 = arith.constant 2 : index
    %c0_13 = arith.constant 0 : index
    %30 = vector.load %arg4[%c2, %c0_13] : memref<9x512xf32, #tpu.memory_space<vmem>>, vector<1x512xf32>
    %c0_14 = arith.constant 0 : index
    %c2_15 = arith.constant 2 : index
    %31 = vector.load %arg3[%c0_14, %c2_15] : memref<48x12xf32, #tpu.memory_space<vmem>>, vector<48x1xf32>
    %32 = vector.broadcast %30 : vector<1x512xf32> to vector<48x512xf32>
    %33 = arith.mulf %29, %32 : vector<48x512xf32>
    %34 = vector.broadcast %31 : vector<48x1xf32> to vector<48x512xf32>
    %35 = arith.mulf %33, %34 : vector<48x512xf32>
    %36 = arith.addf %28, %35 : vector<48x512xf32>
    %c1_i32 = arith.constant 1 : i32
    %37 = tpu.dynamic_rotate %11 by %c1_i32 dim 1 : vector<48x512xf32>, i32 -> vector<48x512xf32>
    %c3 = arith.constant 3 : index
    %c0_16 = arith.constant 0 : index
    %38 = vector.load %arg4[%c3, %c0_16] : memref<9x512xf32, #tpu.memory_space<vmem>>, vector<1x512xf32>
    %c0_17 = arith.constant 0 : index
    %c3_18 = arith.constant 3 : index
    %39 = vector.load %arg3[%c0_17, %c3_18] : memref<48x12xf32, #tpu.memory_space<vmem>>, vector<48x1xf32>
    %40 = vector.broadcast %38 : vector<1x512xf32> to vector<48x512xf32>
    %41 = arith.mulf %37, %40 : vector<48x512xf32>
    %42 = vector.broadcast %39 : vector<48x1xf32> to vector<48x512xf32>
    %43 = arith.mulf %41, %42 : vector<48x512xf32>
    %44 = arith.addf %36, %43 : vector<48x512xf32>
    %c4 = arith.constant 4 : index
    %c0_19 = arith.constant 0 : index
    %45 = vector.load %arg4[%c4, %c0_19] : memref<9x512xf32, #tpu.memory_space<vmem>>, vector<1x512xf32>
    %c0_20 = arith.constant 0 : index
    %c4_21 = arith.constant 4 : index
    %46 = vector.load %arg3[%c0_20, %c4_21] : memref<48x12xf32, #tpu.memory_space<vmem>>, vector<48x1xf32>
    %47 = vector.broadcast %45 : vector<1x512xf32> to vector<48x512xf32>
    %48 = arith.mulf %11, %47 : vector<48x512xf32>
    %49 = vector.broadcast %46 : vector<48x1xf32> to vector<48x512xf32>
    %50 = arith.mulf %48, %49 : vector<48x512xf32>
    %51 = arith.addf %44, %50 : vector<48x512xf32>
    %c511_i32 = arith.constant 511 : i32
    %52 = tpu.dynamic_rotate %11 by %c511_i32 dim 1 : vector<48x512xf32>, i32 -> vector<48x512xf32>
    %c5 = arith.constant 5 : index
    %c0_22 = arith.constant 0 : index
    %53 = vector.load %arg4[%c5, %c0_22] : memref<9x512xf32, #tpu.memory_space<vmem>>, vector<1x512xf32>
    %c0_23 = arith.constant 0 : index
    %c5_24 = arith.constant 5 : index
    %54 = vector.load %arg3[%c0_23, %c5_24] : memref<48x12xf32, #tpu.memory_space<vmem>>, vector<48x1xf32>
    %55 = vector.broadcast %53 : vector<1x512xf32> to vector<48x512xf32>
    %56 = arith.mulf %52, %55 : vector<48x512xf32>
    %57 = vector.broadcast %54 : vector<48x1xf32> to vector<48x512xf32>
    %58 = arith.mulf %56, %57 : vector<48x512xf32>
    %59 = arith.addf %51, %58 : vector<48x512xf32>
    %c497_i32 = arith.constant 497 : i32
    %60 = tpu.dynamic_rotate %11 by %c497_i32 dim 1 : vector<48x512xf32>, i32 -> vector<48x512xf32>
    %c6 = arith.constant 6 : index
    %c0_25 = arith.constant 0 : index
    %61 = vector.load %arg4[%c6, %c0_25] : memref<9x512xf32, #tpu.memory_space<vmem>>, vector<1x512xf32>
    %c0_26 = arith.constant 0 : index
    %c6_27 = arith.constant 6 : index
    %62 = vector.load %arg3[%c0_26, %c6_27] : memref<48x12xf32, #tpu.memory_space<vmem>>, vector<48x1xf32>
    %63 = vector.broadcast %61 : vector<1x512xf32> to vector<48x512xf32>
    %64 = arith.mulf %60, %63 : vector<48x512xf32>
    %65 = vector.broadcast %62 : vector<48x1xf32> to vector<48x512xf32>
    %66 = arith.mulf %64, %65 : vector<48x512xf32>
    %67 = arith.addf %59, %66 : vector<48x512xf32>
    %c496_i32 = arith.constant 496 : i32
    %68 = tpu.dynamic_rotate %11 by %c496_i32 dim 1 : vector<48x512xf32>, i32 -> vector<48x512xf32>
    %c7 = arith.constant 7 : index
    %c0_28 = arith.constant 0 : index
    %69 = vector.load %arg4[%c7, %c0_28] : memref<9x512xf32, #tpu.memory_space<vmem>>, vector<1x512xf32>
    %c0_29 = arith.constant 0 : index
    %c7_30 = arith.constant 7 : index
    %70 = vector.load %arg3[%c0_29, %c7_30] : memref<48x12xf32, #tpu.memory_space<vmem>>, vector<48x1xf32>
    %71 = vector.broadcast %69 : vector<1x512xf32> to vector<48x512xf32>
    %72 = arith.mulf %68, %71 : vector<48x512xf32>
    %73 = vector.broadcast %70 : vector<48x1xf32> to vector<48x512xf32>
    %74 = arith.mulf %72, %73 : vector<48x512xf32>
    %75 = arith.addf %67, %74 : vector<48x512xf32>
    %c495_i32 = arith.constant 495 : i32
    %76 = tpu.dynamic_rotate %11 by %c495_i32 dim 1 : vector<48x512xf32>, i32 -> vector<48x512xf32>
    %c8 = arith.constant 8 : index
    %c0_31 = arith.constant 0 : index
    %77 = vector.load %arg4[%c8, %c0_31] : memref<9x512xf32, #tpu.memory_space<vmem>>, vector<1x512xf32>
    %c0_32 = arith.constant 0 : index
    %c8_33 = arith.constant 8 : index
    %78 = vector.load %arg3[%c0_32, %c8_33] : memref<48x12xf32, #tpu.memory_space<vmem>>, vector<48x1xf32>
    %79 = vector.broadcast %77 : vector<1x512xf32> to vector<48x512xf32>
    %80 = arith.mulf %76, %79 : vector<48x512xf32>
    %81 = vector.broadcast %78 : vector<48x1xf32> to vector<48x512xf32>
    %82 = arith.mulf %80, %81 : vector<48x512xf32>
    %83 = arith.addf %75, %82 : vector<48x512xf32>
    %c0_34 = arith.constant 0 : index
    %c10 = arith.constant 10 : index
    %84 = vector.load %arg3[%c0_34, %c10] : memref<48x12xf32, #tpu.memory_space<vmem>>, vector<48x1xf32>
    %85 = vector.broadcast %84 : vector<48x1xf32> to vector<48x512xf32>
    %86 = arith.addf %83, %85 : vector<48x512xf32>
    %c0_35 = arith.constant 0 : index
    %c11 = arith.constant 11 : index
    %87 = vector.load %arg3[%c0_35, %c11] : memref<48x12xf32, #tpu.memory_space<vmem>>, vector<48x1xf32>
    %88 = vector.extract_strided_slice %86 {offsets = [0, 0], sizes = [48, 256], strides = [1, 1]} : vector<48x512xf32> to vector<48x256xf32>
    %cst_36 = arith.constant dense<0.000000e+00> : vector<48xf32>
    %89 = vector.multi_reduction <add>, %88, %cst_36 [1] : vector<48x256xf32> to vector<48xf32>
    %90 = vector.shape_cast %89 : vector<48xf32> to vector<48x1xf32>
    %cst_37 = arith.constant 3.906250e-03 : f32
    %91 = vector.broadcast %cst_37 : f32 to vector<48x1xf32>
    %92 = arith.mulf %90, %91 : vector<48x1xf32>
    %c0_38 = arith.constant 0 : index
    %c0_39 = arith.constant 0 : index
    %93 = vector.load %arg5[%c0_38, %c0_39] : memref<4x48xf32, #tpu.memory_space<vmem>>, vector<4x48xf32>
    %cst_40 = arith.constant dense<0.000000e+00> : vector<4x1xf32>
    %94 = tpu.matmul %93, %92, %cst_40 {dimension_numbers = #tpu.dot_dimension_numbers<[1], [0], [0], [1], [0, 0, 1, 1], [], []>} : vector<4x48xf32>, vector<48x1xf32>, vector<4x1xf32> -> vector<4x1xf32>
    %c0_41 = arith.constant 0 : index
    %c0_42 = arith.constant 0 : index
    %95 = vector.load %arg6[%c0_41, %c0_42] : memref<4x1xf32, #tpu.memory_space<vmem>>, vector<4x1xf32>
    %96 = arith.addf %94, %95 : vector<4x1xf32>
    %cst_43 = arith.constant 0.000000e+00 : f32
    %97 = vector.broadcast %cst_43 : f32 to vector<4x1xf32>
    %98 = arith.maximumf %96, %97 : vector<4x1xf32>
    %c0_44 = arith.constant 0 : index
    %c0_45 = arith.constant 0 : index
    %99 = vector.load %arg7[%c0_44, %c0_45] : memref<48x4xf32, #tpu.memory_space<vmem>>, vector<48x4xf32>
    %cst_46 = arith.constant dense<0.000000e+00> : vector<48x1xf32>
    %100 = tpu.matmul %99, %98, %cst_46 {dimension_numbers = #tpu.dot_dimension_numbers<[1], [0], [0], [1], [0, 0, 1, 1], [], []>} : vector<48x4xf32>, vector<4x1xf32>, vector<48x1xf32> -> vector<48x1xf32>
    %101 = arith.addf %100, %87 : vector<48x1xf32>
    %102 = arith.negf %101 : vector<48x1xf32>
    %103 = math.exp %102 : vector<48x1xf32>
    %cst_47 = arith.constant 1.000000e+00 : f32
    %104 = vector.broadcast %cst_47 : f32 to vector<48x1xf32>
    %105 = arith.addf %104, %103 : vector<48x1xf32>
    %106 = arith.divf %104, %105 : vector<48x1xf32>
    %107 = vector.broadcast %106 : vector<48x1xf32> to vector<48x256xf32>
    %108 = arith.mulf %88, %107 : vector<48x256xf32>
    %109 = vector.extract_strided_slice %86 {offsets = [0, 256], sizes = [48, 256], strides = [1, 1]} : vector<48x512xf32> to vector<48x256xf32>
    %cst_48 = arith.constant dense<0.000000e+00> : vector<48xf32>
    %110 = vector.multi_reduction <add>, %109, %cst_48 [1] : vector<48x256xf32> to vector<48xf32>
    %111 = vector.shape_cast %110 : vector<48xf32> to vector<48x1xf32>
    %cst_49 = arith.constant 3.906250e-03 : f32
    %112 = vector.broadcast %cst_49 : f32 to vector<48x1xf32>
    %113 = arith.mulf %111, %112 : vector<48x1xf32>
    %c0_50 = arith.constant 0 : index
    %c0_51 = arith.constant 0 : index
    %114 = vector.load %arg5[%c0_50, %c0_51] : memref<4x48xf32, #tpu.memory_space<vmem>>, vector<4x48xf32>
    %cst_52 = arith.constant dense<0.000000e+00> : vector<4x1xf32>
    %115 = tpu.matmul %114, %113, %cst_52 {dimension_numbers = #tpu.dot_dimension_numbers<[1], [0], [0], [1], [0, 0, 1, 1], [], []>} : vector<4x48xf32>, vector<48x1xf32>, vector<4x1xf32> -> vector<4x1xf32>
    %c0_53 = arith.constant 0 : index
    %c0_54 = arith.constant 0 : index
    %116 = vector.load %arg6[%c0_53, %c0_54] : memref<4x1xf32, #tpu.memory_space<vmem>>, vector<4x1xf32>
    %117 = arith.addf %115, %116 : vector<4x1xf32>
    %cst_55 = arith.constant 0.000000e+00 : f32
    %118 = vector.broadcast %cst_55 : f32 to vector<4x1xf32>
    %119 = arith.maximumf %117, %118 : vector<4x1xf32>
    %c0_56 = arith.constant 0 : index
    %c0_57 = arith.constant 0 : index
    %120 = vector.load %arg7[%c0_56, %c0_57] : memref<48x4xf32, #tpu.memory_space<vmem>>, vector<48x4xf32>
    %cst_58 = arith.constant dense<0.000000e+00> : vector<48x1xf32>
    %121 = tpu.matmul %120, %119, %cst_58 {dimension_numbers = #tpu.dot_dimension_numbers<[1], [0], [0], [1], [0, 0, 1, 1], [], []>} : vector<48x4xf32>, vector<4x1xf32>, vector<48x1xf32> -> vector<48x1xf32>
    %122 = arith.addf %121, %87 : vector<48x1xf32>
    %123 = arith.negf %122 : vector<48x1xf32>
    %124 = math.exp %123 : vector<48x1xf32>
    %cst_59 = arith.constant 1.000000e+00 : f32
    %125 = vector.broadcast %cst_59 : f32 to vector<48x1xf32>
    %126 = arith.addf %125, %124 : vector<48x1xf32>
    %127 = arith.divf %125, %126 : vector<48x1xf32>
    %128 = vector.broadcast %127 : vector<48x1xf32> to vector<48x256xf32>
    %129 = arith.mulf %109, %128 : vector<48x256xf32>
    %130 = tpu.concatenate %108, %129 in 1 : vector<48x256xf32>, vector<48x256xf32> -> vector<48x512xf32>
    %cst_60 = arith.constant 0.000000e+00 : f32
    %cst_61 = arith.constant 6.000000e+00 : f32
    %131 = vector.broadcast %cst_60 : f32 to vector<48x512xf32>
    %132 = arith.maximumf %131, %130 : vector<48x512xf32>
    %133 = vector.broadcast %cst_61 : f32 to vector<48x512xf32>
    %134 = arith.minimumf %133, %132 : vector<48x512xf32>
    %c0_62 = arith.constant 0 : index
    %c0_63 = arith.constant 0 : index
    %135 = vector.load %arg8[%c0_62, %c0_63] : memref<16x48xf32, #tpu.memory_space<vmem>>, vector<16x48xf32>
    %cst_64 = arith.constant dense<0.000000e+00> : vector<16x512xf32>
    %136 = tpu.matmul %135, %134, %cst_64 {dimension_numbers = #tpu.dot_dimension_numbers<[1], [0], [0], [1], [0, 0, 1, 1], [], []>} : vector<16x48xf32>, vector<48x512xf32>, vector<16x512xf32> -> vector<16x512xf32>
    %c0_65 = arith.constant 0 : index
    %c0_66 = arith.constant 0 : index
    %137 = vector.load %arg9[%c0_65, %c0_66] : memref<16x1xf32, #tpu.memory_space<vmem>>, vector<16x1xf32>
    %138 = vector.broadcast %137 : vector<16x1xf32> to vector<16x512xf32>
    %139 = arith.addf %136, %138 : vector<16x512xf32>
    %140 = vector.extract_strided_slice %139 {offsets = [0, 0], sizes = [8, 512], strides = [1, 1]} : vector<16x512xf32> to vector<8x512xf32>
    %c0_67 = arith.constant 0 : index
    %c0_68 = arith.constant 0 : index
    %141 = vector.load %arg1[%c0_67, %c0_68] : memref<8x512xf32, #tpu.memory_space<vmem>>, vector<8x512xf32>
    %142 = arith.addf %140, %141 : vector<8x512xf32>
    %c0_69 = arith.constant 0 : index
    %c0_70 = arith.constant 0 : index
    %143 = vector.load %arg10[%c0_69, %c0_70] : memref<16x512xf32, #tpu.memory_space<vmem>>, vector<8x512xf32>
    tpu.vector_store %arg10[%c0_69, %c0_70], %142 {strides = array<i32>} : memref<16x512xf32, #tpu.memory_space<vmem>>, vector<8x512xf32>,
    %144 = vector.extract_strided_slice %139 {offsets = [8, 0], sizes = [8, 512], strides = [1, 1]} : vector<16x512xf32> to vector<8x512xf32>
    %c8_71 = arith.constant 8 : index
    %c0_72 = arith.constant 0 : index
    %145 = vector.load %arg10[%c8_71, %c0_72] : memref<16x512xf32, #tpu.memory_space<vmem>>, vector<8x512xf32>
    tpu.vector_store %arg10[%c8_71, %c0_72], %144 {strides = array<i32>} : memref<16x512xf32, #tpu.memory_space<vmem>>, vector<8x512xf32>,
    return
  }
  func.func @transform_0(%arg0: i32) -> (i32, i32) {
    %c0_i32 = arith.constant 0 : i32
    %c0_i32_0 = arith.constant 0 : i32
    return %c0_i32, %arg0 : i32, i32
  }
  func.func @transform_1(%arg0: i32) -> (i32, i32) {
    %c0_i32 = arith.constant 0 : i32
    %c0_i32_0 = arith.constant 0 : i32
    %c0_i32_1 = arith.constant 0 : i32
    return %c0_i32, %c0_i32_0 : i32, i32
  }
  func.func @transform_2(%arg0: i32) -> (i32, i32) {
    %c0_i32 = arith.constant 0 : i32
    %c0_i32_0 = arith.constant 0 : i32
    %c0_i32_1 = arith.constant 0 : i32
    return %c0_i32, %c0_i32_0 : i32, i32
  }
  func.func @transform_3(%arg0: i32) -> (i32, i32) {
    %c0_i32 = arith.constant 0 : i32
    %c0_i32_0 = arith.constant 0 : i32
    %c0_i32_1 = arith.constant 0 : i32
    return %c0_i32, %c0_i32_0 : i32, i32
  }
  func.func @transform_4(%arg0: i32) -> (i32, i32) {
    %c0_i32 = arith.constant 0 : i32
    %c0_i32_0 = arith.constant 0 : i32
    %c0_i32_1 = arith.constant 0 : i32
    return %c0_i32, %c0_i32_0 : i32, i32
  }
  func.func @transform_5(%arg0: i32) -> (i32, i32) {
    %c0_i32 = arith.constant 0 : i32
    %c0_i32_0 = arith.constant 0 : i32
    %c0_i32_1 = arith.constant 0 : i32
    return %c0_i32, %c0_i32_0 : i32, i32
  }
  func.func @transform_6(%arg0: i32) -> (i32, i32) {
    %c0_i32 = arith.constant 0 : i32
    %c0_i32_0 = arith.constant 0 : i32
    %c0_i32_1 = arith.constant 0 : i32
    return %c0_i32, %c0_i32_0 : i32, i32
  }
  func.func @transform_7(%arg0: i32) -> (i32, i32) {
    %c0_i32 = arith.constant 0 : i32
    %c0_i32_0 = arith.constant 0 : i32
    %c0_i32_1 = arith.constant 0 : i32
    return %c0_i32, %c0_i32_0 : i32, i32
  }
  func.func @transform_8(%arg0: i32) -> (i32, i32) {
    %c0_i32 = arith.constant 0 : i32
    %c0_i32_0 = arith.constant 0 : i32
    %c0_i32_1 = arith.constant 0 : i32
    return %c0_i32, %c0_i32_0 : i32, i32
  }
  func.func @transform_9(%arg0: i32) -> (i32, i32) {
    %c0_i32 = arith.constant 0 : i32
    %c0_i32_0 = arith.constant 0 : i32
    return %c0_i32, %arg0 : i32, i32
  }
}

</mosaic_0001>

<llo_original>
// kernel: tpu_custom_call.1
$region0: #{tpu_custom_call.1}
  #allocation0 [shape = 'u32[]', space=smem, size = 0x4, offset = 0x4, fixed_abs, tag = 'smem constant byte address 0x4 - core index']
  #allocation1 [shape = 'u32[144,128]{1,0:T(1,128)}', space=vmem, size = 0x12000, scoped, tag = 'internal scratch']
  %s0 = inlined_call_operand.vmem [shape: f32[8,1024], index: 0, kind: input, shape index: {}]
  %s1 = inlined_call_operand.vmem [shape: f32[48,8], index: 1, kind: input, shape index: {}]
  %s2 = inlined_call_operand.vmem [shape: f32[48,12], index: 2, kind: input, shape index: {}]
  %s3 = inlined_call_operand.vmem [shape: f32[9,512], index: 3, kind: input, shape index: {}]
  %s4 = inlined_call_operand.vmem [shape: f32[4,48], index: 4, kind: input, shape index: {}]
  %s5 = inlined_call_operand.vmem [shape: f32[4,1], index: 5, kind: input, shape index: {}]
  %s6 = inlined_call_operand.vmem [shape: f32[48,4], index: 6, kind: input, shape index: {}]
  %s7 = inlined_call_operand.vmem [shape: f32[16,48], index: 7, kind: input, shape index: {}]
  %s8 = inlined_call_operand.vmem [shape: f32[16,1], index: 8, kind: input, shape index: {}]
  %s9 = inlined_call_operand.hbm [shape: f32[16,1024], index: 9, kind: output, shape index: {}]
  %s10 = sld [smem:[#allocation0]]
  $region69: #{tpu_custom_call.1} parent=0
    _
  %s12 = ssub.s32 1, %s10
  %s13 = scalar_select 0, %s12, %s10
  $region1: #{tpu_custom_call.1} parent=0
    #allocation2 [shape = 'u8[65536]{0}', space=vmem, size = 0x10000, scoped, tag = 'output window, operand 0']
    #allocation3 [shape = 's32[2]{0}', space=sflag, size = 0x8, scoped, tag = 'scoped memory for tpu_custom_call.1']
    %14 = vsyncpa [#allocation3], 0
    %s15 = scalar_lea.sflag [#allocation3], 1
    %16 = vsyncpa %s15, 0
    loop: start=0, step=1, limit=4
    $region2: #{tpu_custom_call.1} parent=1 // loop_pre_header
      _
    $region3: #{tpu_custom_call.1} parent=1 // loop_header
      %s18 = sphi 0, %s22
      %p19 = scmp.ge.s32.totalorder %s18, 4
      %s28 = sphi 0, %s30
      %s31 = sphi 0, %s28
      %s32 = sphi 0, %s31
      %s48 = sphi 0, %s32
      %s52 = sphi 0, %s52
      %s54 = sphi 0, %s52
      %s55 = sphi 0, %s54
      %s69 = sphi 0, %s55
      %s73 = sphi 0, %s73
      %s75 = sphi 0, %s73
      %s76 = sphi 0, %s75
      %s90 = sphi 0, %s76
      %s94 = sphi 0, %s94
      %s96 = sphi 0, %s94
      %s97 = sphi 0, %s96
      %s111 = sphi 0, %s97
      %s115 = sphi 0, %s115
      %s117 = sphi 0, %s115
      %s118 = sphi 0, %s117
      %s132 = sphi 0, %s118
      %s136 = sphi 0, %s136
      %s138 = sphi 0, %s136
      %s139 = sphi 0, %s138
      %s153 = sphi 0, %s139
      %s157 = sphi 0, %s157
      %s159 = sphi 0, %s157
      %s160 = sphi 0, %s159
      %s174 = sphi 0, %s160
      %s178 = sphi 0, %s178
      %s180 = sphi 0, %s178
      %s181 = sphi 0, %s180
      %s195 = sphi 0, %s181
      %s199 = sphi 0, %s199
      %s201 = sphi 0, %s199
      %s202 = sphi 0, %s201
      %s216 = sphi 0, %s202
      %s222 = sphi 0, %s224
      %s225 = sphi 0, %s222
      %s226 = sphi 0, %s225
      %s242 = sphi 0, %s226
    $region4: #{tpu_custom_call.1} parent=1 // loop_header_branch
      %21 = sbr.rel (%p19) target = $region8
    $region5: #{tpu_custom_call.1} parent=1 // loop_body
      %s23 = ssub.s32 %s18, 1
      %s24 = ssub.s32 %s18, 2
      %s25 = sadd.s32 %s18, 1
      %s26 = ssub.s32 %s18, %s25
      %p27 = scmp.eq.s32.totalorder %s26, 0
      %s29 = sadd.s32 %s28, 1
      %s30 = scalar_select %p27, %s28, %s29
      %p33 = pneg %p27
      %p34 = scmp.eq.s32.totalorder %s18, 1
      %p35 = por %p33, %p34
      %p36 = scmp.ne.s32.totalorder %s28, %s31
      %p37 = scmp.eq.s32.totalorder %s18, 0
      %p38 = por %p36, %p37
      %p39 = scmp.ne.s32.totalorder %s28, %s31
      %p40 = scmp.eq.s32.totalorder %s23, 1
      %p41 = por %p39, %p40
      %p42 = scmp.ne.s32.totalorder %s31, %s32
      %p43 = scmp.eq.s32.totalorder %s23, 0
      %p44 = por %p42, %p43
      %p45 = scmp.ne.s32.totalorder %s31, %s32
      %p46 = scmp.eq.s32.totalorder %s24, 1
      %p47 = por %p45, %p46
      %p49 = scmp.ne.s32.totalorder %s32, %s48
      %p50 = scmp.eq.s32.totalorder %s24, 0
      %p51 = por %p49, %p50
      %s53 = sadd.s32 %s52, 1
      %p56 = scmp.eq.s32.totalorder %s18, 1
      %p57 = scmp.ne.s32.totalorder %s52, %s54
      %p58 = scmp.eq.s32.totalorder %s18, 0
      %p59 = por %p57, %p58
      %p60 = scmp.ne.s32.totalorder %s52, %s54
      %p61 = scmp.eq.s32.totalorder %s23, 1
      %p62 = por %p60, %p61
      %p63 = scmp.ne.s32.totalorder %s54, %s55
      %p64 = scmp.eq.s32.totalorder %s23, 0
      %p65 = por %p63, %p64
      %p66 = scmp.ne.s32.totalorder %s54, %s55
      %p67 = scmp.eq.s32.totalorder %s24, 1
      %p68 = por %p66, %p67
      %p70 = scmp.ne.s32.totalorder %s55, %s69
      %p71 = scmp.eq.s32.totalorder %s24, 0
      %p72 = por %p70, %p71
      %s74 = sadd.s32 %s73, 1
      %p77 = scmp.eq.s32.totalorder %s18, 1
      %p78 = scmp.ne.s32.totalorder %s73, %s75
      %p79 = scmp.eq.s32.totalorder %s18, 0
      %p80 = por %p78, %p79
      %p81 = scmp.ne.s32.totalorder %s73, %s75
      %p82 = scmp.eq.s32.totalorder %s23, 1
      %p83 = por %p81, %p82
      %p84 = scmp.ne.s32.totalorder %s75, %s76
      %p85 = scmp.eq.s32.totalorder %s23, 0
      %p86 = por %p84, %p85
      %p87 = scmp.ne.s32.totalorder %s75, %s76
      %p88 = scmp.eq.s32.totalorder %s24, 1
      %p89 = por %p87, %p88
      %p91 = scmp.ne.s32.totalorder %s76, %s90
      %p92 = scmp.eq.s32.totalorder %s24, 0
      %p93 = por %p91, %p92
      %s95 = sadd.s32 %s94, 1
      %p98 = scmp.eq.s32.totalorder %s18, 1
      %p99 = scmp.ne.s32.totalorder %s94, %s96
      %p100 = scmp.eq.s32.totalorder %s18, 0
      %p101 = por %p99, %p100
      %p102 = scmp.ne.s32.totalorder %s94, %s96
      %p103 = scmp.eq.s32.totalorder %s23, 1
      %p104 = por %p102, %p103
      %p105 = scmp.ne.s32.totalorder %s96, %s97
      %p106 = scmp.eq.s32.totalorder %s23, 0
      %p107 = por %p105, %p106
      %p108 = scmp.ne.s32.totalorder %s96, %s97
      %p109 = scmp.eq.s32.totalorder %s24, 1
      %p110 = por %p108, %p109
      %p112 = scmp.ne.s32.totalorder %s97, %s111
      %p113 = scmp.eq.s32.totalorder %s24, 0
      %p114 = por %p112, %p113
      %s116 = sadd.s32 %s115, 1
      %p119 = scmp.eq.s32.totalorder %s18, 1
      %p120 = scmp.ne.s32.totalorder %s115, %s117
      %p121 = scmp.eq.s32.totalorder %s18, 0
      %p122 = por %p120, %p121
      %p123 = scmp.ne.s32.totalorder %s115, %s117
      %p124 = scmp.eq.s32.totalorder %s23, 1
      %p125 = por %p123, %p124
      %p126 = scmp.ne.s32.totalorder %s117, %s118
      %p127 = scmp.eq.s32.totalorder %s23, 0
      %p128 = por %p126, %p127
      %p129 = scmp.ne.s32.totalorder %s117, %s118
      %p130 = scmp.eq.s32.totalorder %s24, 1
      %p131 = por %p129, %p130
      %p133 = scmp.ne.s32.totalorder %s118, %s132
      %p134 = scmp.eq.s32.totalorder %s24, 0
      %p135 = por %p133, %p134
      %s137 = sadd.s32 %s136, 1
      %p140 = scmp.eq.s32.totalorder %s18, 1
      %p141 = scmp.ne.s32.totalorder %s136, %s138
      %p142 = scmp.eq.s32.totalorder %s18, 0
      %p143 = por %p141, %p142
      %p144 = scmp.ne.s32.totalorder %s136, %s138
      %p145 = scmp.eq.s32.totalorder %s23, 1
      %p146 = por %p144, %p145
      %p147 = scmp.ne.s32.totalorder %s138, %s139
      %p148 = scmp.eq.s32.totalorder %s23, 0
      %p149 = por %p147, %p148
      %p150 = scmp.ne.s32.totalorder %s138, %s139
      %p151 = scmp.eq.s32.totalorder %s24, 1
      %p152 = por %p150, %p151
      %p154 = scmp.ne.s32.totalorder %s139, %s153
      %p155 = scmp.eq.s32.totalorder %s24, 0
      %p156 = por %p154, %p155
      %s158 = sadd.s32 %s157, 1
      %p161 = scmp.eq.s32.totalorder %s18, 1
      %p162 = scmp.ne.s32.totalorder %s157, %s159
      %p163 = scmp.eq.s32.totalorder %s18, 0
      %p164 = por %p162, %p163
      %p165 = scmp.ne.s32.totalorder %s157, %s159
      %p166 = scmp.eq.s32.totalorder %s23, 1
      %p167 = por %p165, %p166
      %p168 = scmp.ne.s32.totalorder %s159, %s160
      %p169 = scmp.eq.s32.totalorder %s23, 0
      %p170 = por %p168, %p169
      %p171 = scmp.ne.s32.totalorder %s159, %s160
      %p172 = scmp.eq.s32.totalorder %s24, 1
      %p173 = por %p171, %p172
      %p175 = scmp.ne.s32.totalorder %s160, %s174
      %p176 = scmp.eq.s32.totalorder %s24, 0
      %p177 = por %p175, %p176
      %s179 = sadd.s32 %s178, 1
      %p182 = scmp.eq.s32.totalorder %s18, 1
      %p183 = scmp.ne.s32.totalorder %s178, %s180
      %p184 = scmp.eq.s32.totalorder %s18, 0
      %p185 = por %p183, %p184
      %p186 = scmp.ne.s32.totalorder %s178, %s180
      %p187 = scmp.eq.s32.totalorder %s23, 1
      %p188 = por %p186, %p187
      %p189 = scmp.ne.s32.totalorder %s180, %s181
      %p190 = scmp.eq.s32.totalorder %s23, 0
      %p191 = por %p189, %p190
      %p192 = scmp.ne.s32.totalorder %s180, %s181
      %p193 = scmp.eq.s32.totalorder %s24, 1
      %p194 = por %p192, %p193
      %p196 = scmp.ne.s32.totalorder %s181, %s195
      %p197 = scmp.eq.s32.totalorder %s24, 0
      %p198 = por %p196, %p197
      %s200 = sadd.s32 %s199, 1
      %p203 = scmp.eq.s32.totalorder %s18, 1
      %p204 = scmp.ne.s32.totalorder %s199, %s201
      %p205 = scmp.eq.s32.totalorder %s18, 0
      %p206 = por %p204, %p205
      %p207 = scmp.ne.s32.totalorder %s199, %s201
      %p208 = scmp.eq.s32.totalorder %s23, 1
      %p209 = por %p207, %p208
      %p210 = scmp.ne.s32.totalorder %s201, %s202
      %p211 = scmp.eq.s32.totalorder %s23, 0
      %p212 = por %p210, %p211
      %p213 = scmp.ne.s32.totalorder %s201, %s202
      %p214 = scmp.eq.s32.totalorder %s24, 1
      %p215 = por %p213, %p214
      %p217 = scmp.ne.s32.totalorder %s202, %s216
      %p218 = scmp.eq.s32.totalorder %s24, 0
      %p219 = por %p217, %p218
      %s220 = ssub.s32 %s18, %s25
      %p221 = scmp.eq.s32.totalorder %s220, 0
      %s223 = sadd.s32 %s222, 1
      %s224 = scalar_select %p221, %s222, %s223
      %p227 = pneg %p221
      %p228 = scmp.eq.s32.totalorder %s18, 1
      %p229 = por %p227, %p228
      %p230 = scmp.ne.s32.totalorder %s222, %s225
      %p231 = scmp.eq.s32.totalorder %s18, 0
      %p232 = por %p230, %p231
      %p233 = scmp.ne.s32.totalorder %s222, %s225
      %p234 = scmp.eq.s32.totalorder %s23, 1
      %p235 = por %p233, %p234
      %p236 = scmp.ne.s32.totalorder %s225, %s226
      %p237 = scmp.eq.s32.totalorder %s23, 0
      %p238 = por %p236, %p237
      %p239 = scmp.ne.s32.totalorder %s225, %s226
      %p240 = scmp.eq.s32.totalorder %s24, 1
      %p241 = por %p239, %p240
      %p243 = scmp.ne.s32.totalorder %s226, %s242
      %p244 = scmp.eq.s32.totalorder %s24, 0
      %p245 = por %p243, %p244
      %p246 = scmp.le.s32.totalorder 1, %s18
      %p247 = scmp.lt.s32.totalorder %s18, 3
      %p248 = pnand %p246, %p247
      %p249 = pneg %p248
      // Predicated region
      $region9: #{tpu_custom_call.1} parent=5 // pred_check
        _
      $region10: #{tpu_custom_call.1} parent=5 // pred_check_branch
        %251 = sbr.rel (%p248) target = $region12
      $region11: #{tpu_custom_call.1} parent=5 // pred_region
        %s252 = ssub.s32 %s18, 1
        // Predicated region
        $region13: #{tpu_custom_call.1} parent=11 // pred_check
          %p253 = pneg %p65
        $region14: #{tpu_custom_call.1} parent=11 // pred_check_branch
          %255 = sbr.rel (%p253) target = $region16
        $region15: #{tpu_custom_call.1} parent=11 // pred_region
          _
        $region16: #{tpu_custom_call.1} parent=11 // pred_fallthru
          _
        // Predicated region
        $region17: #{tpu_custom_call.1} parent=11 // pred_check
          %p256 = pneg %p86
        $region18: #{tpu_custom_call.1} parent=11 // pred_check_branch
          %258 = sbr.rel (%p256) target = $region20
        $region19: #{tpu_custom_call.1} parent=11 // pred_region
          _
        $region20: #{tpu_custom_call.1} parent=11 // pred_fallthru
          _
        // Predicated region
        $region21: #{tpu_custom_call.1} parent=11 // pred_check
          %p259 = pneg %p107
        $region22: #{tpu_custom_call.1} parent=11 // pred_check_branch
          %261 = sbr.rel (%p259) target = $region24
        $region23: #{tpu_custom_call.1} parent=11 // pred_region
          _
        $region24: #{tpu_custom_call.1} parent=11 // pred_fallthru
          _
        // Predicated region
        $region25: #{tpu_custom_call.1} parent=11 // pred_check
          %p262 = pneg %p128
        $region26: #{tpu_custom_call.1} parent=11 // pred_check_branch
          %264 = sbr.rel (%p262) target = $region28
        $region27: #{tpu_custom_call.1} parent=11 // pred_region
          _
        $region28: #{tpu_custom_call.1} parent=11 // pred_fallthru
          _
        // Predicated region
        $region29: #{tpu_custom_call.1} parent=11 // pred_check
          %p265 = pneg %p149
        $region30: #{tpu_custom_call.1} parent=11 // pred_check_branch
          %267 = sbr.rel (%p265) target = $region32
        $region31: #{tpu_custom_call.1} parent=11 // pred_region
          _
        $region32: #{tpu_custom_call.1} parent=11 // pred_fallthru
          _
        // Predicated region
        $region33: #{tpu_custom_call.1} parent=11 // pred_check
          %p268 = pneg %p170
        $region34: #{tpu_custom_call.1} parent=11 // pred_check_branch
          %270 = sbr.rel (%p268) target = $region36
        $region35: #{tpu_custom_call.1} parent=11 // pred_region
          _
        $region36: #{tpu_custom_call.1} parent=11 // pred_fallthru
          _
        // Predicated region
        $region37: #{tpu_custom_call.1} parent=11 // pred_check
          %p271 = pneg %p191
        $region38: #{tpu_custom_call.1} parent=11 // pred_check_branch
          %273 = sbr.rel (%p271) target = $region40
        $region39: #{tpu_custom_call.1} parent=11 // pred_region
          _
        $region40: #{tpu_custom_call.1} parent=11 // pred_fallthru
          _
        // Predicated region
        $region41: #{tpu_custom_call.1} parent=11 // pred_check
          %p274 = pneg %p212
        $region42: #{tpu_custom_call.1} parent=11 // pred_check_branch
          %276 = sbr.rel (%p274) target = $region44
        $region43: #{tpu_custom_call.1} parent=11 // pred_region
          _
        $region44: #{tpu_custom_call.1} parent=11 // pred_fallthru
          _
      $region12: #{tpu_custom_call.1} parent=5 // pred_fallthru
        _
      %p277 = scmp.lt.s32.totalorder %s18, 2
      // Predicated region
      $region45: #{tpu_custom_call.1} parent=5 // pred_check
        %p278 = pneg %p277
      $region46: #{tpu_custom_call.1} parent=5 // pred_check_branch
        %280 = sbr.rel (%p278) target = $region48
      $region47: #{tpu_custom_call.1} parent=5 // pred_region
        // Predicated region
        $region49: #{tpu_custom_call.1} parent=47 // pred_check
          %p281 = pneg %p38
        $region50: #{tpu_custom_call.1} parent=47 // pred_check_branch
          %283 = sbr.rel (%p281) target = $region52
        $region51: #{tpu_custom_call.1} parent=47 // pred_region
          %s284 = smul.u32 4, %s18
          %p285 = scmp.lt.s32.totalorder %s284, 7
          %s286 = scalar_select %p285, %s284, 7
          %s287 = smul.addr %s286, 8
          %s288 = scalar_lea.vmem %s0, %s287
          %s289 = smul.u32 4, %s18
        $region52: #{tpu_custom_call.1} parent=47 // pred_fallthru
          _
      $region48: #{tpu_custom_call.1} parent=5 // pred_fallthru
        _
      %p290 = scmp.le.s32.totalorder 1, %s18
      %p291 = scmp.lt.s32.totalorder %s18, 3
      %p292 = pnand %p290, %p291
      %p293 = pneg %p292
      // Predicated region
      $region53: #{tpu_custom_call.1} parent=5 // pred_check
        _
      $region54: #{tpu_custom_call.1} parent=5 // pred_check_branch
        %295 = sbr.rel (%p292) target = $region56
      $region55: #{tpu_custom_call.1} parent=5 // pred_region
        %s296 = ssub.s32 %s18, 1
        %s297 = smul.u32 4, %s23
        %p298 = scmp.lt.s32.totalorder %s297, 7
        %s299 = scalar_select %p298, %s297, 7
        %s300 = smul.addr %s299, 8
        %s301 = scalar_lea.vmem %s0, %s300
        %p302 = pneg %p44
        %p303 = pneg %p41
        %p304 = pneg %p65
        %p305 = pneg %p62
        %p306 = pneg %p86
        %p307 = pneg %p83
        %p308 = pneg %p107
        %p309 = pneg %p104
        %p310 = pneg %p128
        %p311 = pneg %p125
        %p312 = pneg %p149
        %p313 = pneg %p146
        %p314 = pneg %p170
        %p315 = pneg %p167
        %p316 = pneg %p191
        %p317 = pneg %p188
        %p318 = pneg %p212
        %p319 = pneg %p209
        %p320 = pneg %p238
        %p321 = pneg %p235
        %s322 = sand.u32 %s225, 1
        %s323 = scalar_lea.sflag [#allocation3], %s322
        %s324 = sand.u32 %s225, 1
        %s325 = smul.addr %s324, 64
        %s326 = scalar_lea.vmem [#allocation2], %s325
        %s327 = smul.u32 4, %s23
        %p328 = scmp.lt.s32.totalorder %s327, 7
        %s329 = scalar_select %p328, %s327, 7
        %s330 = smul.addr %s329, 8
        %s331 = scalar_lea.vmem %s0, %s330
        %s332 = smul.u32 4, %s23
        %s333 = smul.u32 4, %s23
        %v334 = vld [vmem:[%s1] sm:$0xff]
        %v335 = vld [vmem:[%s1 + $0x8] sm:$0xff]
        %v336 = vld [vmem:[%s1 + $0x10] sm:$0xff]
        %v337 = vld [vmem:[%s1 + $0x18] sm:$0xff]
        %v338 = vld [vmem:[%s1 + $0x20] sm:$0xff]
        %v339 = vld [vmem:[%s1 + $0x28] sm:$0xff]
        %v340 = vld [vmem:[%s331] sm:$0xff]
        %v341 = vld [vmem:[%s331 + $0x8] sm:$0xff]
        %v342 = vld [vmem:[%s331 + $0x10] sm:$0xff]
        %v343 = vld [vmem:[%s331 + $0x18] sm:$0xff]
        %v344 = vld [vmem:[%s2] sm:$0xff]
        %v345 = vld [vmem:[%s2 + $0x8] sm:$0xff]
        %v346 = vld [vmem:[%s2 + $0x10] sm:$0xff]
        %v347 = vld [vmem:[%s2 + $0x18] sm:$0xff]
        %v348 = vld [vmem:[%s2 + $0x20] sm:$0xff]
        %v349 = vld [vmem:[%s2 + $0x28] sm:$0xff]
        %351 = vset.pattern.permute.xlu0 9
        %352 = vperm.xlu0 %351, %v344
        %v353 = vpop.permute.xlu0 %352
        %356 = vset.pattern.permute.xlu0 9
        %357 = vperm.xlu0 %356, %v345
        %v358 = vpop.permute.xlu0 %357
        %361 = vset.pattern.permute.xlu0 9
        %362 = vperm.xlu0 %361, %v346
        %v363 = vpop.permute.xlu0 %362
        %366 = vset.pattern.permute.xlu0 9
        %367 = vperm.xlu0 %366, %v347
        %v368 = vpop.permute.xlu0 %367
        %371 = vset.pattern.permute.xlu0 9
        %372 = vperm.xlu0 %371, %v348
        %v373 = vpop.permute.xlu0 %372
        %376 = vset.pattern.permute.xlu0 9
        %377 = vperm.xlu0 %376, %v349
        %v378 = vpop.permute.xlu0 %377
        %vm380 = vcmask 64512
        %v382 = vsel %vm380, %v334, 0
        %v385 = vsel %vm380, %v335, 0
        %v388 = vsel %vm380, %v336, 0
        %v391 = vsel %vm380, %v337, 0
        %v394 = vsel %vm380, %v338, 0
        %v397 = vsel %vm380, %v339, 0
        %399 = vmatprep.subr.mxu0 %v341
        %400 = vmatpush1.msra.mxu0 %v340
        %401 = vmatprep.subr.mxu0 0.0
        %402 = vmatpush1.msra.mxu0 0.0
        %403 = vmatprep.subr.mxu0 0.0
        %404 = vmatpush1.msra.mxu0 0.0
        %405 = vmatprep.subr.mxu0 0.0
        %406 = vmatpush1.msra.mxu0 0.0
        %407 = vmatprep.subr.mxu0 0.0
        %408 = vmatpush1.msra.mxu0 0.0
        %409 = vmatprep.subr.mxu0 0.0
        %410 = vmatpush1.msra.mxu0 0.0
        %411 = vmatprep.subr.mxu0 0.0
        %412 = vmatpush1.msra.mxu0 0.0
        %413 = vmatprep.subr.mxu0 0.0
        %414 = vmatpush1.msra.mxu0 0.0
        %415 = vmatprep.subr.mxu0 0.0
        %416 = vmatpush1.msra.mxu0 0.0
        %417 = vmatprep.subr.mxu0 0.0
        %418 = vmatpush1.msra.mxu0 0.0
        %419 = vmatprep.subr.mxu0 0.0
        %420 = vmatpush1.msra.mxu0 0.0
        %421 = vmatprep.subr.mxu0 0.0
        %422 = vmatpush1.msra.mxu0 0.0
        %423 = vmatprep.subr.mxu0 0.0
        %424 = vmatpush1.msra.mxu0 0.0
        %425 = vmatprep.subr.mxu0 0.0
        %426 = vmatpush1.msra.mxu0 0.0
        %427 = vmatprep.subr.mxu0 0.0
        %428 = vmatpush1.msra.mxu0 0.0
        %429 = vmatprep.subr.mxu0 0.0
        %430 = vmatpush1.msra.mxu0 0.0
        %431 = vmatprep.subr.mxu0 0.0
        %432 = vmatpush1.msra.mxu0 0.0
        %433 = vmatprep.subr.mxu0 0.0
        %434 = vmatpush1.msra.mxu0 0.0
        %435 = vmatprep.subr.mxu0 0.0
        %436 = vmatpush1.msra.mxu0 0.0
        %437 = vmatprep.subr.mxu0 0.0
        %438 = vmatpush1.msra.mxu0 0.0
        %439 = vmatprep.subr.mxu0 0.0
        %440 = vmatpush1.msra.mxu0 0.0
        %441 = vmatprep.subr.mxu0 0.0
        %442 = vmatpush1.msra.mxu0 0.0
        %443 = vmatprep.subr.mxu0 0.0
        %444 = vmatpush1.msra.mxu0 0.0
        %445 = vmatprep.subr.mxu0 0.0
        %446 = vmatpush1.msra.mxu0 0.0
        %447 = vmatprep.subr.mxu0 0.0
        %448 = vmatpush1.msra.mxu0 0.0
        %449 = vmatprep.subr.mxu0 0.0
        %450 = vmatpush1.msra.mxu0 0.0
        %451 = vmatprep.subr.mxu0 0.0
        %452 = vmatpush1.msra.mxu0 0.0
        %453 = vmatprep.subr.mxu0 0.0
        %454 = vmatpush1.msra.mxu0 0.0
        %455 = vmatprep.subr.mxu0 0.0
        %456 = vmatpush1.msra.mxu0 0.0
        %457 = vmatprep.subr.mxu0 0.0
        %458 = vmatpush1.msra.mxu0 0.0
        %459 = vmatprep.subr.mxu0 0.0
        %460 = vmatpush1.msra.mxu0 0.0
        %461 = vmatprep.subr.mxu0 0.0
        %462 = vmatpush1.msra.mxu0 0.0
        %463 = vmatprep.mubr.f32.mxu0 0.0
        %464 = vmatmul.mubr.f32.gmra.mrb[0].mxu0 %v382
        %v465 = vpop.f32.mrb[0].mxu0
        %v466 = vadd.f32 %v353, %v465
        %v467 = vpop.f32.mrb[0].mxu0
        %v468 = vadd.f32 %v353, %v467
        %469 = vmatprep.mubr.f32.mxu0 0.0
        %470 = vmatmul.mubr.f32.gmra.mrb[0].mxu0 %v385
        %v471 = vpop.f32.mrb[0].mxu0
        %v472 = vadd.f32 %v358, %v471
        %v473 = vpop.f32.mrb[0].mxu0
        %v474 = vadd.f32 %v358, %v473
        %475 = vmatprep.mubr.f32.mxu0 0.0
        %476 = vmatmul.mubr.f32.gmra.mrb[0].mxu0 %v388
        %v477 = vpop.f32.mrb[0].mxu0
        %v478 = vadd.f32 %v363, %v477
        %v479 = vpop.f32.mrb[0].mxu0
        %v480 = vadd.f32 %v363, %v479
        %481 = vmatprep.mubr.f32.mxu0 0.0
        %482 = vmatmul.mubr.f32.gmra.mrb[0].mxu0 %v391
        %v483 = vpop.f32.mrb[0].mxu0
        %v484 = vadd.f32 %v368, %v483
        %v485 = vpop.f32.mrb[0].mxu0
        %v486 = vadd.f32 %v368, %v485
        %487 = vmatprep.mubr.f32.mxu0 0.0
        %488 = vmatmul.mubr.f32.gmra.mrb[0].mxu0 %v394
        %v489 = vpop.f32.mrb[0].mxu0
        %v490 = vadd.f32 %v373, %v489
        %v491 = vpop.f32.mrb[0].mxu0
        %v492 = vadd.f32 %v373, %v491
        %493 = vmatprep.mubr.f32.mxu0 0.0
        %494 = vmatmul.mubr.f32.gmra.mrb[0].mxu0 %v397
        %v495 = vpop.f32.mrb[0].mxu0
        %v496 = vadd.f32 %v378, %v495
        %v497 = vpop.f32.mrb[0].mxu0
        %v498 = vadd.f32 %v378, %v497
        %499 = vdwg.mxu0
        %500 = vmatprep.subr.mxu0 %v343
        %501 = vmatpush1.msra.mxu0 %v342
        %502 = vmatprep.subr.mxu0 0.0
        %503 = vmatpush1.msra.mxu0 0.0
        %504 = vmatprep.subr.mxu0 0.0
        %505 = vmatpush1.msra.mxu0 0.0
        %506 = vmatprep.subr.mxu0 0.0
        %507 = vmatpush1.msra.mxu0 0.0
        %508 = vmatprep.subr.mxu0 0.0
        %509 = vmatpush1.msra.mxu0 0.0
        %510 = vmatprep.subr.mxu0 0.0
        %511 = vmatpush1.msra.mxu0 0.0
        %512 = vmatprep.subr.mxu0 0.0
        %513 = vmatpush1.msra.mxu0 0.0
        %514 = vmatprep.subr.mxu0 0.0
        %515 = vmatpush1.msra.mxu0 0.0
        %516 = vmatprep.subr.mxu0 0.0
        %517 = vmatpush1.msra.mxu0 0.0
        %518 = vmatprep.subr.mxu0 0.0
        %519 = vmatpush1.msra.mxu0 0.0
        %520 = vmatprep.subr.mxu0 0.0
        %521 = vmatpush1.msra.mxu0 0.0
        %522 = vmatprep.subr.mxu0 0.0
        %523 = vmatpush1.msra.mxu0 0.0
        %524 = vmatprep.subr.mxu0 0.0
        %525 = vmatpush1.msra.mxu0 0.0
        %526 = vmatprep.subr.mxu0 0.0
        %527 = vmatpush1.msra.mxu0 0.0
        %528 = vmatprep.subr.mxu0 0.0
        %529 = vmatpush1.msra.mxu0 0.0
        %530 = vmatprep.subr.mxu0 0.0
        %531 = vmatpush1.msra.mxu0 0.0
        %532 = vmatprep.subr.mxu0 0.0
        %533 = vmatpush1.msra.mxu0 0.0
        %534 = vmatprep.subr.mxu0 0.0
        %535 = vmatpush1.msra.mxu0 0.0
        %536 = vmatprep.subr.mxu0 0.0
        %537 = vmatpush1.msra.mxu0 0.0
        %538 = vmatprep.subr.mxu0 0.0
        %539 = vmatpush1.msra.mxu0 0.0
        %540 = vmatprep.subr.mxu0 0.0
        %541 = vmatpush1.msra.mxu0 0.0
        %542 = vmatprep.subr.mxu0 0.0
        %543 = vmatpush1.msra.mxu0 0.0
        %544 = vmatprep.subr.mxu0 0.0
        %545 = vmatpush1.msra.mxu0 0.0
        %546 = vmatprep.subr.mxu0 0.0
        %547 = vmatpush1.msra.mxu0 0.0
        %548 = vmatprep.subr.mxu0 0.0
        %549 = vmatpush1.msra.mxu0 0.0
        %550 = vmatprep.subr.mxu0 0.0
        %551 = vmatpush1.msra.mxu0 0.0
        %552 = vmatprep.subr.mxu0 0.0
        %553 = vmatpush1.msra.mxu0 0.0
        %554 = vmatprep.subr.mxu0 0.0
        %555 = vmatpush1.msra.mxu0 0.0
        %556 = vmatprep.subr.mxu0 0.0
        %557 = vmatpush1.msra.mxu0 0.0
        %558 = vmatprep.subr.mxu0 0.0
        %559 = vmatpush1.msra.mxu0 0.0
        %560 = vmatprep.subr.mxu0 0.0
        %561 = vmatpush1.msra.mxu0 0.0
        %562 = vmatprep.subr.mxu0 0.0
        %563 = vmatpush1.msra.mxu0 0.0
        %564 = vmatprep.mubr.f32.mxu0 0.0
        %565 = vmatmul.mubr.f32.gmra.mrb[0].mxu0 %v382
        %v566 = vpop.f32.mrb[0].mxu0
        %v567 = vadd.f32 %v353, %v566
        %v568 = vpop.f32.mrb[0].mxu0
        %v569 = vadd.f32 %v353, %v568
        %570 = vmatprep.mubr.f32.mxu0 0.0
        %571 = vmatmul.mubr.f32.gmra.mrb[0].mxu0 %v385
        %v572 = vpop.f32.mrb[0].mxu0
        %v573 = vadd.f32 %v358, %v572
        %v574 = vpop.f32.mrb[0].mxu0
        %v575 = vadd.f32 %v358, %v574
        %576 = vmatprep.mubr.f32.mxu0 0.0
        %577 = vmatmul.mubr.f32.gmra.mrb[0].mxu0 %v388
        %v578 = vpop.f32.mrb[0].mxu0
        %v579 = vadd.f32 %v363, %v578
        %v580 = vpop.f32.mrb[0].mxu0
        %v581 = vadd.f32 %v363, %v580
        %582 = vmatprep.mubr.f32.mxu0 0.0
        %583 = vmatmul.mubr.f32.gmra.mrb[0].mxu0 %v391
        %v584 = vpop.f32.mrb[0].mxu0
        %v585 = vadd.f32 %v368, %v584
        %v586 = vpop.f32.mrb[0].mxu0
        %v587 = vadd.f32 %v368, %v586
        %588 = vmatprep.mubr.f32.mxu0 0.0
        %589 = vmatmul.mubr.f32.gmra.mrb[0].mxu0 %v394
        %v590 = vpop.f32.mrb[0].mxu0
        %v591 = vadd.f32 %v373, %v590
        %v592 = vpop.f32.mrb[0].mxu0
        %v593 = vadd.f32 %v373, %v592
        %594 = vmatprep.mubr.f32.mxu0 0.0
        %595 = vmatmul.mubr.f32.gmra.mrb[0].mxu0 %v397
        %v596 = vpop.f32.mrb[0].mxu0
        %v597 = vadd.f32 %v378, %v596
        %v598 = vpop.f32.mrb[0].mxu0
        %v599 = vadd.f32 %v378, %v598
        %600 = vdwg.mxu0
        %v601 = vxor.u32 %v466, 2147483648
        %v602 = vxor.u32 %v468, 2147483648
        %v603 = vxor.u32 %v567, 2147483648
        %v604 = vxor.u32 %v569, 2147483648
        %v605 = vxor.u32 %v472, 2147483648
        %v606 = vxor.u32 %v474, 2147483648
        %v607 = vxor.u32 %v573, 2147483648
        %v608 = vxor.u32 %v575, 2147483648
        %v609 = vxor.u32 %v478, 2147483648
        %v610 = vxor.u32 %v480, 2147483648
        %v611 = vxor.u32 %v579, 2147483648
        %v612 = vxor.u32 %v581, 2147483648
        %v613 = vxor.u32 %v484, 2147483648
        %v614 = vxor.u32 %v486, 2147483648
        %v615 = vxor.u32 %v585, 2147483648
        %v616 = vxor.u32 %v587, 2147483648
        %v617 = vxor.u32 %v490, 2147483648
        %v618 = vxor.u32 %v492, 2147483648
        %v619 = vxor.u32 %v591, 2147483648
        %v620 = vxor.u32 %v593, 2147483648
        %v621 = vxor.u32 %v496, 2147483648
        %v622 = vxor.u32 %v498, 2147483648
        %v623 = vxor.u32 %v597, 2147483648
        %v624 = vxor.u32 %v599, 2147483648
        %v625 = vmul.f32 %v601, 1.442695
        %v626 = vpow.pop %v625
        %v627 = vmul.f32 %v602, 1.442695
        %v628 = vpow.pop %v627
        %v629 = vmul.f32 %v603, 1.442695
        %v630 = vpow.pop %v629
        %v631 = vmul.f32 %v604, 1.442695
        %v632 = vpow.pop %v631
        %v633 = vmul.f32 %v605, 1.442695
        %v634 = vpow.pop %v633
        %v635 = vmul.f32 %v606, 1.442695
        %v636 = vpow.pop %v635
        %v637 = vmul.f32 %v607, 1.442695
        %v638 = vpow.pop %v637
        %v639 = vmul.f32 %v608, 1.442695
        %v640 = vpow.pop %v639
        %v641 = vmul.f32 %v609, 1.442695
        %v642 = vpow.pop %v641
        %v643 = vmul.f32 %v610, 1.442695
        %v644 = vpow.pop %v643
        %v645 = vmul.f32 %v611, 1.442695
        %v646 = vpow.pop %v645
        %v647 = vmul.f32 %v612, 1.442695
        %v648 = vpow.pop %v647
        %v649 = vmul.f32 %v613, 1.442695
        %v650 = vpow.pop %v649
        %v651 = vmul.f32 %v614, 1.442695
        %v652 = vpow.pop %v651
        %v653 = vmul.f32 %v615, 1.442695
        %v654 = vpow.pop %v653
        %v655 = vmul.f32 %v616, 1.442695
        %v656 = vpow.pop %v655
        %v657 = vmul.f32 %v617, 1.442695
        %v658 = vpow.pop %v657
        %v659 = vmul.f32 %v618, 1.442695
        %v660 = vpow.pop %v659
        %v661 = vmul.f32 %v619, 1.442695
        %v662 = vpow.pop %v661
        %v663 = vmul.f32 %v620, 1.442695
        %v664 = vpow.pop %v663
        %v665 = vmul.f32 %v621, 1.442695
        %v666 = vpow.pop %v665
        %v667 = vmul.f32 %v622, 1.442695
        %v668 = vpow.pop %v667
        %v669 = vmul.f32 %v623, 1.442695
        %v670 = vpow.pop %v669
        %v671 = vmul.f32 %v624, 1.442695
        %v672 = vpow.pop %v671
        %v673 = vadd.f32 %v626, 1.0
        %v674 = vadd.f32 %v628, 1.0
        %v675 = vadd.f32 %v630, 1.0
        %v676 = vadd.f32 %v632, 1.0
        %v677 = vadd.f32 %v634, 1.0
        %v678 = vadd.f32 %v636, 1.0
        %v679 = vadd.f32 %v638, 1.0
        %v680 = vadd.f32 %v640, 1.0
        %v681 = vadd.f32 %v642, 1.0
        %v682 = vadd.f32 %v644, 1.0
        %v683 = vadd.f32 %v646, 1.0
        %v684 = vadd.f32 %v648, 1.0
        %v685 = vadd.f32 %v650, 1.0
        %v686 = vadd.f32 %v652, 1.0
        %v687 = vadd.f32 %v654, 1.0
        %v688 = vadd.f32 %v656, 1.0
        %v689 = vadd.f32 %v658, 1.0
        %v690 = vadd.f32 %v660, 1.0
        %v691 = vadd.f32 %v662, 1.0
        %v692 = vadd.f32 %v664, 1.0
        %v693 = vadd.f32 %v666, 1.0
        %v694 = vadd.f32 %v668, 1.0
        %v695 = vadd.f32 %v670, 1.0
        %v696 = vadd.f32 %v672, 1.0
        %v697 = vrcp.pop %v673
        %v698 = vmul.f32 1.0, %v697
        %v699 = vrcp.pop %v674
        %v700 = vmul.f32 1.0, %v699
        %v701 = vrcp.pop %v675
        %v702 = vmul.f32 1.0, %v701
        %v703 = vrcp.pop %v676
        %v704 = vmul.f32 1.0, %v703
        %v705 = vrcp.pop %v677
        %v706 = vmul.f32 1.0, %v705
        %v707 = vrcp.pop %v678
        %v708 = vmul.f32 1.0, %v707
        %v709 = vrcp.pop %v679
        %v710 = vmul.f32 1.0, %v709
        %v711 = vrcp.pop %v680
        %v712 = vmul.f32 1.0, %v711
        %v713 = vrcp.pop %v681
        %v714 = vmul.f32 1.0, %v713
        %v715 = vrcp.pop %v682
        %v716 = vmul.f32 1.0, %v715
        %v717 = vrcp.pop %v683
        %v718 = vmul.f32 1.0, %v717
        %v719 = vrcp.pop %v684
        %v720 = vmul.f32 1.0, %v719
        %v721 = vrcp.pop %v685
        %v722 = vmul.f32 1.0, %v721
        %v723 = vrcp.pop %v686
        %v724 = vmul.f32 1.0, %v723
        %v725 = vrcp.pop %v687
        %v726 = vmul.f32 1.0, %v725
        %v727 = vrcp.pop %v688
        %v728 = vmul.f32 1.0, %v727
        %v729 = vrcp.pop %v689
        %v730 = vmul.f32 1.0, %v729
        %v731 = vrcp.pop %v690
        %v732 = vmul.f32 1.0, %v731
        %v733 = vrcp.pop %v691
        %v734 = vmul.f32 1.0, %v733
        %v735 = vrcp.pop %v692
        %v736 = vmul.f32 1.0, %v735
        %v737 = vrcp.pop %v693
        %v738 = vmul.f32 1.0, %v737
        %v739 = vrcp.pop %v694
        %v740 = vmul.f32 1.0, %v739
        %v741 = vrcp.pop %v695
        %v742 = vmul.f32 1.0, %v741
        %v743 = vrcp.pop %v696
        %v744 = vmul.f32 1.0, %v743
        %v745 = vmul.f32 %v466, %v698
        %v746 = vmul.f32 %v468, %v700
        %v747 = vmul.f32 %v567, %v702
        %v748 = vmul.f32 %v569, %v704
        %v749 = vmul.f32 %v472, %v706
        %v750 = vmul.f32 %v474, %v708
        %v751 = vmul.f32 %v573, %v710
        %v752 = vmul.f32 %v575, %v712
        %v753 = vmul.f32 %v478, %v714
        %v754 = vmul.f32 %v480, %v716
        %v755 = vmul.f32 %v579, %v718
        %v756 = vmul.f32 %v581, %v720
        %v757 = vmul.f32 %v484, %v722
        %v758 = vmul.f32 %v486, %v724
        %v759 = vmul.f32 %v585, %v726
        %v760 = vmul.f32 %v587, %v728
        %v761 = vmul.f32 %v490, %v730
        %v762 = vmul.f32 %v492, %v732
        %v763 = vmul.f32 %v591, %v734
        %v764 = vmul.f32 %v593, %v736
        %v765 = vmul.f32 %v496, %v738
        %v766 = vmul.f32 %v498, %v740
        %v767 = vmul.f32 %v597, %v742
        %v768 = vmul.f32 %v599, %v744
        %769 = vrot.lane.b32.xlu0 %v745, 17
        %v770 = vpop.permute.xlu0 %769
        %771 = vrot.lane.b32.xlu0 %v749, 17
        %v772 = vpop.permute.xlu0 %771
        %773 = vrot.lane.b32.xlu0 %v753, 17
        %v774 = vpop.permute.xlu0 %773
        %775 = vrot.lane.b32.xlu0 %v757, 17
        %v776 = vpop.permute.xlu0 %775
        %777 = vrot.lane.b32.xlu0 %v761, 17
        %v778 = vpop.permute.xlu0 %777
        %779 = vrot.lane.b32.xlu0 %v765, 17
        %v780 = vpop.permute.xlu0 %779
        %781 = vrot.lane.b32.xlu0 %v746, 17
        %v782 = vpop.permute.xlu0 %781
        %783 = vrot.lane.b32.xlu0 %v750, 17
        %v784 = vpop.permute.xlu0 %783
        %785 = vrot.lane.b32.xlu0 %v754, 17
        %v786 = vpop.permute.xlu0 %785
        %787 = vrot.lane.b32.xlu0 %v758, 17
        %v788 = vpop.permute.xlu0 %787
        %789 = vrot.lane.b32.xlu0 %v762, 17
        %v790 = vpop.permute.xlu0 %789
        %791 = vrot.lane.b32.xlu0 %v766, 17
        %v792 = vpop.permute.xlu0 %791
        %793 = vrot.lane.b32.xlu0 %v747, 17
        %v794 = vpop.permute.xlu0 %793
        %795 = vrot.lane.b32.xlu0 %v751, 17
        %v796 = vpop.permute.xlu0 %795
        %797 = vrot.lane.b32.xlu0 %v755, 17
        %v798 = vpop.permute.xlu0 %797
        %799 = vrot.lane.b32.xlu0 %v759, 17
        %v800 = vpop.permute.xlu0 %799
        %801 = vrot.lane.b32.xlu0 %v763, 17
        %v802 = vpop.permute.xlu0 %801
        %803 = vrot.lane.b32.xlu0 %v767, 17
        %v804 = vpop.permute.xlu0 %803
        %805 = vrot.lane.b32.xlu0 %v748, 17
        %v806 = vpop.permute.xlu0 %805
        %807 = vrot.lane.b32.xlu0 %v752, 17
        %v808 = vpop.permute.xlu0 %807
        %809 = vrot.lane.b32.xlu0 %v756, 17
        %v810 = vpop.permute.xlu0 %809
        %811 = vrot.lane.b32.xlu0 %v760, 17
        %v812 = vpop.permute.xlu0 %811
        %813 = vrot.lane.b32.xlu0 %v764, 17
        %v814 = vpop.permute.xlu0 %813
        %815 = vrot.lane.b32.xlu0 %v768, 17
        %v816 = vpop.permute.xlu0 %815
        %v817 = vlaneseq
        %v818 = vand.u32 %v817, 127
        %vm819 = vcmp.lt.s32.totalorder %v818, 17
        %v820 = vsel %vm819, %v794, %v806
        %v821 = vsel %vm819, %v796, %v808
        %v822 = vsel %vm819, %v798, %v810
        %v823 = vsel %vm819, %v800, %v812
        %v824 = vsel %vm819, %v802, %v814
        %v825 = vsel %vm819, %v804, %v816
        %v826 = vsel %vm819, %v782, %v794
        %v827 = vsel %vm819, %v784, %v796
        %v828 = vsel %vm819, %v786, %v798
        %v829 = vsel %vm819, %v788, %v800
        %v830 = vsel %vm819, %v790, %v802
        %v831 = vsel %vm819, %v792, %v804
        %v832 = vsel %vm819, %v770, %v782
        %v833 = vsel %vm819, %v772, %v784
        %v834 = vsel %vm819, %v774, %v786
        %v835 = vsel %vm819, %v776, %v788
        %v836 = vsel %vm819, %v778, %v790
        %v837 = vsel %vm819, %v780, %v792
        %v838 = vsel %vm819, %v806, %v770
        %v839 = vsel %vm819, %v808, %v772
        %v840 = vsel %vm819, %v810, %v774
        %v841 = vsel %vm819, %v812, %v776
        %v842 = vsel %vm819, %v814, %v778
        %v843 = vsel %vm819, %v816, %v780
        %v844 = vld [vmem:[%s3] ss:$8 sm:$0xf]
        %v846 = vlaneseq
        %v847 = vshrl.u32 %v846, 7
        %v848 = vsub.s32 0, %v847
        %v849 = vrot.slane %v844, %v848
        %v850 = vlaneseq
        %v851 = vshrl.u32 %v850, 7
        %v852 = vsub.s32 1, %v851
        %v853 = vrot.slane %v844, %v852
        %v854 = vlaneseq
        %v855 = vshrl.u32 %v854, 7
        %v856 = vsub.s32 2, %v855
        %v857 = vrot.slane %v844, %v856
        %v858 = vlaneseq
        %v859 = vshrl.u32 %v858, 7
        %v860 = vsub.s32 3, %v859
        %v861 = vrot.slane %v844, %v860
        %v866 = vmul.f32 %v838, %v849
        %v867 = vmul.f32 %v832, %v853
        %v868 = vmul.f32 %v826, %v857
        %v869 = vmul.f32 %v820, %v861
        %v870 = vmul.f32 %v839, %v849
        %v871 = vmul.f32 %v833, %v853
        %v872 = vmul.f32 %v827, %v857
        %v873 = vmul.f32 %v821, %v861
        %v874 = vmul.f32 %v840, %v849
        %v875 = vmul.f32 %v834, %v853
        %v876 = vmul.f32 %v828, %v857
        %v877 = vmul.f32 %v822, %v861
        %v878 = vmul.f32 %v841, %v849
        %v879 = vmul.f32 %v835, %v853
        %v880 = vmul.f32 %v829, %v857
        %v881 = vmul.f32 %v823, %v861
        %v882 = vmul.f32 %v842, %v849
        %v883 = vmul.f32 %v836, %v853
        %v884 = vmul.f32 %v830, %v857
        %v885 = vmul.f32 %v824, %v861
        %v886 = vmul.f32 %v843, %v849
        %v887 = vmul.f32 %v837, %v853
        %v888 = vmul.f32 %v831, %v857
        %v889 = vmul.f32 %v825, %v861
        %890 = vset.pattern.permute.xlu0 0
        %891 = vperm.xlu0 %890, %v344
        %v892 = vpop.permute.xlu0 %891
        %894 = vset.pattern.permute.xlu0 0
        %895 = vperm.xlu0 %894, %v345
        %v896 = vpop.permute.xlu0 %895
        %898 = vset.pattern.permute.xlu0 0
        %899 = vperm.xlu0 %898, %v346
        %v900 = vpop.permute.xlu0 %899
        %902 = vset.pattern.permute.xlu0 0
        %903 = vperm.xlu0 %902, %v347
        %v904 = vpop.permute.xlu0 %903
        %906 = vset.pattern.permute.xlu0 0
        %907 = vperm.xlu0 %906, %v348
        %v908 = vpop.permute.xlu0 %907
        %910 = vset.pattern.permute.xlu0 0
        %911 = vperm.xlu0 %910, %v349
        %v912 = vpop.permute.xlu0 %911
        %v914 = vmul.f32 %v866, %v892
        %v915 = vmul.f32 %v867, %v892
        %v916 = vmul.f32 %v868, %v892
        %v917 = vmul.f32 %v869, %v892
        %v918 = vmul.f32 %v870, %v896
        %v919 = vmul.f32 %v871, %v896
        %v920 = vmul.f32 %v872, %v896
        %v921 = vmul.f32 %v873, %v896
        %v922 = vmul.f32 %v874, %v900
        %v923 = vmul.f32 %v875, %v900
        %v924 = vmul.f32 %v876, %v900
        %v925 = vmul.f32 %v877, %v900
        %v926 = vmul.f32 %v878, %v904
        %v927 = vmul.f32 %v879, %v904
        %v928 = vmul.f32 %v880, %v904
        %v929 = vmul.f32 %v881, %v904
        %v930 = vmul.f32 %v882, %v908
        %v931 = vmul.f32 %v883, %v908
        %v932 = vmul.f32 %v884, %v908
        %v933 = vmul.f32 %v885, %v908
        %v934 = vmul.f32 %v886, %v912
        %v935 = vmul.f32 %v887, %v912
        %v936 = vmul.f32 %v888, %v912
        %v937 = vmul.f32 %v889, %v912
        %v938 = vadd.f32 %v914, 0.0
        %v939 = vadd.f32 %v915, 0.0
        %v940 = vadd.f32 %v916, 0.0
        %v941 = vadd.f32 %v917, 0.0
        %v942 = vadd.f32 %v918, 0.0
        %v943 = vadd.f32 %v919, 0.0
        %v944 = vadd.f32 %v920, 0.0
        %v945 = vadd.f32 %v921, 0.0
        %v946 = vadd.f32 %v922, 0.0
        %v947 = vadd.f32 %v923, 0.0
        %v948 = vadd.f32 %v924, 0.0
        %v949 = vadd.f32 %v925, 0.0
        %v950 = vadd.f32 %v926, 0.0
        %v951 = vadd.f32 %v927, 0.0
        %v952 = vadd.f32 %v928, 0.0
        %v953 = vadd.f32 %v929, 0.0
        %v954 = vadd.f32 %v930, 0.0
        %v955 = vadd.f32 %v931, 0.0
        %v956 = vadd.f32 %v932, 0.0
        %v957 = vadd.f32 %v933, 0.0
        %v958 = vadd.f32 %v934, 0.0
        %v959 = vadd.f32 %v935, 0.0
        %v960 = vadd.f32 %v936, 0.0
        %v961 = vadd.f32 %v937, 0.0
        %962 = vrot.lane.b32.xlu0 %v745, 16
        %v963 = vpop.permute.xlu0 %962
        %964 = vrot.lane.b32.xlu0 %v749, 16
        %v965 = vpop.permute.xlu0 %964
        %966 = vrot.lane.b32.xlu0 %v753, 16
        %v967 = vpop.permute.xlu0 %966
        %968 = vrot.lane.b32.xlu0 %v757, 16
        %v969 = vpop.permute.xlu0 %968
        %970 = vrot.lane.b32.xlu0 %v761, 16
        %v971 = vpop.permute.xlu0 %970
        %972 = vrot.lane.b32.xlu0 %v765, 16
        %v973 = vpop.permute.xlu0 %972
        %974 = vrot.lane.b32.xlu0 %v746, 16
        %v975 = vpop.permute.xlu0 %974
        %976 = vrot.lane.b32.xlu0 %v750, 16
        %v977 = vpop.permute.xlu0 %976
        %978 = vrot.lane.b32.xlu0 %v754, 16
        %v979 = vpop.permute.xlu0 %978
        %980 = vrot.lane.b32.xlu0 %v758, 16
        %v981 = vpop.permute.xlu0 %980
        %982 = vrot.lane.b32.xlu0 %v762, 16
        %v983 = vpop.permute.xlu0 %982
        %984 = vrot.lane.b32.xlu0 %v766, 16
        %v985 = vpop.permute.xlu0 %984
        %986 = vrot.lane.b32.xlu0 %v747, 16
        %v987 = vpop.permute.xlu0 %986
        %988 = vrot.lane.b32.xlu0 %v751, 16
        %v989 = vpop.permute.xlu0 %988
        %990 = vrot.lane.b32.xlu0 %v755, 16
        %v991 = vpop.permute.xlu0 %990
        %992 = vrot.lane.b32.xlu0 %v759, 16
        %v993 = vpop.permute.xlu0 %992
        %994 = vrot.lane.b32.xlu0 %v763, 16
        %v995 = vpop.permute.xlu0 %994
        %996 = vrot.lane.b32.xlu0 %v767, 16
        %v997 = vpop.permute.xlu0 %996
        %998 = vrot.lane.b32.xlu0 %v748, 16
        %v999 = vpop.permute.xlu0 %998
        %1000 = vrot.lane.b32.xlu0 %v752, 16
        %v1001 = vpop.permute.xlu0 %1000
        %1002 = vrot.lane.b32.xlu0 %v756, 16
        %v1003 = vpop.permute.xlu0 %1002
        %1004 = vrot.lane.b32.xlu0 %v760, 16
        %v1005 = vpop.permute.xlu0 %1004
        %1006 = vrot.lane.b32.xlu0 %v764, 16
        %v1007 = vpop.permute.xlu0 %1006
        %1008 = vrot.lane.b32.xlu0 %v768, 16
        %v1009 = vpop.permute.xlu0 %1008
        %vm1010 = vcmp.lt.s32.totalorder %v818, 16
        %v1011 = vsel %vm1010, %v987, %v999
        %v1012 = vsel %vm1010, %v989, %v1001
        %v1013 = vsel %vm1010, %v991, %v1003
        %v1014 = vsel %vm1010, %v993, %v1005
        %v1015 = vsel %vm1010, %v995, %v1007
        %v1016 = vsel %vm1010, %v997, %v1009
        %v1017 = vsel %vm1010, %v975, %v987
        %v1018 = vsel %vm1010, %v977, %v989
        %v1019 = vsel %vm1010, %v979, %v991
        %v1020 = vsel %vm1010, %v981, %v993
        %v1021 = vsel %vm1010, %v983, %v995
        %v1022 = vsel %vm1010, %v985, %v997
        %v1023 = vsel %vm1010, %v963, %v975
        %v1024 = vsel %vm1010, %v965, %v977
        %v1025 = vsel %vm1010, %v967, %v979
        %v1026 = vsel %vm1010, %v969, %v981
        %v1027 = vsel %vm1010, %v971, %v983
        %v1028 = vsel %vm1010, %v973, %v985
        %v1029 = vsel %vm1010, %v999, %v963
        %v1030 = vsel %vm1010, %v1001, %v965
        %v1031 = vsel %vm1010, %v1003, %v967
        %v1032 = vsel %vm1010, %v1005, %v969
        %v1033 = vsel %vm1010, %v1007, %v971
        %v1034 = vsel %vm1010, %v1009, %v973
        %s1035 = scalar_lea.vmem %s3, 1
        %v1036 = vld [vmem:[%s1035] ss:$8 sm:$0xf]
        %v1038 = vlaneseq
        %v1039 = vshrl.u32 %v1038, 7
        %v1040 = vsub.s32 0, %v1039
        %v1041 = vrot.slane %v1036, %v1040
        %v1042 = vlaneseq
        %v1043 = vshrl.u32 %v1042, 7
        %v1044 = vsub.s32 1, %v1043
        %v1045 = vrot.slane %v1036, %v1044
        %v1046 = vlaneseq
        %v1047 = vshrl.u32 %v1046, 7
        %v1048 = vsub.s32 2, %v1047
        %v1049 = vrot.slane %v1036, %v1048
        %v1050 = vlaneseq
        %v1051 = vshrl.u32 %v1050, 7
        %v1052 = vsub.s32 3, %v1051
        %v1053 = vrot.slane %v1036, %v1052
        %v1058 = vmul.f32 %v1029, %v1041
        %v1059 = vmul.f32 %v1023, %v1045
        %v1060 = vmul.f32 %v1017, %v1049
        %v1061 = vmul.f32 %v1011, %v1053
        %v1062 = vmul.f32 %v1030, %v1041
        %v1063 = vmul.f32 %v1024, %v1045
        %v1064 = vmul.f32 %v1018, %v1049
        %v1065 = vmul.f32 %v1012, %v1053
        %v1066 = vmul.f32 %v1031, %v1041
        %v1067 = vmul.f32 %v1025, %v1045
        %v1068 = vmul.f32 %v1019, %v1049
        %v1069 = vmul.f32 %v1013, %v1053
        %v1070 = vmul.f32 %v1032, %v1041
        %v1071 = vmul.f32 %v1026, %v1045
        %v1072 = vmul.f32 %v1020, %v1049
        %v1073 = vmul.f32 %v1014, %v1053
        %v1074 = vmul.f32 %v1033, %v1041
        %v1075 = vmul.f32 %v1027, %v1045
        %v1076 = vmul.f32 %v1021, %v1049
        %v1077 = vmul.f32 %v1015, %v1053
        %v1078 = vmul.f32 %v1034, %v1041
        %v1079 = vmul.f32 %v1028, %v1045
        %v1080 = vmul.f32 %v1022, %v1049
        %v1081 = vmul.f32 %v1016, %v1053
        %1082 = vset.pattern.permute.xlu0 1
        %1083 = vperm.xlu0 %1082, %v344
        %v1084 = vpop.permute.xlu0 %1083
        %1086 = vset.pattern.permute.xlu0 1
        %1087 = vperm.xlu0 %1086, %v345
        %v1088 = vpop.permute.xlu0 %1087
        %1090 = vset.pattern.permute.xlu0 1
        %1091 = vperm.xlu0 %1090, %v346
        %v1092 = vpop.permute.xlu0 %1091
        %1094 = vset.pattern.permute.xlu0 1
        %1095 = vperm.xlu0 %1094, %v347
        %v1096 = vpop.permute.xlu0 %1095
        %1098 = vset.pattern.permute.xlu0 1
        %1099 = vperm.xlu0 %1098, %v348
        %v1100 = vpop.permute.xlu0 %1099
        %1102 = vset.pattern.permute.xlu0 1
        %1103 = vperm.xlu0 %1102, %v349
        %v1104 = vpop.permute.xlu0 %1103
        %v1106 = vmul.f32 %v1058, %v1084
        %v1107 = vmul.f32 %v1059, %v1084
        %v1108 = vmul.f32 %v1060, %v1084
        %v1109 = vmul.f32 %v1061, %v1084
        %v1110 = vmul.f32 %v1062, %v1088
        %v1111 = vmul.f32 %v1063, %v1088
        %v1112 = vmul.f32 %v1064, %v1088
        %v1113 = vmul.f32 %v1065, %v1088
        %v1114 = vmul.f32 %v1066, %v1092
        %v1115 = vmul.f32 %v1067, %v1092
        %v1116 = vmul.f32 %v1068, %v1092
        %v1117 = vmul.f32 %v1069, %v1092
        %v1118 = vmul.f32 %v1070, %v1096
        %v1119 = vmul.f32 %v1071, %v1096
        %v1120 = vmul.f32 %v1072, %v1096
        %v1121 = vmul.f32 %v1073, %v1096
        %v1122 = vmul.f32 %v1074, %v1100
        %v1123 = vmul.f32 %v1075, %v1100
        %v1124 = vmul.f32 %v1076, %v1100
        %v1125 = vmul.f32 %v1077, %v1100
        %v1126 = vmul.f32 %v1078, %v1104
        %v1127 = vmul.f32 %v1079, %v1104
        %v1128 = vmul.f32 %v1080, %v1104
        %v1129 = vmul.f32 %v1081, %v1104
        %v1130 = vadd.f32 %v938, %v1106
        %v1131 = vadd.f32 %v939, %v1107
        %v1132 = vadd.f32 %v940, %v1108
        %v1133 = vadd.f32 %v941, %v1109
        %v1134 = vadd.f32 %v942, %v1110
        %v1135 = vadd.f32 %v943, %v1111
        %v1136 = vadd.f32 %v944, %v1112
        %v1137 = vadd.f32 %v945, %v1113
        %v1138 = vadd.f32 %v946, %v1114
        %v1139 = vadd.f32 %v947, %v1115
        %v1140 = vadd.f32 %v948, %v1116
        %v1141 = vadd.f32 %v949, %v1117
        %v1142 = vadd.f32 %v950, %v1118
        %v1143 = vadd.f32 %v951, %v1119
        %v1144 = vadd.f32 %v952, %v1120
        %v1145 = vadd.f32 %v953, %v1121
        %v1146 = vadd.f32 %v954, %v1122
        %v1147 = vadd.f32 %v955, %v1123
        %v1148 = vadd.f32 %v956, %v1124
        %v1149 = vadd.f32 %v957, %v1125
        %v1150 = vadd.f32 %v958, %v1126
        %v1151 = vadd.f32 %v959, %v1127
        %v1152 = vadd.f32 %v960, %v1128
        %v1153 = vadd.f32 %v961, %v1129
        %1154 = vrot.lane.b32.xlu0 %v745, 15
        %v1155 = vpop.permute.xlu0 %1154
        %1156 = vrot.lane.b32.xlu0 %v749, 15
        %v1157 = vpop.permute.xlu0 %1156
        %1158 = vrot.lane.b32.xlu0 %v753, 15
        %v1159 = vpop.permute.xlu0 %1158
        %1160 = vrot.lane.b32.xlu0 %v757, 15
        %v1161 = vpop.permute.xlu0 %1160
        %1162 = vrot.lane.b32.xlu0 %v761, 15
        %v1163 = vpop.permute.xlu0 %1162
        %1164 = vrot.lane.b32.xlu0 %v765, 15
        %v1165 = vpop.permute.xlu0 %1164
        %1166 = vrot.lane.b32.xlu0 %v746, 15
        %v1167 = vpop.permute.xlu0 %1166
        %1168 = vrot.lane.b32.xlu0 %v750, 15
        %v1169 = vpop.permute.xlu0 %1168
        %1170 = vrot.lane.b32.xlu0 %v754, 15
        %v1171 = vpop.permute.xlu0 %1170
        %1172 = vrot.lane.b32.xlu0 %v758, 15
        %v1173 = vpop.permute.xlu0 %1172
        %1174 = vrot.lane.b32.xlu0 %v762, 15
        %v1175 = vpop.permute.xlu0 %1174
        %1176 = vrot.lane.b32.xlu0 %v766, 15
        %v1177 = vpop.permute.xlu0 %1176
        %1178 = vrot.lane.b32.xlu0 %v747, 15
        %v1179 = vpop.permute.xlu0 %1178
        %1180 = vrot.lane.b32.xlu0 %v751, 15
        %v1181 = vpop.permute.xlu0 %1180
        %1182 = vrot.lane.b32.xlu0 %v755, 15
        %v1183 = vpop.permute.xlu0 %1182
        %1184 = vrot.lane.b32.xlu0 %v759, 15
        %v1185 = vpop.permute.xlu0 %1184
        %1186 = vrot.lane.b32.xlu0 %v763, 15
        %v1187 = vpop.permute.xlu0 %1186
        %1188 = vrot.lane.b32.xlu0 %v767, 15
        %v1189 = vpop.permute.xlu0 %1188
        %1190 = vrot.lane.b32.xlu0 %v748, 15
        %v1191 = vpop.permute.xlu0 %1190
        %1192 = vrot.lane.b32.xlu0 %v752, 15
        %v1193 = vpop.permute.xlu0 %1192
        %1194 = vrot.lane.b32.xlu0 %v756, 15
        %v1195 = vpop.permute.xlu0 %1194
        %1196 = vrot.lane.b32.xlu0 %v760, 15
        %v1197 = vpop.permute.xlu0 %1196
        %1198 = vrot.lane.b32.xlu0 %v764, 15
        %v1199 = vpop.permute.xlu0 %1198
        %1200 = vrot.lane.b32.xlu0 %v768, 15
        %v1201 = vpop.permute.xlu0 %1200
        %vm1202 = vcmp.lt.s32.totalorder %v818, 15
        %v1203 = vsel %vm1202, %v1179, %v1191
        %v1204 = vsel %vm1202, %v1181, %v1193
        %v1205 = vsel %vm1202, %v1183, %v1195
        %v1206 = vsel %vm1202, %v1185, %v1197
        %v1207 = vsel %vm1202, %v1187, %v1199
        %v1208 = vsel %vm1202, %v1189, %v1201
        %v1209 = vsel %vm1202, %v1167, %v1179
        %v1210 = vsel %vm1202, %v1169, %v1181
        %v1211 = vsel %vm1202, %v1171, %v1183
        %v1212 = vsel %vm1202, %v1173, %v1185
        %v1213 = vsel %vm1202, %v1175, %v1187
        %v1214 = vsel %vm1202, %v1177, %v1189
        %v1215 = vsel %vm1202, %v1155, %v1167
        %v1216 = vsel %vm1202, %v1157, %v1169
        %v1217 = vsel %vm1202, %v1159, %v1171
        %v1218 = vsel %vm1202, %v1161, %v1173
        %v1219 = vsel %vm1202, %v1163, %v1175
        %v1220 = vsel %vm1202, %v1165, %v1177
        %v1221 = vsel %vm1202, %v1191, %v1155
        %v1222 = vsel %vm1202, %v1193, %v1157
        %v1223 = vsel %vm1202, %v1195, %v1159
        %v1224 = vsel %vm1202, %v1197, %v1161
        %v1225 = vsel %vm1202, %v1199, %v1163
        %v1226 = vsel %vm1202, %v1201, %v1165
        %s1227 = scalar_lea.vmem %s3, 2
        %v1228 = vld [vmem:[%s1227] ss:$8 sm:$0xf]
        %v1230 = vlaneseq
        %v1231 = vshrl.u32 %v1230, 7
        %v1232 = vsub.s32 0, %v1231
        %v1233 = vrot.slane %v1228, %v1232
        %v1234 = vlaneseq
        %v1235 = vshrl.u32 %v1234, 7
        %v1236 = vsub.s32 1, %v1235
        %v1237 = vrot.slane %v1228, %v1236
        %v1238 = vlaneseq
        %v1239 = vshrl.u32 %v1238, 7
        %v1240 = vsub.s32 2, %v1239
        %v1241 = vrot.slane %v1228, %v1240
        %v1242 = vlaneseq
        %v1243 = vshrl.u32 %v1242, 7
        %v1244 = vsub.s32 3, %v1243
        %v1245 = vrot.slane %v1228, %v1244
        %v1250 = vmul.f32 %v1221, %v1233
        %v1251 = vmul.f32 %v1215, %v1237
        %v1252 = vmul.f32 %v1209, %v1241
        %v1253 = vmul.f32 %v1203, %v1245
        %v1254 = vmul.f32 %v1222, %v1233
        %v1255 = vmul.f32 %v1216, %v1237
        %v1256 = vmul.f32 %v1210, %v1241
        %v1257 = vmul.f32 %v1204, %v1245
        %v1258 = vmul.f32 %v1223, %v1233
        %v1259 = vmul.f32 %v1217, %v1237
        %v1260 = vmul.f32 %v1211, %v1241
        %v1261 = vmul.f32 %v1205, %v1245
        %v1262 = vmul.f32 %v1224, %v1233
        %v1263 = vmul.f32 %v1218, %v1237
        %v1264 = vmul.f32 %v1212, %v1241
        %v1265 = vmul.f32 %v1206, %v1245
        %v1266 = vmul.f32 %v1225, %v1233
        %v1267 = vmul.f32 %v1219, %v1237
        %v1268 = vmul.f32 %v1213, %v1241
        %v1269 = vmul.f32 %v1207, %v1245
        %v1270 = vmul.f32 %v1226, %v1233
        %v1271 = vmul.f32 %v1220, %v1237
        %v1272 = vmul.f32 %v1214, %v1241
        %v1273 = vmul.f32 %v1208, %v1245
        %1274 = vset.pattern.permute.xlu0 2
        %1275 = vperm.xlu0 %1274, %v344
        %v1276 = vpop.permute.xlu0 %1275
        %1278 = vset.pattern.permute.xlu0 2
        %1279 = vperm.xlu0 %1278, %v345
        %v1280 = vpop.permute.xlu0 %1279
        %1282 = vset.pattern.permute.xlu0 2
        %1283 = vperm.xlu0 %1282, %v346
        %v1284 = vpop.permute.xlu0 %1283
        %1286 = vset.pattern.permute.xlu0 2
        %1287 = vperm.xlu0 %1286, %v347
        %v1288 = vpop.permute.xlu0 %1287
        %1290 = vset.pattern.permute.xlu0 2
        %1291 = vperm.xlu0 %1290, %v348
        %v1292 = vpop.permute.xlu0 %1291
        %1294 = vset.pattern.permute.xlu0 2
        %1295 = vperm.xlu0 %1294, %v349
        %v1296 = vpop.permute.xlu0 %1295
        %v1298 = vmul.f32 %v1250, %v1276
        %v1299 = vmul.f32 %v1251, %v1276
        %v1300 = vmul.f32 %v1252, %v1276
        %v1301 = vmul.f32 %v1253, %v1276
        %v1302 = vmul.f32 %v1254, %v1280
        %v1303 = vmul.f32 %v1255, %v1280
        %v1304 = vmul.f32 %v1256, %v1280
        %v1305 = vmul.f32 %v1257, %v1280
        %v1306 = vmul.f32 %v1258, %v1284
        %v1307 = vmul.f32 %v1259, %v1284
        %v1308 = vmul.f32 %v1260, %v1284
        %v1309 = vmul.f32 %v1261, %v1284
        %v1310 = vmul.f32 %v1262, %v1288
        %v1311 = vmul.f32 %v1263, %v1288
        %v1312 = vmul.f32 %v1264, %v1288
        %v1313 = vmul.f32 %v1265, %v1288
        %v1314 = vmul.f32 %v1266, %v1292
        %v1315 = vmul.f32 %v1267, %v1292
        %v1316 = vmul.f32 %v1268, %v1292
        %v1317 = vmul.f32 %v1269, %v1292
        %v1318 = vmul.f32 %v1270, %v1296
        %v1319 = vmul.f32 %v1271, %v1296
        %v1320 = vmul.f32 %v1272, %v1296
        %v1321 = vmul.f32 %v1273, %v1296
        %v1322 = vadd.f32 %v1130, %v1298
        %v1323 = vadd.f32 %v1131, %v1299
        %v1324 = vadd.f32 %v1132, %v1300
        %v1325 = vadd.f32 %v1133, %v1301
        %v1326 = vadd.f32 %v1134, %v1302
        %v1327 = vadd.f32 %v1135, %v1303
        %v1328 = vadd.f32 %v1136, %v1304
        %v1329 = vadd.f32 %v1137, %v1305
        %v1330 = vadd.f32 %v1138, %v1306
        %v1331 = vadd.f32 %v1139, %v1307
        %v1332 = vadd.f32 %v1140, %v1308
        %v1333 = vadd.f32 %v1141, %v1309
        %v1334 = vadd.f32 %v1142, %v1310
        %v1335 = vadd.f32 %v1143, %v1311
        %v1336 = vadd.f32 %v1144, %v1312
        %v1337 = vadd.f32 %v1145, %v1313
        %v1338 = vadd.f32 %v1146, %v1314
        %v1339 = vadd.f32 %v1147, %v1315
        %v1340 = vadd.f32 %v1148, %v1316
        %v1341 = vadd.f32 %v1149, %v1317
        %v1342 = vadd.f32 %v1150, %v1318
        %v1343 = vadd.f32 %v1151, %v1319
        %v1344 = vadd.f32 %v1152, %v1320
        %v1345 = vadd.f32 %v1153, %v1321
        %1346 = vrot.lane.b32.xlu0 %v745, 1
        %v1347 = vpop.permute.xlu0 %1346
        %1348 = vrot.lane.b32.xlu0 %v749, 1
        %v1349 = vpop.permute.xlu0 %1348
        %1350 = vrot.lane.b32.xlu0 %v753, 1
        %v1351 = vpop.permute.xlu0 %1350
        %1352 = vrot.lane.b32.xlu0 %v757, 1
        %v1353 = vpop.permute.xlu0 %1352
        %1354 = vrot.lane.b32.xlu0 %v761, 1
        %v1355 = vpop.permute.xlu0 %1354
        %1356 = vrot.lane.b32.xlu0 %v765, 1
        %v1357 = vpop.permute.xlu0 %1356
        %1358 = vrot.lane.b32.xlu0 %v746, 1
        %v1359 = vpop.permute.xlu0 %1358
        %1360 = vrot.lane.b32.xlu0 %v750, 1
        %v1361 = vpop.permute.xlu0 %1360
        %1362 = vrot.lane.b32.xlu0 %v754, 1
        %v1363 = vpop.permute.xlu0 %1362
        %1364 = vrot.lane.b32.xlu0 %v758, 1
        %v1365 = vpop.permute.xlu0 %1364
        %1366 = vrot.lane.b32.xlu0 %v762, 1
        %v1367 = vpop.permute.xlu0 %1366
        %1368 = vrot.lane.b32.xlu0 %v766, 1
        %v1369 = vpop.permute.xlu0 %1368
        %1370 = vrot.lane.b32.xlu0 %v747, 1
        %v1371 = vpop.permute.xlu0 %1370
        %1372 = vrot.lane.b32.xlu0 %v751, 1
        %v1373 = vpop.permute.xlu0 %1372
        %1374 = vrot.lane.b32.xlu0 %v755, 1
        %v1375 = vpop.permute.xlu0 %1374
        %1376 = vrot.lane.b32.xlu0 %v759, 1
        %v1377 = vpop.permute.xlu0 %1376
        %1378 = vrot.lane.b32.xlu0 %v763, 1
        %v1379 = vpop.permute.xlu0 %1378
        %1380 = vrot.lane.b32.xlu0 %v767, 1
        %v1381 = vpop.permute.xlu0 %1380
        %1382 = vrot.lane.b32.xlu0 %v748, 1
        %v1383 = vpop.permute.xlu0 %1382
        %1384 = vrot.lane.b32.xlu0 %v752, 1
        %v1385 = vpop.permute.xlu0 %1384
        %1386 = vrot.lane.b32.xlu0 %v756, 1
        %v1387 = vpop.permute.xlu0 %1386
        %1388 = vrot.lane.b32.xlu0 %v760, 1
        %v1389 = vpop.permute.xlu0 %1388
        %1390 = vrot.lane.b32.xlu0 %v764, 1
        %v1391 = vpop.permute.xlu0 %1390
        %1392 = vrot.lane.b32.xlu0 %v768, 1
        %v1393 = vpop.permute.xlu0 %1392
        %vm1394 = vcmp.lt.s32.totalorder %v818, 1
        %v1395 = vsel %vm1394, %v1371, %v1383
        %v1396 = vsel %vm1394, %v1373, %v1385
        %v1397 = vsel %vm1394, %v1375, %v1387
        %v1398 = vsel %vm1394, %v1377, %v1389
        %v1399 = vsel %vm1394, %v1379, %v1391
        %v1400 = vsel %vm1394, %v1381, %v1393
        %v1401 = vsel %vm1394, %v1359, %v1371
        %v1402 = vsel %vm1394, %v1361, %v1373
        %v1403 = vsel %vm1394, %v1363, %v1375
        %v1404 = vsel %vm1394, %v1365, %v1377
        %v1405 = vsel %vm1394, %v1367, %v1379
        %v1406 = vsel %vm1394, %v1369, %v1381
        %v1407 = vsel %vm1394, %v1347, %v1359
        %v1408 = vsel %vm1394, %v1349, %v1361
        %v1409 = vsel %vm1394, %v1351, %v1363
        %v1410 = vsel %vm1394, %v1353, %v1365
        %v1411 = vsel %vm1394, %v1355, %v1367
        %v1412 = vsel %vm1394, %v1357, %v1369
        %v1413 = vsel %vm1394, %v1383, %v1347
        %v1414 = vsel %vm1394, %v1385, %v1349
        %v1415 = vsel %vm1394, %v1387, %v1351
        %v1416 = vsel %vm1394, %v1389, %v1353
        %v1417 = vsel %vm1394, %v1391, %v1355
        %v1418 = vsel %vm1394, %v1393, %v1357
        %s1419 = scalar_lea.vmem %s3, 3
        %v1420 = vld [vmem:[%s1419] ss:$8 sm:$0xf]
        %v1422 = vlaneseq
        %v1423 = vshrl.u32 %v1422, 7
        %v1424 = vsub.s32 0, %v1423
        %v1425 = vrot.slane %v1420, %v1424
        %v1426 = vlaneseq
        %v1427 = vshrl.u32 %v1426, 7
        %v1428 = vsub.s32 1, %v1427
        %v1429 = vrot.slane %v1420, %v1428
        %v1430 = vlaneseq
        %v1431 = vshrl.u32 %v1430, 7
        %v1432 = vsub.s32 2, %v1431
        %v1433 = vrot.slane %v1420, %v1432
        %v1434 = vlaneseq
        %v1435 = vshrl.u32 %v1434, 7
        %v1436 = vsub.s32 3, %v1435
        %v1437 = vrot.slane %v1420, %v1436
        %v1442 = vmul.f32 %v1413, %v1425
        %v1443 = vmul.f32 %v1407, %v1429
        %v1444 = vmul.f32 %v1401, %v1433
        %v1445 = vmul.f32 %v1395, %v1437
        %v1446 = vmul.f32 %v1414, %v1425
        %v1447 = vmul.f32 %v1408, %v1429
        %v1448 = vmul.f32 %v1402, %v1433
        %v1449 = vmul.f32 %v1396, %v1437
        %v1450 = vmul.f32 %v1415, %v1425
        %v1451 = vmul.f32 %v1409, %v1429
        %v1452 = vmul.f32 %v1403, %v1433
        %v1453 = vmul.f32 %v1397, %v1437
        %v1454 = vmul.f32 %v1416, %v1425
        %v1455 = vmul.f32 %v1410, %v1429
        %v1456 = vmul.f32 %v1404, %v1433
        %v1457 = vmul.f32 %v1398, %v1437
        %v1458 = vmul.f32 %v1417, %v1425
        %v1459 = vmul.f32 %v1411, %v1429
        %v1460 = vmul.f32 %v1405, %v1433
        %v1461 = vmul.f32 %v1399, %v1437
        %v1462 = vmul.f32 %v1418, %v1425
        %v1463 = vmul.f32 %v1412, %v1429
        %v1464 = vmul.f32 %v1406, %v1433
        %v1465 = vmul.f32 %v1400, %v1437
        %1466 = vset.pattern.permute.xlu0 3
        %1467 = vperm.xlu0 %1466, %v344
        %v1468 = vpop.permute.xlu0 %1467
        %1470 = vset.pattern.permute.xlu0 3
        %1471 = vperm.xlu0 %1470, %v345
        %v1472 = vpop.permute.xlu0 %1471
        %1474 = vset.pattern.permute.xlu0 3
        %1475 = vperm.xlu0 %1474, %v346
        %v1476 = vpop.permute.xlu0 %1475
        %1478 = vset.pattern.permute.xlu0 3
        %1479 = vperm.xlu0 %1478, %v347
        %v1480 = vpop.permute.xlu0 %1479
        %1482 = vset.pattern.permute.xlu0 3
        %1483 = vperm.xlu0 %1482, %v348
        %v1484 = vpop.permute.xlu0 %1483
        %1486 = vset.pattern.permute.xlu0 3
        %1487 = vperm.xlu0 %1486, %v349
        %v1488 = vpop.permute.xlu0 %1487
        %v1490 = vmul.f32 %v1442, %v1468
        %v1491 = vmul.f32 %v1443, %v1468
        %v1492 = vmul.f32 %v1444, %v1468
        %v1493 = vmul.f32 %v1445, %v1468
        %v1494 = vmul.f32 %v1446, %v1472
        %v1495 = vmul.f32 %v1447, %v1472
        %v1496 = vmul.f32 %v1448, %v1472
        %v1497 = vmul.f32 %v1449, %v1472
        %v1498 = vmul.f32 %v1450, %v1476
        %v1499 = vmul.f32 %v1451, %v1476
        %v1500 = vmul.f32 %v1452, %v1476
        %v1501 = vmul.f32 %v1453, %v1476
        %v1502 = vmul.f32 %v1454, %v1480
        %v1503 = vmul.f32 %v1455, %v1480
        %v1504 = vmul.f32 %v1456, %v1480
        %v1505 = vmul.f32 %v1457, %v1480
        %v1506 = vmul.f32 %v1458, %v1484
        %v1507 = vmul.f32 %v1459, %v1484
        %v1508 = vmul.f32 %v1460, %v1484
        %v1509 = vmul.f32 %v1461, %v1484
        %v1510 = vmul.f32 %v1462, %v1488
        %v1511 = vmul.f32 %v1463, %v1488
        %v1512 = vmul.f32 %v1464, %v1488
        %v1513 = vmul.f32 %v1465, %v1488
        %v1514 = vadd.f32 %v1322, %v1490
        %v1515 = vadd.f32 %v1323, %v1491
        %v1516 = vadd.f32 %v1324, %v1492
        %v1517 = vadd.f32 %v1325, %v1493
        %v1518 = vadd.f32 %v1326, %v1494
        %v1519 = vadd.f32 %v1327, %v1495
        %v1520 = vadd.f32 %v1328, %v1496
        %v1521 = vadd.f32 %v1329, %v1497
        %v1522 = vadd.f32 %v1330, %v1498
        %v1523 = vadd.f32 %v1331, %v1499
        %v1524 = vadd.f32 %v1332, %v1500
        %v1525 = vadd.f32 %v1333, %v1501
        %v1526 = vadd.f32 %v1334, %v1502
        %v1527 = vadd.f32 %v1335, %v1503
        %v1528 = vadd.f32 %v1336, %v1504
        %v1529 = vadd.f32 %v1337, %v1505
        %v1530 = vadd.f32 %v1338, %v1506
        %v1531 = vadd.f32 %v1339, %v1507
        %v1532 = vadd.f32 %v1340, %v1508
        %v1533 = vadd.f32 %v1341, %v1509
        %v1534 = vadd.f32 %v1342, %v1510
        %v1535 = vadd.f32 %v1343, %v1511
        %v1536 = vadd.f32 %v1344, %v1512
        %v1537 = vadd.f32 %v1345, %v1513
        %s1538 = scalar_lea.vmem %s3, 4
        %v1539 = vld [vmem:[%s1538] ss:$8 sm:$0xf]
        %v1541 = vlaneseq
        %v1542 = vshrl.u32 %v1541, 7
        %v1543 = vsub.s32 0, %v1542
        %v1544 = vrot.slane %v1539, %v1543
        %v1545 = vlaneseq
        %v1546 = vshrl.u32 %v1545, 7
        %v1547 = vsub.s32 1, %v1546
        %v1548 = vrot.slane %v1539, %v1547
        %v1549 = vlaneseq
        %v1550 = vshrl.u32 %v1549, 7
        %v1551 = vsub.s32 2, %v1550
        %v1552 = vrot.slane %v1539, %v1551
        %v1553 = vlaneseq
        %v1554 = vshrl.u32 %v1553, 7
        %v1555 = vsub.s32 3, %v1554
        %v1556 = vrot.slane %v1539, %v1555
        %v1561 = vmul.f32 %v745, %v1544
        %v1562 = vmul.f32 %v746, %v1548
        %v1563 = vmul.f32 %v747, %v1552
        %v1564 = vmul.f32 %v748, %v1556
        %v1565 = vmul.f32 %v749, %v1544
        %v1566 = vmul.f32 %v750, %v1548
        %v1567 = vmul.f32 %v751, %v1552
        %v1568 = vmul.f32 %v752, %v1556
        %v1569 = vmul.f32 %v753, %v1544
        %v1570 = vmul.f32 %v754, %v1548
        %v1571 = vmul.f32 %v755, %v1552
        %v1572 = vmul.f32 %v756, %v1556
        %v1573 = vmul.f32 %v757, %v1544
        %v1574 = vmul.f32 %v758, %v1548
        %v1575 = vmul.f32 %v759, %v1552
        %v1576 = vmul.f32 %v760, %v1556
        %v1577 = vmul.f32 %v761, %v1544
        %v1578 = vmul.f32 %v762, %v1548
        %v1579 = vmul.f32 %v763, %v1552
        %v1580 = vmul.f32 %v764, %v1556
        %v1581 = vmul.f32 %v765, %v1544
        %v1582 = vmul.f32 %v766, %v1548
        %v1583 = vmul.f32 %v767, %v1552
        %v1584 = vmul.f32 %v768, %v1556
        %1585 = vset.pattern.permute.xlu0 4
        %1586 = vperm.xlu0 %1585, %v344
        %v1587 = vpop.permute.xlu0 %1586
        %1589 = vset.pattern.permute.xlu0 4
        %1590 = vperm.xlu0 %1589, %v345
        %v1591 = vpop.permute.xlu0 %1590
        %1593 = vset.pattern.permute.xlu0 4
        %1594 = vperm.xlu0 %1593, %v346
        %v1595 = vpop.permute.xlu0 %1594
        %1597 = vset.pattern.permute.xlu0 4
        %1598 = vperm.xlu0 %1597, %v347
        %v1599 = vpop.permute.xlu0 %1598
        %1601 = vset.pattern.permute.xlu0 4
        %1602 = vperm.xlu0 %1601, %v348
        %v1603 = vpop.permute.xlu0 %1602
        %1605 = vset.pattern.permute.xlu0 4
        %1606 = vperm.xlu0 %1605, %v349
        %v1607 = vpop.permute.xlu0 %1606
        %v1609 = vmul.f32 %v1561, %v1587
        %v1610 = vmul.f32 %v1562, %v1587
        %v1611 = vmul.f32 %v1563, %v1587
        %v1612 = vmul.f32 %v1564, %v1587
        %v1613 = vmul.f32 %v1565, %v1591
        %v1614 = vmul.f32 %v1566, %v1591
        %v1615 = vmul.f32 %v1567, %v1591
        %v1616 = vmul.f32 %v1568, %v1591
        %v1617 = vmul.f32 %v1569, %v1595
        %v1618 = vmul.f32 %v1570, %v1595
        %v1619 = vmul.f32 %v1571, %v1595
        %v1620 = vmul.f32 %v1572, %v1595
        %v1621 = vmul.f32 %v1573, %v1599
        %v1622 = vmul.f32 %v1574, %v1599
        %v1623 = vmul.f32 %v1575, %v1599
        %v1624 = vmul.f32 %v1576, %v1599
        %v1625 = vmul.f32 %v1577, %v1603
        %v1626 = vmul.f32 %v1578, %v1603
        %v1627 = vmul.f32 %v1579, %v1603
        %v1628 = vmul.f32 %v1580, %v1603
        %v1629 = vmul.f32 %v1581, %v1607
        %v1630 = vmul.f32 %v1582, %v1607
        %v1631 = vmul.f32 %v1583, %v1607
        %v1632 = vmul.f32 %v1584, %v1607
        %v1633 = vadd.f32 %v1514, %v1609
        %v1634 = vadd.f32 %v1515, %v1610
        %v1635 = vadd.f32 %v1516, %v1611
        %v1636 = vadd.f32 %v1517, %v1612
        %v1637 = vadd.f32 %v1518, %v1613
        %v1638 = vadd.f32 %v1519, %v1614
        %v1639 = vadd.f32 %v1520, %v1615
        %v1640 = vadd.f32 %v1521, %v1616
        %v1641 = vadd.f32 %v1522, %v1617
        %v1642 = vadd.f32 %v1523, %v1618
        %v1643 = vadd.f32 %v1524, %v1619
        %v1644 = vadd.f32 %v1525, %v1620
        %v1645 = vadd.f32 %v1526, %v1621
        %v1646 = vadd.f32 %v1527, %v1622
        %v1647 = vadd.f32 %v1528, %v1623
        %v1648 = vadd.f32 %v1529, %v1624
        %v1649 = vadd.f32 %v1530, %v1625
        %v1650 = vadd.f32 %v1531, %v1626
        %v1651 = vadd.f32 %v1532, %v1627
        %v1652 = vadd.f32 %v1533, %v1628
        %v1653 = vadd.f32 %v1534, %v1629
        %v1654 = vadd.f32 %v1535, %v1630
        %v1655 = vadd.f32 %v1536, %v1631
        %v1656 = vadd.f32 %v1537, %v1632
        %1657 = vrot.lane.b32.xlu0 %v745, 127
        %v1658 = vpop.permute.xlu0 %1657
        %1659 = vrot.lane.b32.xlu0 %v749, 127
        %v1660 = vpop.permute.xlu0 %1659
        %1661 = vrot.lane.b32.xlu0 %v753, 127
        %v1662 = vpop.permute.xlu0 %1661
        %1663 = vrot.lane.b32.xlu0 %v757, 127
        %v1664 = vpop.permute.xlu0 %1663
        %1665 = vrot.lane.b32.xlu0 %v761, 127
        %v1666 = vpop.permute.xlu0 %1665
        %1667 = vrot.lane.b32.xlu0 %v765, 127
        %v1668 = vpop.permute.xlu0 %1667
        %1669 = vrot.lane.b32.xlu0 %v746, 127
        %v1670 = vpop.permute.xlu0 %1669
        %1671 = vrot.lane.b32.xlu0 %v750, 127
        %v1672 = vpop.permute.xlu0 %1671
        %1673 = vrot.lane.b32.xlu0 %v754, 127
        %v1674 = vpop.permute.xlu0 %1673
        %1675 = vrot.lane.b32.xlu0 %v758, 127
        %v1676 = vpop.permute.xlu0 %1675
        %1677 = vrot.lane.b32.xlu0 %v762, 127
        %v1678 = vpop.permute.xlu0 %1677
        %1679 = vrot.lane.b32.xlu0 %v766, 127
        %v1680 = vpop.permute.xlu0 %1679
        %1681 = vrot.lane.b32.xlu0 %v747, 127
        %v1682 = vpop.permute.xlu0 %1681
        %1683 = vrot.lane.b32.xlu0 %v751, 127
        %v1684 = vpop.permute.xlu0 %1683
        %1685 = vrot.lane.b32.xlu0 %v755, 127
        %v1686 = vpop.permute.xlu0 %1685
        %1687 = vrot.lane.b32.xlu0 %v759, 127
        %v1688 = vpop.permute.xlu0 %1687
        %1689 = vrot.lane.b32.xlu0 %v763, 127
        %v1690 = vpop.permute.xlu0 %1689
        %1691 = vrot.lane.b32.xlu0 %v767, 127
        %v1692 = vpop.permute.xlu0 %1691
        %1693 = vrot.lane.b32.xlu0 %v748, 127
        %v1694 = vpop.permute.xlu0 %1693
        %1695 = vrot.lane.b32.xlu0 %v752, 127
        %v1696 = vpop.permute.xlu0 %1695
        %1697 = vrot.lane.b32.xlu0 %v756, 127
        %v1698 = vpop.permute.xlu0 %1697
        %1699 = vrot.lane.b32.xlu0 %v760, 127
        %v1700 = vpop.permute.xlu0 %1699
        %1701 = vrot.lane.b32.xlu0 %v764, 127
        %v1702 = vpop.permute.xlu0 %1701
        %1703 = vrot.lane.b32.xlu0 %v768, 127
        %v1704 = vpop.permute.xlu0 %1703
        %vm1705 = vcmp.lt.s32.totalorder %v818, 127
        %v1706 = vsel %vm1705, %v1682, %v1694
        %v1707 = vsel %vm1705, %v1684, %v1696
        %v1708 = vsel %vm1705, %v1686, %v1698
        %v1709 = vsel %vm1705, %v1688, %v1700
        %v1710 = vsel %vm1705, %v1690, %v1702
        %v1711 = vsel %vm1705, %v1692, %v1704
        %v1712 = vsel %vm1705, %v1670, %v1682
        %v1713 = vsel %vm1705, %v1672, %v1684
        %v1714 = vsel %vm1705, %v1674, %v1686
        %v1715 = vsel %vm1705, %v1676, %v1688
        %v1716 = vsel %vm1705, %v1678, %v1690
        %v1717 = vsel %vm1705, %v1680, %v1692
        %v1718 = vsel %vm1705, %v1658, %v1670
        %v1719 = vsel %vm1705, %v1660, %v1672
        %v1720 = vsel %vm1705, %v1662, %v1674
        %v1721 = vsel %vm1705, %v1664, %v1676
        %v1722 = vsel %vm1705, %v1666, %v1678
        %v1723 = vsel %vm1705, %v1668, %v1680
        %v1724 = vsel %vm1705, %v1694, %v1658
        %v1725 = vsel %vm1705, %v1696, %v1660
        %v1726 = vsel %vm1705, %v1698, %v1662
        %v1727 = vsel %vm1705, %v1700, %v1664
        %v1728 = vsel %vm1705, %v1702, %v1666
        %v1729 = vsel %vm1705, %v1704, %v1668
        %s1730 = scalar_lea.vmem %s3, 5
        %v1731 = vld [vmem:[%s1730] ss:$8 sm:$0xf]
        %v1733 = vlaneseq
        %v1734 = vshrl.u32 %v1733, 7
        %v1735 = vsub.s32 0, %v1734
        %v1736 = vrot.slane %v1731, %v1735
        %v1737 = vlaneseq
        %v1738 = vshrl.u32 %v1737, 7
        %v1739 = vsub.s32 1, %v1738
        %v1740 = vrot.slane %v1731, %v1739
        %v1741 = vlaneseq
        %v1742 = vshrl.u32 %v1741, 7
        %v1743 = vsub.s32 2, %v1742
        %v1744 = vrot.slane %v1731, %v1743
        %v1745 = vlaneseq
        %v1746 = vshrl.u32 %v1745, 7
        %v1747 = vsub.s32 3, %v1746
        %v1748 = vrot.slane %v1731, %v1747
        %v1753 = vmul.f32 %v1718, %v1736
        %v1754 = vmul.f32 %v1712, %v1740
        %v1755 = vmul.f32 %v1706, %v1744
        %v1756 = vmul.f32 %v1724, %v1748
        %v1757 = vmul.f32 %v1719, %v1736
        %v1758 = vmul.f32 %v1713, %v1740
        %v1759 = vmul.f32 %v1707, %v1744
        %v1760 = vmul.f32 %v1725, %v1748
        %v1761 = vmul.f32 %v1720, %v1736
        %v1762 = vmul.f32 %v1714, %v1740
        %v1763 = vmul.f32 %v1708, %v1744
        %v1764 = vmul.f32 %v1726, %v1748
        %v1765 = vmul.f32 %v1721, %v1736
        %v1766 = vmul.f32 %v1715, %v1740
        %v1767 = vmul.f32 %v1709, %v1744
        %v1768 = vmul.f32 %v1727, %v1748
        %v1769 = vmul.f32 %v1722, %v1736
        %v1770 = vmul.f32 %v1716, %v1740
        %v1771 = vmul.f32 %v1710, %v1744
        %v1772 = vmul.f32 %v1728, %v1748
        %v1773 = vmul.f32 %v1723, %v1736
        %v1774 = vmul.f32 %v1717, %v1740
        %v1775 = vmul.f32 %v1711, %v1744
        %v1776 = vmul.f32 %v1729, %v1748
        %1777 = vset.pattern.permute.xlu0 5
        %1778 = vperm.xlu0 %1777, %v344
        %v1779 = vpop.permute.xlu0 %1778
        %1781 = vset.pattern.permute.xlu0 5
        %1782 = vperm.xlu0 %1781, %v345
        %v1783 = vpop.permute.xlu0 %1782
        %1785 = vset.pattern.permute.xlu0 5
        %1786 = vperm.xlu0 %1785, %v346
        %v1787 = vpop.permute.xlu0 %1786
        %1789 = vset.pattern.permute.xlu0 5
        %1790 = vperm.xlu0 %1789, %v347
        %v1791 = vpop.permute.xlu0 %1790
        %1793 = vset.pattern.permute.xlu0 5
        %1794 = vperm.xlu0 %1793, %v348
        %v1795 = vpop.permute.xlu0 %1794
        %1797 = vset.pattern.permute.xlu0 5
        %1798 = vperm.xlu0 %1797, %v349
        %v1799 = vpop.permute.xlu0 %1798
        %v1801 = vmul.f32 %v1753, %v1779
        %v1802 = vmul.f32 %v1754, %v1779
        %v1803 = vmul.f32 %v1755, %v1779
        %v1804 = vmul.f32 %v1756, %v1779
        %v1805 = vmul.f32 %v1757, %v1783
        %v1806 = vmul.f32 %v1758, %v1783
        %v1807 = vmul.f32 %v1759, %v1783
        %v1808 = vmul.f32 %v1760, %v1783
        %v1809 = vmul.f32 %v1761, %v1787
        %v1810 = vmul.f32 %v1762, %v1787
        %v1811 = vmul.f32 %v1763, %v1787
        %v1812 = vmul.f32 %v1764, %v1787
        %v1813 = vmul.f32 %v1765, %v1791
        %v1814 = vmul.f32 %v1766, %v1791
        %v1815 = vmul.f32 %v1767, %v1791
        %v1816 = vmul.f32 %v1768, %v1791
        %v1817 = vmul.f32 %v1769, %v1795
        %v1818 = vmul.f32 %v1770, %v1795
        %v1819 = vmul.f32 %v1771, %v1795
        %v1820 = vmul.f32 %v1772, %v1795
        %v1821 = vmul.f32 %v1773, %v1799
        %v1822 = vmul.f32 %v1774, %v1799
        %v1823 = vmul.f32 %v1775, %v1799
        %v1824 = vmul.f32 %v1776, %v1799
        %v1825 = vadd.f32 %v1633, %v1801
        %v1826 = vadd.f32 %v1634, %v1802
        %v1827 = vadd.f32 %v1635, %v1803
        %v1828 = vadd.f32 %v1636, %v1804
        %v1829 = vadd.f32 %v1637, %v1805
        %v1830 = vadd.f32 %v1638, %v1806
        %v1831 = vadd.f32 %v1639, %v1807
        %v1832 = vadd.f32 %v1640, %v1808
        %v1833 = vadd.f32 %v1641, %v1809
        %v1834 = vadd.f32 %v1642, %v1810
        %v1835 = vadd.f32 %v1643, %v1811
        %v1836 = vadd.f32 %v1644, %v1812
        %v1837 = vadd.f32 %v1645, %v1813
        %v1838 = vadd.f32 %v1646, %v1814
        %v1839 = vadd.f32 %v1647, %v1815
        %v1840 = vadd.f32 %v1648, %v1816
        %v1841 = vadd.f32 %v1649, %v1817
        %v1842 = vadd.f32 %v1650, %v1818
        %v1843 = vadd.f32 %v1651, %v1819
        %v1844 = vadd.f32 %v1652, %v1820
        %v1845 = vadd.f32 %v1653, %v1821
        %v1846 = vadd.f32 %v1654, %v1822
        %v1847 = vadd.f32 %v1655, %v1823
        %v1848 = vadd.f32 %v1656, %v1824
        %1849 = vrot.lane.b32.xlu0 %v745, 113
        %v1850 = vpop.permute.xlu0 %1849
        %1851 = vrot.lane.b32.xlu0 %v749, 113
        %v1852 = vpop.permute.xlu0 %1851
        %1853 = vrot.lane.b32.xlu0 %v753, 113
        %v1854 = vpop.permute.xlu0 %1853
        %1855 = vrot.lane.b32.xlu0 %v757, 113
        %v1856 = vpop.permute.xlu0 %1855
        %1857 = vrot.lane.b32.xlu0 %v761, 113
        %v1858 = vpop.permute.xlu0 %1857
        %1859 = vrot.lane.b32.xlu0 %v765, 113
        %v1860 = vpop.permute.xlu0 %1859
        %1861 = vrot.lane.b32.xlu0 %v746, 113
        %v1862 = vpop.permute.xlu0 %1861
        %1863 = vrot.lane.b32.xlu0 %v750, 113
        %v1864 = vpop.permute.xlu0 %1863
        %1865 = vrot.lane.b32.xlu0 %v754, 113
        %v1866 = vpop.permute.xlu0 %1865
        %1867 = vrot.lane.b32.xlu0 %v758, 113
        %v1868 = vpop.permute.xlu0 %1867
        %1869 = vrot.lane.b32.xlu0 %v762, 113
        %v1870 = vpop.permute.xlu0 %1869
        %1871 = vrot.lane.b32.xlu0 %v766, 113
        %v1872 = vpop.permute.xlu0 %1871
        %1873 = vrot.lane.b32.xlu0 %v747, 113
        %v1874 = vpop.permute.xlu0 %1873
        %1875 = vrot.lane.b32.xlu0 %v751, 113
        %v1876 = vpop.permute.xlu0 %1875
        %1877 = vrot.lane.b32.xlu0 %v755, 113
        %v1878 = vpop.permute.xlu0 %1877
        %1879 = vrot.lane.b32.xlu0 %v759, 113
        %v1880 = vpop.permute.xlu0 %1879
        %1881 = vrot.lane.b32.xlu0 %v763, 113
        %v1882 = vpop.permute.xlu0 %1881
        %1883 = vrot.lane.b32.xlu0 %v767, 113
        %v1884 = vpop.permute.xlu0 %1883
        %1885 = vrot.lane.b32.xlu0 %v748, 113
        %v1886 = vpop.permute.xlu0 %1885
        %1887 = vrot.lane.b32.xlu0 %v752, 113
        %v1888 = vpop.permute.xlu0 %1887
        %1889 = vrot.lane.b32.xlu0 %v756, 113
        %v1890 = vpop.permute.xlu0 %1889
        %1891 = vrot.lane.b32.xlu0 %v760, 113
        %v1892 = vpop.permute.xlu0 %1891
        %1893 = vrot.lane.b32.xlu0 %v764, 113
        %v1894 = vpop.permute.xlu0 %1893
        %1895 = vrot.lane.b32.xlu0 %v768, 113
        %v1896 = vpop.permute.xlu0 %1895
        %vm1897 = vcmp.lt.s32.totalorder %v818, 113
        %v1898 = vsel %vm1897, %v1874, %v1886
        %v1899 = vsel %vm1897, %v1876, %v1888
        %v1900 = vsel %vm1897, %v1878, %v1890
        %v1901 = vsel %vm1897, %v1880, %v1892
        %v1902 = vsel %vm1897, %v1882, %v1894
        %v1903 = vsel %vm1897, %v1884, %v1896
        %v1904 = vsel %vm1897, %v1862, %v1874
        %v1905 = vsel %vm1897, %v1864, %v1876
        %v1906 = vsel %vm1897, %v1866, %v1878
        %v1907 = vsel %vm1897, %v1868, %v1880
        %v1908 = vsel %vm1897, %v1870, %v1882
        %v1909 = vsel %vm1897, %v1872, %v1884
        %v1910 = vsel %vm1897, %v1850, %v1862
        %v1911 = vsel %vm1897, %v1852, %v1864
        %v1912 = vsel %vm1897, %v1854, %v1866
        %v1913 = vsel %vm1897, %v1856, %v1868
        %v1914 = vsel %vm1897, %v1858, %v1870
        %v1915 = vsel %vm1897, %v1860, %v1872
        %v1916 = vsel %vm1897, %v1886, %v1850
        %v1917 = vsel %vm1897, %v1888, %v1852
        %v1918 = vsel %vm1897, %v1890, %v1854
        %v1919 = vsel %vm1897, %v1892, %v1856
        %v1920 = vsel %vm1897, %v1894, %v1858
        %v1921 = vsel %vm1897, %v1896, %v1860
        %s1922 = scalar_lea.vmem %s3, 6
        %v1923 = vld [vmem:[%s1922] ss:$8 sm:$0xf]
        %v1925 = vlaneseq
        %v1926 = vshrl.u32 %v1925, 7
        %v1927 = vsub.s32 0, %v1926
        %v1928 = vrot.slane %v1923, %v1927
        %v1929 = vlaneseq
        %v1930 = vshrl.u32 %v1929, 7
        %v1931 = vsub.s32 1, %v1930
        %v1932 = vrot.slane %v1923, %v1931
        %v1933 = vlaneseq
        %v1934 = vshrl.u32 %v1933, 7
        %v1935 = vsub.s32 2, %v1934
        %v1936 = vrot.slane %v1923, %v1935
        %v1937 = vlaneseq
        %v1938 = vshrl.u32 %v1937, 7
        %v1939 = vsub.s32 3, %v1938
        %v1940 = vrot.slane %v1923, %v1939
        %v1945 = vmul.f32 %v1910, %v1928
        %v1946 = vmul.f32 %v1904, %v1932
        %v1947 = vmul.f32 %v1898, %v1936
        %v1948 = vmul.f32 %v1916, %v1940
        %v1949 = vmul.f32 %v1911, %v1928
        %v1950 = vmul.f32 %v1905, %v1932
        %v1951 = vmul.f32 %v1899, %v1936
        %v1952 = vmul.f32 %v1917, %v1940
        %v1953 = vmul.f32 %v1912, %v1928
        %v1954 = vmul.f32 %v1906, %v1932
        %v1955 = vmul.f32 %v1900, %v1936
        %v1956 = vmul.f32 %v1918, %v1940
        %v1957 = vmul.f32 %v1913, %v1928
        %v1958 = vmul.f32 %v1907, %v1932
        %v1959 = vmul.f32 %v1901, %v1936
        %v1960 = vmul.f32 %v1919, %v1940
        %v1961 = vmul.f32 %v1914, %v1928
        %v1962 = vmul.f32 %v1908, %v1932
        %v1963 = vmul.f32 %v1902, %v1936
        %v1964 = vmul.f32 %v1920, %v1940
        %v1965 = vmul.f32 %v1915, %v1928
        %v1966 = vmul.f32 %v1909, %v1932
        %v1967 = vmul.f32 %v1903, %v1936
        %v1968 = vmul.f32 %v1921, %v1940
        %1969 = vset.pattern.permute.xlu0 6
        %1970 = vperm.xlu0 %1969, %v344
        %v1971 = vpop.permute.xlu0 %1970
        %1973 = vset.pattern.permute.xlu0 6
        %1974 = vperm.xlu0 %1973, %v345
        %v1975 = vpop.permute.xlu0 %1974
        %1977 = vset.pattern.permute.xlu0 6
        %1978 = vperm.xlu0 %1977, %v346
        %v1979 = vpop.permute.xlu0 %1978
        %1981 = vset.pattern.permute.xlu0 6
        %1982 = vperm.xlu0 %1981, %v347
        %v1983 = vpop.permute.xlu0 %1982
        %1985 = vset.pattern.permute.xlu0 6
        %1986 = vperm.xlu0 %1985, %v348
        %v1987 = vpop.permute.xlu0 %1986
        %1989 = vset.pattern.permute.xlu0 6
        %1990 = vperm.xlu0 %1989, %v349
        %v1991 = vpop.permute.xlu0 %1990
        %v1993 = vmul.f32 %v1945, %v1971
        %v1994 = vmul.f32 %v1946, %v1971
        %v1995 = vmul.f32 %v1947, %v1971
        %v1996 = vmul.f32 %v1948, %v1971
        %v1997 = vmul.f32 %v1949, %v1975
        %v1998 = vmul.f32 %v1950, %v1975
        %v1999 = vmul.f32 %v1951, %v1975
        %v2000 = vmul.f32 %v1952, %v1975
        %v2001 = vmul.f32 %v1953, %v1979
        %v2002 = vmul.f32 %v1954, %v1979
        %v2003 = vmul.f32 %v1955, %v1979
        %v2004 = vmul.f32 %v1956, %v1979
        %v2005 = vmul.f32 %v1957, %v1983
        %v2006 = vmul.f32 %v1958, %v1983
        %v2007 = vmul.f32 %v1959, %v1983
        %v2008 = vmul.f32 %v1960, %v1983
        %v2009 = vmul.f32 %v1961, %v1987
        %v2010 = vmul.f32 %v1962, %v1987
        %v2011 = vmul.f32 %v1963, %v1987
        %v2012 = vmul.f32 %v1964, %v1987
        %v2013 = vmul.f32 %v1965, %v1991
        %v2014 = vmul.f32 %v1966, %v1991
        %v2015 = vmul.f32 %v1967, %v1991
        %v2016 = vmul.f32 %v1968, %v1991
        %v2017 = vadd.f32 %v1825, %v1993
        %v2018 = vadd.f32 %v1826, %v1994
        %v2019 = vadd.f32 %v1827, %v1995
        %v2020 = vadd.f32 %v1828, %v1996
        %v2021 = vadd.f32 %v1829, %v1997
        %v2022 = vadd.f32 %v1830, %v1998
        %v2023 = vadd.f32 %v1831, %v1999
        %v2024 = vadd.f32 %v1832, %v2000
        %v2025 = vadd.f32 %v1833, %v2001
        %v2026 = vadd.f32 %v1834, %v2002
        %v2027 = vadd.f32 %v1835, %v2003
        %v2028 = vadd.f32 %v1836, %v2004
        %v2029 = vadd.f32 %v1837, %v2005
        %v2030 = vadd.f32 %v1838, %v2006
        %v2031 = vadd.f32 %v1839, %v2007
        %v2032 = vadd.f32 %v1840, %v2008
        %v2033 = vadd.f32 %v1841, %v2009
        %v2034 = vadd.f32 %v1842, %v2010
        %v2035 = vadd.f32 %v1843, %v2011
        %v2036 = vadd.f32 %v1844, %v2012
        %v2037 = vadd.f32 %v1845, %v2013
        %v2038 = vadd.f32 %v1846, %v2014
        %v2039 = vadd.f32 %v1847, %v2015
        %v2040 = vadd.f32 %v1848, %v2016
        %2041 = vrot.lane.b32.xlu0 %v745, 112
        %v2042 = vpop.permute.xlu0 %2041
        %2043 = vrot.lane.b32.xlu0 %v749, 112
        %v2044 = vpop.permute.xlu0 %2043
        %2045 = vrot.lane.b32.xlu0 %v753, 112
        %v2046 = vpop.permute.xlu0 %2045
        %2047 = vrot.lane.b32.xlu0 %v757, 112
        %v2048 = vpop.permute.xlu0 %2047
        %2049 = vrot.lane.b32.xlu0 %v761, 112
        %v2050 = vpop.permute.xlu0 %2049
        %2051 = vrot.lane.b32.xlu0 %v765, 112
        %v2052 = vpop.permute.xlu0 %2051
        %2053 = vrot.lane.b32.xlu0 %v746, 112
        %v2054 = vpop.permute.xlu0 %2053
        %2055 = vrot.lane.b32.xlu0 %v750, 112
        %v2056 = vpop.permute.xlu0 %2055
        %2057 = vrot.lane.b32.xlu0 %v754, 112
        %v2058 = vpop.permute.xlu0 %2057
        %2059 = vrot.lane.b32.xlu0 %v758, 112
        %v2060 = vpop.permute.xlu0 %2059
        %2061 = vrot.lane.b32.xlu0 %v762, 112
        %v2062 = vpop.permute.xlu0 %2061
        %2063 = vrot.lane.b32.xlu0 %v766, 112
        %v2064 = vpop.permute.xlu0 %2063
        %2065 = vrot.lane.b32.xlu0 %v747, 112
        %v2066 = vpop.permute.xlu0 %2065
        %2067 = vrot.lane.b32.xlu0 %v751, 112
        %v2068 = vpop.permute.xlu0 %2067
        %2069 = vrot.lane.b32.xlu0 %v755, 112
        %v2070 = vpop.permute.xlu0 %2069
        %2071 = vrot.lane.b32.xlu0 %v759, 112
        %v2072 = vpop.permute.xlu0 %2071
        %2073 = vrot.lane.b32.xlu0 %v763, 112
        %v2074 = vpop.permute.xlu0 %2073
        %2075 = vrot.lane.b32.xlu0 %v767, 112
        %v2076 = vpop.permute.xlu0 %2075
        %2077 = vrot.lane.b32.xlu0 %v748, 112
        %v2078 = vpop.permute.xlu0 %2077
        %2079 = vrot.lane.b32.xlu0 %v752, 112
        %v2080 = vpop.permute.xlu0 %2079
        %2081 = vrot.lane.b32.xlu0 %v756, 112
        %v2082 = vpop.permute.xlu0 %2081
        %2083 = vrot.lane.b32.xlu0 %v760, 112
        %v2084 = vpop.permute.xlu0 %2083
        %2085 = vrot.lane.b32.xlu0 %v764, 112
        %v2086 = vpop.permute.xlu0 %2085
        %2087 = vrot.lane.b32.xlu0 %v768, 112
        %v2088 = vpop.permute.xlu0 %2087
        %vm2089 = vcmp.lt.s32.totalorder %v818, 112
        %v2090 = vsel %vm2089, %v2066, %v2078
        %v2091 = vsel %vm2089, %v2068, %v2080
        %v2092 = vsel %vm2089, %v2070, %v2082
        %v2093 = vsel %vm2089, %v2072, %v2084
        %v2094 = vsel %vm2089, %v2074, %v2086
        %v2095 = vsel %vm2089, %v2076, %v2088
        %v2096 = vsel %vm2089, %v2054, %v2066
        %v2097 = vsel %vm2089, %v2056, %v2068
        %v2098 = vsel %vm2089, %v2058, %v2070
        %v2099 = vsel %vm2089, %v2060, %v2072
        %v2100 = vsel %vm2089, %v2062, %v2074
        %v2101 = vsel %vm2089, %v2064, %v2076
        %v2102 = vsel %vm2089, %v2042, %v2054
        %v2103 = vsel %vm2089, %v2044, %v2056
        %v2104 = vsel %vm2089, %v2046, %v2058
        %v2105 = vsel %vm2089, %v2048, %v2060
        %v2106 = vsel %vm2089, %v2050, %v2062
        %v2107 = vsel %vm2089, %v2052, %v2064
        %v2108 = vsel %vm2089, %v2078, %v2042
        %v2109 = vsel %vm2089, %v2080, %v2044
        %v2110 = vsel %vm2089, %v2082, %v2046
        %v2111 = vsel %vm2089, %v2084, %v2048
        %v2112 = vsel %vm2089, %v2086, %v2050
        %v2113 = vsel %vm2089, %v2088, %v2052
        %s2114 = scalar_lea.vmem %s3, 7
        %v2115 = vld [vmem:[%s2114] ss:$8 sm:$0xf]
        %v2117 = vlaneseq
        %v2118 = vshrl.u32 %v2117, 7
        %v2119 = vsub.s32 0, %v2118
        %v2120 = vrot.slane %v2115, %v2119
        %v2121 = vlaneseq
        %v2122 = vshrl.u32 %v2121, 7
        %v2123 = vsub.s32 1, %v2122
        %v2124 = vrot.slane %v2115, %v2123
        %v2125 = vlaneseq
        %v2126 = vshrl.u32 %v2125, 7
        %v2127 = vsub.s32 2, %v2126
        %v2128 = vrot.slane %v2115, %v2127
        %v2129 = vlaneseq
        %v2130 = vshrl.u32 %v2129, 7
        %v2131 = vsub.s32 3, %v2130
        %v2132 = vrot.slane %v2115, %v2131
        %v2137 = vmul.f32 %v2102, %v2120
        %v2138 = vmul.f32 %v2096, %v2124
        %v2139 = vmul.f32 %v2090, %v2128
        %v2140 = vmul.f32 %v2108, %v2132
        %v2141 = vmul.f32 %v2103, %v2120
        %v2142 = vmul.f32 %v2097, %v2124
        %v2143 = vmul.f32 %v2091, %v2128
        %v2144 = vmul.f32 %v2109, %v2132
        %v2145 = vmul.f32 %v2104, %v2120
        %v2146 = vmul.f32 %v2098, %v2124
        %v2147 = vmul.f32 %v2092, %v2128
        %v2148 = vmul.f32 %v2110, %v2132
        %v2149 = vmul.f32 %v2105, %v2120
        %v2150 = vmul.f32 %v2099, %v2124
        %v2151 = vmul.f32 %v2093, %v2128
        %v2152 = vmul.f32 %v2111, %v2132
        %v2153 = vmul.f32 %v2106, %v2120
        %v2154 = vmul.f32 %v2100, %v2124
        %v2155 = vmul.f32 %v2094, %v2128
        %v2156 = vmul.f32 %v2112, %v2132
        %v2157 = vmul.f32 %v2107, %v2120
        %v2158 = vmul.f32 %v2101, %v2124
        %v2159 = vmul.f32 %v2095, %v2128
        %v2160 = vmul.f32 %v2113, %v2132
        %2161 = vset.pattern.permute.xlu0 7
        %2162 = vperm.xlu0 %2161, %v344
        %v2163 = vpop.permute.xlu0 %2162
        %2165 = vset.pattern.permute.xlu0 7
        %2166 = vperm.xlu0 %2165, %v345
        %v2167 = vpop.permute.xlu0 %2166
        %2169 = vset.pattern.permute.xlu0 7
        %2170 = vperm.xlu0 %2169, %v346
        %v2171 = vpop.permute.xlu0 %2170
        %2173 = vset.pattern.permute.xlu0 7
        %2174 = vperm.xlu0 %2173, %v347
        %v2175 = vpop.permute.xlu0 %2174
        %2177 = vset.pattern.permute.xlu0 7
        %2178 = vperm.xlu0 %2177, %v348
        %v2179 = vpop.permute.xlu0 %2178
        %2181 = vset.pattern.permute.xlu0 7
        %2182 = vperm.xlu0 %2181, %v349
        %v2183 = vpop.permute.xlu0 %2182
        %v2185 = vmul.f32 %v2137, %v2163
        %v2186 = vmul.f32 %v2138, %v2163
        %v2187 = vmul.f32 %v2139, %v2163
        %v2188 = vmul.f32 %v2140, %v2163
        %v2189 = vmul.f32 %v2141, %v2167
        %v2190 = vmul.f32 %v2142, %v2167
        %v2191 = vmul.f32 %v2143, %v2167
        %v2192 = vmul.f32 %v2144, %v2167
        %v2193 = vmul.f32 %v2145, %v2171
        %v2194 = vmul.f32 %v2146, %v2171
        %v2195 = vmul.f32 %v2147, %v2171
        %v2196 = vmul.f32 %v2148, %v2171
        %v2197 = vmul.f32 %v2149, %v2175
        %v2198 = vmul.f32 %v2150, %v2175
        %v2199 = vmul.f32 %v2151, %v2175
        %v2200 = vmul.f32 %v2152, %v2175
        %v2201 = vmul.f32 %v2153, %v2179
        %v2202 = vmul.f32 %v2154, %v2179
        %v2203 = vmul.f32 %v2155, %v2179
        %v2204 = vmul.f32 %v2156, %v2179
        %v2205 = vmul.f32 %v2157, %v2183
        %v2206 = vmul.f32 %v2158, %v2183
        %v2207 = vmul.f32 %v2159, %v2183
        %v2208 = vmul.f32 %v2160, %v2183
        %v2209 = vadd.f32 %v2017, %v2185
        %v2210 = vadd.f32 %v2018, %v2186
        %v2211 = vadd.f32 %v2019, %v2187
        %v2212 = vadd.f32 %v2020, %v2188
        %v2213 = vadd.f32 %v2021, %v2189
        %v2214 = vadd.f32 %v2022, %v2190
        %v2215 = vadd.f32 %v2023, %v2191
        %v2216 = vadd.f32 %v2024, %v2192
        %v2217 = vadd.f32 %v2025, %v2193
        %v2218 = vadd.f32 %v2026, %v2194
        %v2219 = vadd.f32 %v2027, %v2195
        %v2220 = vadd.f32 %v2028, %v2196
        %v2221 = vadd.f32 %v2029, %v2197
        %v2222 = vadd.f32 %v2030, %v2198
        %v2223 = vadd.f32 %v2031, %v2199
        %v2224 = vadd.f32 %v2032, %v2200
        %v2225 = vadd.f32 %v2033, %v2201
        %v2226 = vadd.f32 %v2034, %v2202
        %v2227 = vadd.f32 %v2035, %v2203
        %v2228 = vadd.f32 %v2036, %v2204
        %v2229 = vadd.f32 %v2037, %v2205
        %v2230 = vadd.f32 %v2038, %v2206
        %v2231 = vadd.f32 %v2039, %v2207
        %v2232 = vadd.f32 %v2040, %v2208
        %2233 = vrot.lane.b32.xlu0 %v745, 111
        %v2234 = vpop.permute.xlu0 %2233
        %2235 = vrot.lane.b32.xlu0 %v749, 111
        %v2236 = vpop.permute.xlu0 %2235
        %2237 = vrot.lane.b32.xlu0 %v753, 111
        %v2238 = vpop.permute.xlu0 %2237
        %2239 = vrot.lane.b32.xlu0 %v757, 111
        %v2240 = vpop.permute.xlu0 %2239
        %2241 = vrot.lane.b32.xlu0 %v761, 111
        %v2242 = vpop.permute.xlu0 %2241
        %2243 = vrot.lane.b32.xlu0 %v765, 111
        %v2244 = vpop.permute.xlu0 %2243
        %2245 = vrot.lane.b32.xlu0 %v746, 111
        %v2246 = vpop.permute.xlu0 %2245
        %2247 = vrot.lane.b32.xlu0 %v750, 111
        %v2248 = vpop.permute.xlu0 %2247
        %2249 = vrot.lane.b32.xlu0 %v754, 111
        %v2250 = vpop.permute.xlu0 %2249
        %2251 = vrot.lane.b32.xlu0 %v758, 111
        %v2252 = vpop.permute.xlu0 %2251
        %2253 = vrot.lane.b32.xlu0 %v762, 111
        %v2254 = vpop.permute.xlu0 %2253
        %2255 = vrot.lane.b32.xlu0 %v766, 111
        %v2256 = vpop.permute.xlu0 %2255
        %2257 = vrot.lane.b32.xlu0 %v747, 111
        %v2258 = vpop.permute.xlu0 %2257
        %2259 = vrot.lane.b32.xlu0 %v751, 111
        %v2260 = vpop.permute.xlu0 %2259
        %2261 = vrot.lane.b32.xlu0 %v755, 111
        %v2262 = vpop.permute.xlu0 %2261
        %2263 = vrot.lane.b32.xlu0 %v759, 111
        %v2264 = vpop.permute.xlu0 %2263
        %2265 = vrot.lane.b32.xlu0 %v763, 111
        %v2266 = vpop.permute.xlu0 %2265
        %2267 = vrot.lane.b32.xlu0 %v767, 111
        %v2268 = vpop.permute.xlu0 %2267
        %2269 = vrot.lane.b32.xlu0 %v748, 111
        %v2270 = vpop.permute.xlu0 %2269
        %2271 = vrot.lane.b32.xlu0 %v752, 111
        %v2272 = vpop.permute.xlu0 %2271
        %2273 = vrot.lane.b32.xlu0 %v756, 111
        %v2274 = vpop.permute.xlu0 %2273
        %2275 = vrot.lane.b32.xlu0 %v760, 111
        %v2276 = vpop.permute.xlu0 %2275
        %2277 = vrot.lane.b32.xlu0 %v764, 111
        %v2278 = vpop.permute.xlu0 %2277
        %2279 = vrot.lane.b32.xlu0 %v768, 111
        %v2280 = vpop.permute.xlu0 %2279
        %vm2281 = vcmp.lt.s32.totalorder %v818, 111
        %v2282 = vsel %vm2281, %v2258, %v2270
        %v2283 = vsel %vm2281, %v2260, %v2272
        %v2284 = vsel %vm2281, %v2262, %v2274
        %v2285 = vsel %vm2281, %v2264, %v2276
        %v2286 = vsel %vm2281, %v2266, %v2278
        %v2287 = vsel %vm2281, %v2268, %v2280
        %v2288 = vsel %vm2281, %v2246, %v2258
        %v2289 = vsel %vm2281, %v2248, %v2260
        %v2290 = vsel %vm2281, %v2250, %v2262
        %v2291 = vsel %vm2281, %v2252, %v2264
        %v2292 = vsel %vm2281, %v2254, %v2266
        %v2293 = vsel %vm2281, %v2256, %v2268
        %v2294 = vsel %vm2281, %v2234, %v2246
        %v2295 = vsel %vm2281, %v2236, %v2248
        %v2296 = vsel %vm2281, %v2238, %v2250
        %v2297 = vsel %vm2281, %v2240, %v2252
        %v2298 = vsel %vm2281, %v2242, %v2254
        %v2299 = vsel %vm2281, %v2244, %v2256
        %v2300 = vsel %vm2281, %v2270, %v2234
        %v2301 = vsel %vm2281, %v2272, %v2236
        %v2302 = vsel %vm2281, %v2274, %v2238
        %v2303 = vsel %vm2281, %v2276, %v2240
        %v2304 = vsel %vm2281, %v2278, %v2242
        %v2305 = vsel %vm2281, %v2280, %v2244
        %s2306 = scalar_lea.vmem %s3, 32
        %v2307 = vld [vmem:[%s2306] ss:$8 sm:$0xf]
        %v2309 = vlaneseq
        %v2310 = vshrl.u32 %v2309, 7
        %v2311 = vsub.s32 0, %v2310
        %v2312 = vrot.slane %v2307, %v2311
        %v2313 = vlaneseq
        %v2314 = vshrl.u32 %v2313, 7
        %v2315 = vsub.s32 1, %v2314
        %v2316 = vrot.slane %v2307, %v2315
        %v2317 = vlaneseq
        %v2318 = vshrl.u32 %v2317, 7
        %v2319 = vsub.s32 2, %v2318
        %v2320 = vrot.slane %v2307, %v2319
        %v2321 = vlaneseq
        %v2322 = vshrl.u32 %v2321, 7
        %v2323 = vsub.s32 3, %v2322
        %v2324 = vrot.slane %v2307, %v2323
        %v2329 = vmul.f32 %v2294, %v2312
        %v2330 = vmul.f32 %v2288, %v2316
        %v2331 = vmul.f32 %v2282, %v2320
        %v2332 = vmul.f32 %v2300, %v2324
        %v2333 = vmul.f32 %v2295, %v2312
        %v2334 = vmul.f32 %v2289, %v2316
        %v2335 = vmul.f32 %v2283, %v2320
        %v2336 = vmul.f32 %v2301, %v2324
        %v2337 = vmul.f32 %v2296, %v2312
        %v2338 = vmul.f32 %v2290, %v2316
        %v2339 = vmul.f32 %v2284, %v2320
        %v2340 = vmul.f32 %v2302, %v2324
        %v2341 = vmul.f32 %v2297, %v2312
        %v2342 = vmul.f32 %v2291, %v2316
        %v2343 = vmul.f32 %v2285, %v2320
        %v2344 = vmul.f32 %v2303, %v2324
        %v2345 = vmul.f32 %v2298, %v2312
        %v2346 = vmul.f32 %v2292, %v2316
        %v2347 = vmul.f32 %v2286, %v2320
        %v2348 = vmul.f32 %v2304, %v2324
        %v2349 = vmul.f32 %v2299, %v2312
        %v2350 = vmul.f32 %v2293, %v2316
        %v2351 = vmul.f32 %v2287, %v2320
        %v2352 = vmul.f32 %v2305, %v2324
        %2353 = vset.pattern.permute.xlu0 8
        %2354 = vperm.xlu0 %2353, %v344
        %v2355 = vpop.permute.xlu0 %2354
        %2357 = vset.pattern.permute.xlu0 8
        %2358 = vperm.xlu0 %2357, %v345
        %v2359 = vpop.permute.xlu0 %2358
        %2361 = vset.pattern.permute.xlu0 8
        %2362 = vperm.xlu0 %2361, %v346
        %v2363 = vpop.permute.xlu0 %2362
        %2365 = vset.pattern.permute.xlu0 8
        %2366 = vperm.xlu0 %2365, %v347
        %v2367 = vpop.permute.xlu0 %2366
        %2369 = vset.pattern.permute.xlu0 8
        %2370 = vperm.xlu0 %2369, %v348
        %v2371 = vpop.permute.xlu0 %2370
        %2373 = vset.pattern.permute.xlu0 8
        %2374 = vperm.xlu0 %2373, %v349
        %v2375 = vpop.permute.xlu0 %2374
        %v2377 = vmul.f32 %v2329, %v2355
        %v2378 = vmul.f32 %v2330, %v2355
        %v2379 = vmul.f32 %v2331, %v2355
        %v2380 = vmul.f32 %v2332, %v2355
        %v2381 = vmul.f32 %v2333, %v2359
        %v2382 = vmul.f32 %v2334, %v2359
        %v2383 = vmul.f32 %v2335, %v2359
        %v2384 = vmul.f32 %v2336, %v2359
        %v2385 = vmul.f32 %v2337, %v2363
        %v2386 = vmul.f32 %v2338, %v2363
        %v2387 = vmul.f32 %v2339, %v2363
        %v2388 = vmul.f32 %v2340, %v2363
        %v2389 = vmul.f32 %v2341, %v2367
        %v2390 = vmul.f32 %v2342, %v2367
        %v2391 = vmul.f32 %v2343, %v2367
        %v2392 = vmul.f32 %v2344, %v2367
        %v2393 = vmul.f32 %v2345, %v2371
        %v2394 = vmul.f32 %v2346, %v2371
        %v2395 = vmul.f32 %v2347, %v2371
        %v2396 = vmul.f32 %v2348, %v2371
        %v2397 = vmul.f32 %v2349, %v2375
        %v2398 = vmul.f32 %v2350, %v2375
        %v2399 = vmul.f32 %v2351, %v2375
        %v2400 = vmul.f32 %v2352, %v2375
        %v2401 = vadd.f32 %v2209, %v2377
        %v2402 = vadd.f32 %v2210, %v2378
        %v2403 = vadd.f32 %v2211, %v2379
        %v2404 = vadd.f32 %v2212, %v2380
        %v2405 = vadd.f32 %v2213, %v2381
        %v2406 = vadd.f32 %v2214, %v2382
        %v2407 = vadd.f32 %v2215, %v2383
        %v2408 = vadd.f32 %v2216, %v2384
        %v2409 = vadd.f32 %v2217, %v2385
        %v2410 = vadd.f32 %v2218, %v2386
        %v2411 = vadd.f32 %v2219, %v2387
        %v2412 = vadd.f32 %v2220, %v2388
        %v2413 = vadd.f32 %v2221, %v2389
        %v2414 = vadd.f32 %v2222, %v2390
        %v2415 = vadd.f32 %v2223, %v2391
        %v2416 = vadd.f32 %v2224, %v2392
        %v2417 = vadd.f32 %v2225, %v2393
        %v2418 = vadd.f32 %v2226, %v2394
        %v2419 = vadd.f32 %v2227, %v2395
        %v2420 = vadd.f32 %v2228, %v2396
        %v2421 = vadd.f32 %v2229, %v2397
        %v2422 = vadd.f32 %v2230, %v2398
        %v2423 = vadd.f32 %v2231, %v2399
        %v2424 = vadd.f32 %v2232, %v2400
        %2425 = vset.pattern.permute.xlu0 10
        %2426 = vperm.xlu0 %2425, %v344
        %v2427 = vpop.permute.xlu0 %2426
        %2429 = vset.pattern.permute.xlu0 10
        %2430 = vperm.xlu0 %2429, %v345
        %v2431 = vpop.permute.xlu0 %2430
        %2433 = vset.pattern.permute.xlu0 10
        %2434 = vperm.xlu0 %2433, %v346
        %v2435 = vpop.permute.xlu0 %2434
        %2437 = vset.pattern.permute.xlu0 10
        %2438 = vperm.xlu0 %2437, %v347
        %v2439 = vpop.permute.xlu0 %2438
        %2441 = vset.pattern.permute.xlu0 10
        %2442 = vperm.xlu0 %2441, %v348
        %v2443 = vpop.permute.xlu0 %2442
        %2445 = vset.pattern.permute.xlu0 10
        %2446 = vperm.xlu0 %2445, %v349
        %v2447 = vpop.permute.xlu0 %2446
        %v2449 = vadd.f32 %v2401, %v2427
        %v2450 = vadd.f32 %v2402, %v2427
        %v2451 = vadd.f32 %v2403, %v2427
        %v2452 = vadd.f32 %v2404, %v2427
        %v2453 = vadd.f32 %v2405, %v2431
        %v2454 = vadd.f32 %v2406, %v2431
        %v2455 = vadd.f32 %v2407, %v2431
        %v2456 = vadd.f32 %v2408, %v2431
        %v2457 = vadd.f32 %v2409, %v2435
        %v2458 = vadd.f32 %v2410, %v2435
        %v2459 = vadd.f32 %v2411, %v2435
        %v2460 = vadd.f32 %v2412, %v2435
        %v2461 = vadd.f32 %v2413, %v2439
        %v2462 = vadd.f32 %v2414, %v2439
        %v2463 = vadd.f32 %v2415, %v2439
        %v2464 = vadd.f32 %v2416, %v2439
        %v2465 = vadd.f32 %v2417, %v2443
        %v2466 = vadd.f32 %v2418, %v2443
        %v2467 = vadd.f32 %v2419, %v2443
        %v2468 = vadd.f32 %v2420, %v2443
        %v2469 = vadd.f32 %v2421, %v2447
        %v2470 = vadd.f32 %v2422, %v2447
        %v2471 = vadd.f32 %v2423, %v2447
        %v2472 = vadd.f32 %v2424, %v2447
        %v2473 = vadd.f32 %v2449, %v2450
        %2474 = vadd.xlane.f32.xlu0 %v2473
        %v2475 = vpop.xlane.xlu0 %2474
        %v2476 = vadd.f32 %v2453, %v2454
        %2477 = vadd.xlane.f32.xlu0 %v2476
        %v2478 = vpop.xlane.xlu0 %2477
        %v2479 = vadd.f32 %v2457, %v2458
        %2480 = vadd.xlane.f32.xlu0 %v2479
        %v2481 = vpop.xlane.xlu0 %2480
        %v2482 = vadd.f32 %v2461, %v2462
        %2483 = vadd.xlane.f32.xlu0 %v2482
        %v2484 = vpop.xlane.xlu0 %2483
        %v2485 = vadd.f32 %v2465, %v2466
        %2486 = vadd.xlane.f32.xlu0 %v2485
        %v2487 = vpop.xlane.xlu0 %2486
        %v2488 = vadd.f32 %v2469, %v2470
        %2489 = vadd.xlane.f32.xlu0 %v2488
        %v2490 = vpop.xlane.xlu0 %2489
        %v2491 = vmul.f32 %v2475, 0.00390625
        %v2492 = vmul.f32 %v2478, 0.00390625
        %v2493 = vmul.f32 %v2481, 0.00390625
        %v2494 = vmul.f32 %v2484, 0.00390625
        %v2495 = vmul.f32 %v2487, 0.00390625
        %v2496 = vmul.f32 %v2490, 0.00390625
        %v2497 = vld [vmem:[%s4] sm:$0xf]
        %v2498 = vld [vmem:[%s5] sm:$0xf]
        %vm2499 = vcmask 392192
        %v2501 = vsel %vm2499, %v2497, 0
        %2503 = vmatprep.subr.mxu0 0.0
        %2504 = vmatpush1.msra.mxu0 %v2491
        %2505 = vmatprep.subr.mxu0 0.0
        %2506 = vmatpush1.msra.mxu0 %v2492
        %2507 = vmatprep.subr.mxu0 0.0
        %2508 = vmatpush1.msra.mxu0 %v2493
        %2509 = vmatprep.subr.mxu0 0.0
        %2510 = vmatpush1.msra.mxu0 %v2494
        %2511 = vmatprep.subr.mxu0 0.0
        %2512 = vmatpush1.msra.mxu0 %v2495
        %2513 = vmatprep.subr.mxu0 0.0
        %2514 = vmatpush1.msra.mxu0 %v2496
        %2515 = vmatprep.subr.mxu0 0.0
        %2516 = vmatpush1.msra.mxu0 0.0
        %2517 = vmatprep.subr.mxu0 0.0
        %2518 = vmatpush1.msra.mxu0 0.0
        %2519 = vmatprep.subr.mxu0 0.0
        %2520 = vmatpush1.msra.mxu0 0.0
        %2521 = vmatprep.subr.mxu0 0.0
        %2522 = vmatpush1.msra.mxu0 0.0
        %2523 = vmatprep.subr.mxu0 0.0
        %2524 = vmatpush1.msra.mxu0 0.0
        %2525 = vmatprep.subr.mxu0 0.0
        %2526 = vmatpush1.msra.mxu0 0.0
        %2527 = vmatprep.subr.mxu0 0.0
        %2528 = vmatpush1.msra.mxu0 0.0
        %2529 = vmatprep.subr.mxu0 0.0
        %2530 = vmatpush1.msra.mxu0 0.0
        %2531 = vmatprep.subr.mxu0 0.0
        %2532 = vmatpush1.msra.mxu0 0.0
        %2533 = vmatprep.subr.mxu0 0.0
        %2534 = vmatpush1.msra.mxu0 0.0
        %2535 = vmatprep.subr.mxu0 0.0
        %2536 = vmatpush1.msra.mxu0 0.0
        %2537 = vmatprep.subr.mxu0 0.0
        %2538 = vmatpush1.msra.mxu0 0.0
        %2539 = vmatprep.subr.mxu0 0.0
        %2540 = vmatpush1.msra.mxu0 0.0
        %2541 = vmatprep.subr.mxu0 0.0
        %2542 = vmatpush1.msra.mxu0 0.0
        %2543 = vmatprep.subr.mxu0 0.0
        %2544 = vmatpush1.msra.mxu0 0.0
        %2545 = vmatprep.subr.mxu0 0.0
        %2546 = vmatpush1.msra.mxu0 0.0
        %2547 = vmatprep.subr.mxu0 0.0
        %2548 = vmatpush1.msra.mxu0 0.0
        %2549 = vmatprep.subr.mxu0 0.0
        %2550 = vmatpush1.msra.mxu0 0.0
        %2551 = vmatprep.subr.mxu0 0.0
        %2552 = vmatpush1.msra.mxu0 0.0
        %2553 = vmatprep.subr.mxu0 0.0
        %2554 = vmatpush1.msra.mxu0 0.0
        %2555 = vmatprep.subr.mxu0 0.0
        %2556 = vmatpush1.msra.mxu0 0.0
        %2557 = vmatprep.subr.mxu0 0.0
        %2558 = vmatpush1.msra.mxu0 0.0
        %2559 = vmatprep.subr.mxu0 0.0
        %2560 = vmatpush1.msra.mxu0 0.0
        %2561 = vmatprep.subr.mxu0 0.0
        %2562 = vmatpush1.msra.mxu0 0.0
        %2563 = vmatprep.subr.mxu0 0.0
        %2564 = vmatpush1.msra.mxu0 0.0
        %2565 = vmatprep.subr.mxu0 0.0
        %2566 = vmatpush1.msra.mxu0 0.0
        %2567 = vmatprep.mubr.f32.mxu0 0.0
        %2568 = vmatmul.mubr.f32.gmra.mrb[0].mxu0 %v2501
        %v2569 = vpop.f32.mrb[0].mxu0
        %v2570 = vadd.f32 %v2498, %v2569
        %v2571 = vpop.f32.mrb[0].mxu0
        %2572 = vdwg.mxu0
        %v2573 = vmax.f32 %v2570, 0.0
        %v2574 = vld [vmem:[%s6] sm:$0xff]
        %v2575 = vld [vmem:[%s6 + $0x8] sm:$0xff]
        %v2576 = vld [vmem:[%s6 + $0x10] sm:$0xff]
        %v2577 = vld [vmem:[%s6 + $0x18] sm:$0xff]
        %v2578 = vld [vmem:[%s6 + $0x20] sm:$0xff]
        %v2579 = vld [vmem:[%s6 + $0x28] sm:$0xff]
        %2580 = vrot.lane.b32.xlu0 %v344, 117
        %v2581 = vpop.permute.xlu0 %2580
        %2582 = vrot.lane.b32.xlu0 %v345, 117
        %v2583 = vpop.permute.xlu0 %2582
        %2584 = vrot.lane.b32.xlu0 %v346, 117
        %v2585 = vpop.permute.xlu0 %2584
        %2586 = vrot.lane.b32.xlu0 %v347, 117
        %v2587 = vpop.permute.xlu0 %2586
        %2588 = vrot.lane.b32.xlu0 %v348, 117
        %v2589 = vpop.permute.xlu0 %2588
        %2590 = vrot.lane.b32.xlu0 %v349, 117
        %v2591 = vpop.permute.xlu0 %2590
        %vm2598 = vcmask 31744
        %v2600 = vsel %vm2598, %v2574, 0
        %v2603 = vsel %vm2598, %v2575, 0
        %v2606 = vsel %vm2598, %v2576, 0
        %v2609 = vsel %vm2598, %v2577, 0
        %v2612 = vsel %vm2598, %v2578, 0
        %v2615 = vsel %vm2598, %v2579, 0
        %vm2617 = vcmask 1043456
        %v2619 = vsel %vm2617, %v2573, 0
        %2621 = vmatprep.subr.mxu0 0.0
        %2622 = vmatpush1.msra.mxu0 %v2619
        %2623 = vmatprep.subr.mxu0 0.0
        %2624 = vmatpush1.msra.mxu0 0.0
        %2625 = vmatprep.subr.mxu0 0.0
        %2626 = vmatpush1.msra.mxu0 0.0
        %2627 = vmatprep.subr.mxu0 0.0
        %2628 = vmatpush1.msra.mxu0 0.0
        %2629 = vmatprep.subr.mxu0 0.0
        %2630 = vmatpush1.msra.mxu0 0.0
        %2631 = vmatprep.subr.mxu0 0.0
        %2632 = vmatpush1.msra.mxu0 0.0
        %2633 = vmatprep.subr.mxu0 0.0
        %2634 = vmatpush1.msra.mxu0 0.0
        %2635 = vmatprep.subr.mxu0 0.0
        %2636 = vmatpush1.msra.mxu0 0.0
        %2637 = vmatprep.subr.mxu0 0.0
        %2638 = vmatpush1.msra.mxu0 0.0
        %2639 = vmatprep.subr.mxu0 0.0
        %2640 = vmatpush1.msra.mxu0 0.0
        %2641 = vmatprep.subr.mxu0 0.0
        %2642 = vmatpush1.msra.mxu0 0.0
        %2643 = vmatprep.subr.mxu0 0.0
        %2644 = vmatpush1.msra.mxu0 0.0
        %2645 = vmatprep.subr.mxu0 0.0
        %2646 = vmatpush1.msra.mxu0 0.0
        %2647 = vmatprep.subr.mxu0 0.0
        %2648 = vmatpush1.msra.mxu0 0.0
        %2649 = vmatprep.subr.mxu0 0.0
        %2650 = vmatpush1.msra.mxu0 0.0
        %2651 = vmatprep.subr.mxu0 0.0
        %2652 = vmatpush1.msra.mxu0 0.0
        %2653 = vmatprep.subr.mxu0 0.0
        %2654 = vmatpush1.msra.mxu0 0.0
        %2655 = vmatprep.subr.mxu0 0.0
        %2656 = vmatpush1.msra.mxu0 0.0
        %2657 = vmatprep.subr.mxu0 0.0
        %2658 = vmatpush1.msra.mxu0 0.0
        %2659 = vmatprep.subr.mxu0 0.0
        %2660 = vmatpush1.msra.mxu0 0.0
        %2661 = vmatprep.subr.mxu0 0.0
        %2662 = vmatpush1.msra.mxu0 0.0
        %2663 = vmatprep.subr.mxu0 0.0
        %2664 = vmatpush1.msra.mxu0 0.0
        %2665 = vmatprep.subr.mxu0 0.0
        %2666 = vmatpush1.msra.mxu0 0.0
        %2667 = vmatprep.subr.mxu0 0.0
        %2668 = vmatpush1.msra.mxu0 0.0
        %2669 = vmatprep.subr.mxu0 0.0
        %2670 = vmatpush1.msra.mxu0 0.0
        %2671 = vmatprep.subr.mxu0 0.0
        %2672 = vmatpush1.msra.mxu0 0.0
        %2673 = vmatprep.subr.mxu0 0.0
        %2674 = vmatpush1.msra.mxu0 0.0
        %2675 = vmatprep.subr.mxu0 0.0
        %2676 = vmatpush1.msra.mxu0 0.0
        %2677 = vmatprep.subr.mxu0 0.0
        %2678 = vmatpush1.msra.mxu0 0.0
        %2679 = vmatprep.subr.mxu0 0.0
        %2680 = vmatpush1.msra.mxu0 0.0
        %2681 = vmatprep.subr.mxu0 0.0
        %2682 = vmatpush1.msra.mxu0 0.0
        %2683 = vmatprep.subr.mxu0 0.0
        %2684 = vmatpush1.msra.mxu0 0.0
        %2685 = vmatprep.mubr.f32.mxu0 0.0
        %2686 = vmatmul.mubr.f32.gmra.mrb[0].mxu0 %v2600
        %v2687 = vpop.f32.mrb[0].mxu0
        %v2688 = vadd.f32 %v2581, %v2687
        %v2689 = vpop.f32.mrb[0].mxu0
        %2690 = vmatprep.mubr.f32.mxu0 0.0
        %2691 = vmatmul.mubr.f32.gmra.mrb[0].mxu0 %v2603
        %v2692 = vpop.f32.mrb[0].mxu0
        %v2693 = vadd.f32 %v2583, %v2692
        %v2694 = vpop.f32.mrb[0].mxu0
        %2695 = vmatprep.mubr.f32.mxu0 0.0
        %2696 = vmatmul.mubr.f32.gmra.mrb[0].mxu0 %v2606
        %v2697 = vpop.f32.mrb[0].mxu0
        %v2698 = vadd.f32 %v2585, %v2697
        %v2699 = vpop.f32.mrb[0].mxu0
        %2700 = vmatprep.mubr.f32.mxu0 0.0
        %2701 = vmatmul.mubr.f32.gmra.mrb[0].mxu0 %v2609
        %v2702 = vpop.f32.mrb[0].mxu0
        %v2703 = vadd.f32 %v2587, %v2702
        %v2704 = vpop.f32.mrb[0].mxu0
        %2705 = vmatprep.mubr.f32.mxu0 0.0
        %2706 = vmatmul.mubr.f32.gmra.mrb[0].mxu0 %v2612
        %v2707 = vpop.f32.mrb[0].mxu0
        %v2708 = vadd.f32 %v2589, %v2707
        %v2709 = vpop.f32.mrb[0].mxu0
        %2710 = vmatprep.mubr.f32.mxu0 0.0
        %2711 = vmatmul.mubr.f32.gmra.mrb[0].mxu0 %v2615
        %v2712 = vpop.f32.mrb[0].mxu0
        %v2713 = vadd.f32 %v2591, %v2712
        %v2714 = vpop.f32.mrb[0].mxu0
        %2715 = vdwg.mxu0
        %v2716 = vxor.u32 %v2688, 2147483648
        %v2717 = vxor.u32 %v2693, 2147483648
        %v2718 = vxor.u32 %v2698, 2147483648
        %v2719 = vxor.u32 %v2703, 2147483648
        %v2720 = vxor.u32 %v2708, 2147483648
        %v2721 = vxor.u32 %v2713, 2147483648
        %v2722 = vmul.f32 %v2716, 1.442695
        %v2723 = vpow.pop %v2722
        %v2724 = vmul.f32 %v2717, 1.442695
        %v2725 = vpow.pop %v2724
        %v2726 = vmul.f32 %v2718, 1.442695
        %v2727 = vpow.pop %v2726
        %v2728 = vmul.f32 %v2719, 1.442695
        %v2729 = vpow.pop %v2728
        %v2730 = vmul.f32 %v2720, 1.442695
        %v2731 = vpow.pop %v2730
        %v2732 = vmul.f32 %v2721, 1.442695
        %v2733 = vpow.pop %v2732
        %v2734 = vadd.f32 %v2723, 1.0
        %v2735 = vadd.f32 %v2725, 1.0
        %v2736 = vadd.f32 %v2727, 1.0
        %v2737 = vadd.f32 %v2729, 1.0
        %v2738 = vadd.f32 %v2731, 1.0
        %v2739 = vadd.f32 %v2733, 1.0
        %v2740 = vrcp.pop %v2734
        %v2741 = vmul.f32 1.0, %v2740
        %v2742 = vrcp.pop %v2735
        %v2743 = vmul.f32 1.0, %v2742
        %v2744 = vrcp.pop %v2736
        %v2745 = vmul.f32 1.0, %v2744
        %v2746 = vrcp.pop %v2737
        %v2747 = vmul.f32 1.0, %v2746
        %v2748 = vrcp.pop %v2738
        %v2749 = vmul.f32 1.0, %v2748
        %v2750 = vrcp.pop %v2739
        %v2751 = vmul.f32 1.0, %v2750
        %2753 = vset.pattern.permute.xlu0 0
        %2754 = vperm.xlu0 %2753, %v2741
        %v2755 = vpop.permute.xlu0 %2754
        %2758 = vset.pattern.permute.xlu0 0
        %2759 = vperm.xlu0 %2758, %v2743
        %v2760 = vpop.permute.xlu0 %2759
        %2763 = vset.pattern.permute.xlu0 0
        %2764 = vperm.xlu0 %2763, %v2745
        %v2765 = vpop.permute.xlu0 %2764
        %2768 = vset.pattern.permute.xlu0 0
        %2769 = vperm.xlu0 %2768, %v2747
        %v2770 = vpop.permute.xlu0 %2769
        %2773 = vset.pattern.permute.xlu0 0
        %2774 = vperm.xlu0 %2773, %v2749
        %v2775 = vpop.permute.xlu0 %2774
        %2778 = vset.pattern.permute.xlu0 0
        %2779 = vperm.xlu0 %2778, %v2751
        %v2780 = vpop.permute.xlu0 %2779
        %v2782 = vmul.f32 %v2449, %v2755
        %v2783 = vmul.f32 %v2450, %v2755
        %v2784 = vmul.f32 %v2453, %v2760
        %v2785 = vmul.f32 %v2454, %v2760
        %v2786 = vmul.f32 %v2457, %v2765
        %v2787 = vmul.f32 %v2458, %v2765
        %v2788 = vmul.f32 %v2461, %v2770
        %v2789 = vmul.f32 %v2462, %v2770
        %v2790 = vmul.f32 %v2465, %v2775
        %v2791 = vmul.f32 %v2466, %v2775
        %v2792 = vmul.f32 %v2469, %v2780
        %v2793 = vmul.f32 %v2470, %v2780
        %v2794 = vadd.f32 %v2451, %v2452
        %2795 = vadd.xlane.f32.xlu0 %v2794
        %v2796 = vpop.xlane.xlu0 %2795
        %v2797 = vadd.f32 %v2455, %v2456
        %2798 = vadd.xlane.f32.xlu0 %v2797
        %v2799 = vpop.xlane.xlu0 %2798
        %v2800 = vadd.f32 %v2459, %v2460
        %2801 = vadd.xlane.f32.xlu0 %v2800
        %v2802 = vpop.xlane.xlu0 %2801
        %v2803 = vadd.f32 %v2463, %v2464
        %2804 = vadd.xlane.f32.xlu0 %v2803
        %v2805 = vpop.xlane.xlu0 %2804
        %v2806 = vadd.f32 %v2467, %v2468
        %2807 = vadd.xlane.f32.xlu0 %v2806
        %v2808 = vpop.xlane.xlu0 %2807
        %v2809 = vadd.f32 %v2471, %v2472
        %2810 = vadd.xlane.f32.xlu0 %v2809
        %v2811 = vpop.xlane.xlu0 %2810
        %v2812 = vmul.f32 %v2796, 0.00390625
        %v2813 = vmul.f32 %v2799, 0.00390625
        %v2814 = vmul.f32 %v2802, 0.00390625
        %v2815 = vmul.f32 %v2805, 0.00390625
        %v2816 = vmul.f32 %v2808, 0.00390625
        %v2817 = vmul.f32 %v2811, 0.00390625
        %2818 = vmatprep.subr.mxu0 0.0
        %2819 = vmatpush1.msra.mxu0 %v2812
        %2820 = vmatprep.subr.mxu0 0.0
        %2821 = vmatpush1.msra.mxu0 %v2813
        %2822 = vmatprep.subr.mxu0 0.0
        %2823 = vmatpush1.msra.mxu0 %v2814
        %2824 = vmatprep.subr.mxu0 0.0
        %2825 = vmatpush1.msra.mxu0 %v2815
        %2826 = vmatprep.subr.mxu0 0.0
        %2827 = vmatpush1.msra.mxu0 %v2816
        %2828 = vmatprep.subr.mxu0 0.0
        %2829 = vmatpush1.msra.mxu0 %v2817
        %2830 = vmatprep.subr.mxu0 0.0
        %2831 = vmatpush1.msra.mxu0 0.0
        %2832 = vmatprep.subr.mxu0 0.0
        %2833 = vmatpush1.msra.mxu0 0.0
        %2834 = vmatprep.subr.mxu0 0.0
        %2835 = vmatpush1.msra.mxu0 0.0
        %2836 = vmatprep.subr.mxu0 0.0
        %2837 = vmatpush1.msra.mxu0 0.0
        %2838 = vmatprep.subr.mxu0 0.0
        %2839 = vmatpush1.msra.mxu0 0.0
        %2840 = vmatprep.subr.mxu0 0.0
        %2841 = vmatpush1.msra.mxu0 0.0
        %2842 = vmatprep.subr.mxu0 0.0
        %2843 = vmatpush1.msra.mxu0 0.0
        %2844 = vmatprep.subr.mxu0 0.0
        %2845 = vmatpush1.msra.mxu0 0.0
        %2846 = vmatprep.subr.mxu0 0.0
        %2847 = vmatpush1.msra.mxu0 0.0
        %2848 = vmatprep.subr.mxu0 0.0
        %2849 = vmatpush1.msra.mxu0 0.0
        %2850 = vmatprep.subr.mxu0 0.0
        %2851 = vmatpush1.msra.mxu0 0.0
        %2852 = vmatprep.subr.mxu0 0.0
        %2853 = vmatpush1.msra.mxu0 0.0
        %2854 = vmatprep.subr.mxu0 0.0
        %2855 = vmatpush1.msra.mxu0 0.0
        %2856 = vmatprep.subr.mxu0 0.0
        %2857 = vmatpush1.msra.mxu0 0.0
        %2858 = vmatprep.subr.mxu0 0.0
        %2859 = vmatpush1.msra.mxu0 0.0
        %2860 = vmatprep.subr.mxu0 0.0
        %2861 = vmatpush1.msra.mxu0 0.0
        %2862 = vmatprep.subr.mxu0 0.0
        %2863 = vmatpush1.msra.mxu0 0.0
        %2864 = vmatprep.subr.mxu0 0.0
        %2865 = vmatpush1.msra.mxu0 0.0
        %2866 = vmatprep.subr.mxu0 0.0
        %2867 = vmatpush1.msra.mxu0 0.0
        %2868 = vmatprep.subr.mxu0 0.0
        %2869 = vmatpush1.msra.mxu0 0.0
        %2870 = vmatprep.subr.mxu0 0.0
        %2871 = vmatpush1.msra.mxu0 0.0
        %2872 = vmatprep.subr.mxu0 0.0
        %2873 = vmatpush1.msra.mxu0 0.0
        %2874 = vmatprep.subr.mxu0 0.0
        %2875 = vmatpush1.msra.mxu0 0.0
        %2876 = vmatprep.subr.mxu0 0.0
        %2877 = vmatpush1.msra.mxu0 0.0
        %2878 = vmatprep.subr.mxu0 0.0
        %2879 = vmatpush1.msra.mxu0 0.0
        %2880 = vmatprep.subr.mxu0 0.0
        %2881 = vmatpush1.msra.mxu0 0.0
        %2882 = vmatprep.mubr.f32.mxu0 0.0
        %2883 = vmatmul.mubr.f32.gmra.mrb[0].mxu0 %v2501
        %v2884 = vpop.f32.mrb[0].mxu0
        %v2885 = vadd.f32 %v2498, %v2884
        %v2886 = vpop.f32.mrb[0].mxu0
        %2887 = vdwg.mxu0
        %v2888 = vmax.f32 %v2885, 0.0
        %v2890 = vsel %vm2617, %v2888, 0
        %2892 = vmatprep.subr.mxu0 0.0
        %2893 = vmatpush1.msra.mxu0 %v2890
        %2894 = vmatprep.subr.mxu0 0.0
        %2895 = vmatpush1.msra.mxu0 0.0
        %2896 = vmatprep.subr.mxu0 0.0
        %2897 = vmatpush1.msra.mxu0 0.0
        %2898 = vmatprep.subr.mxu0 0.0
        %2899 = vmatpush1.msra.mxu0 0.0
        %2900 = vmatprep.subr.mxu0 0.0
        %2901 = vmatpush1.msra.mxu0 0.0
        %2902 = vmatprep.subr.mxu0 0.0
        %2903 = vmatpush1.msra.mxu0 0.0
        %2904 = vmatprep.subr.mxu0 0.0
        %2905 = vmatpush1.msra.mxu0 0.0
        %2906 = vmatprep.subr.mxu0 0.0
        %2907 = vmatpush1.msra.mxu0 0.0
        %2908 = vmatprep.subr.mxu0 0.0
        %2909 = vmatpush1.msra.mxu0 0.0
        %2910 = vmatprep.subr.mxu0 0.0
        %2911 = vmatpush1.msra.mxu0 0.0
        %2912 = vmatprep.subr.mxu0 0.0
        %2913 = vmatpush1.msra.mxu0 0.0
        %2914 = vmatprep.subr.mxu0 0.0
        %2915 = vmatpush1.msra.mxu0 0.0
        %2916 = vmatprep.subr.mxu0 0.0
        %2917 = vmatpush1.msra.mxu0 0.0
        %2918 = vmatprep.subr.mxu0 0.0
        %2919 = vmatpush1.msra.mxu0 0.0
        %2920 = vmatprep.subr.mxu0 0.0
        %2921 = vmatpush1.msra.mxu0 0.0
        %2922 = vmatprep.subr.mxu0 0.0
        %2923 = vmatpush1.msra.mxu0 0.0
        %2924 = vmatprep.subr.mxu0 0.0
        %2925 = vmatpush1.msra.mxu0 0.0
        %2926 = vmatprep.subr.mxu0 0.0
        %2927 = vmatpush1.msra.mxu0 0.0
        %2928 = vmatprep.subr.mxu0 0.0
        %2929 = vmatpush1.msra.mxu0 0.0
        %2930 = vmatprep.subr.mxu0 0.0
        %2931 = vmatpush1.msra.mxu0 0.0
        %2932 = vmatprep.subr.mxu0 0.0
        %2933 = vmatpush1.msra.mxu0 0.0
        %2934 = vmatprep.subr.mxu0 0.0
        %2935 = vmatpush1.msra.mxu0 0.0
        %2936 = vmatprep.subr.mxu0 0.0
        %2937 = vmatpush1.msra.mxu0 0.0
        %2938 = vmatprep.subr.mxu0 0.0
        %2939 = vmatpush1.msra.mxu0 0.0
        %2940 = vmatprep.subr.mxu0 0.0
        %2941 = vmatpush1.msra.mxu0 0.0
        %2942 = vmatprep.subr.mxu0 0.0
        %2943 = vmatpush1.msra.mxu0 0.0
        %2944 = vmatprep.subr.mxu0 0.0
        %2945 = vmatpush1.msra.mxu0 0.0
        %2946 = vmatprep.subr.mxu0 0.0
        %2947 = vmatpush1.msra.mxu0 0.0
        %2948 = vmatprep.subr.mxu0 0.0
        %2949 = vmatpush1.msra.mxu0 0.0
        %2950 = vmatprep.subr.mxu0 0.0
        %2951 = vmatpush1.msra.mxu0 0.0
        %2952 = vmatprep.subr.mxu0 0.0
        %2953 = vmatpush1.msra.mxu0 0.0
        %2954 = vmatprep.subr.mxu0 0.0
        %2955 = vmatpush1.msra.mxu0 0.0
        %2956 = vmatprep.mubr.f32.mxu0 0.0
        %2957 = vmatmul.mubr.f32.gmra.mrb[0].mxu0 %v2600
        %v2958 = vpop.f32.mrb[0].mxu0
        %v2959 = vadd.f32 %v2581, %v2958
        %v2960 = vpop.f32.mrb[0].mxu0
        %2961 = vmatprep.mubr.f32.mxu0 0.0
        %2962 = vmatmul.mubr.f32.gmra.mrb[0].mxu0 %v2603
        %v2963 = vpop.f32.mrb[0].mxu0
        %v2964 = vadd.f32 %v2583, %v2963
        %v2965 = vpop.f32.mrb[0].mxu0
        %2966 = vmatprep.mubr.f32.mxu0 0.0
        %2967 = vmatmul.mubr.f32.gmra.mrb[0].mxu0 %v2606
        %v2968 = vpop.f32.mrb[0].mxu0
        %v2969 = vadd.f32 %v2585, %v2968
        %v2970 = vpop.f32.mrb[0].mxu0
        %2971 = vmatprep.mubr.f32.mxu0 0.0
        %2972 = vmatmul.mubr.f32.gmra.mrb[0].mxu0 %v2609
        %v2973 = vpop.f32.mrb[0].mxu0
        %v2974 = vadd.f32 %v2587, %v2973
        %v2975 = vpop.f32.mrb[0].mxu0
        %2976 = vmatprep.mubr.f32.mxu0 0.0
        %2977 = vmatmul.mubr.f32.gmra.mrb[0].mxu0 %v2612
        %v2978 = vpop.f32.mrb[0].mxu0
        %v2979 = vadd.f32 %v2589, %v2978
        %v2980 = vpop.f32.mrb[0].mxu0
        %2981 = vmatprep.mubr.f32.mxu0 0.0
        %2982 = vmatmul.mubr.f32.gmra.mrb[0].mxu0 %v2615
        %v2983 = vpop.f32.mrb[0].mxu0
        %v2984 = vadd.f32 %v2591, %v2983
        %v2985 = vpop.f32.mrb[0].mxu0
        %2986 = vdwg.mxu0
        %v2987 = vxor.u32 %v2959, 2147483648
        %v2988 = vxor.u32 %v2964, 2147483648
        %v2989 = vxor.u32 %v2969, 2147483648
        %v2990 = vxor.u32 %v2974, 2147483648
        %v2991 = vxor.u32 %v2979, 2147483648
        %v2992 = vxor.u32 %v2984, 2147483648
        %v2993 = vmul.f32 %v2987, 1.442695
        %v2994 = vpow.pop %v2993
        %v2995 = vmul.f32 %v2988, 1.442695
        %v2996 = vpow.pop %v2995
        %v2997 = vmul.f32 %v2989, 1.442695
        %v2998 = vpow.pop %v2997
        %v2999 = vmul.f32 %v2990, 1.442695
        %v3000 = vpow.pop %v2999
        %v3001 = vmul.f32 %v2991, 1.442695
        %v3002 = vpow.pop %v3001
        %v3003 = vmul.f32 %v2992, 1.442695
        %v3004 = vpow.pop %v3003
        %v3005 = vadd.f32 %v2994, 1.0
        %v3006 = vadd.f32 %v2996, 1.0
        %v3007 = vadd.f32 %v2998, 1.0
        %v3008 = vadd.f32 %v3000, 1.0
        %v3009 = vadd.f32 %v3002, 1.0
        %v3010 = vadd.f32 %v3004, 1.0
        %v3011 = vrcp.pop %v3005
        %v3012 = vmul.f32 1.0, %v3011
        %v3013 = vrcp.pop %v3006
        %v3014 = vmul.f32 1.0, %v3013
        %v3015 = vrcp.pop %v3007
        %v3016 = vmul.f32 1.0, %v3015
        %v3017 = vrcp.pop %v3008
        %v3018 = vmul.f32 1.0, %v3017
        %v3019 = vrcp.pop %v3009
        %v3020 = vmul.f32 1.0, %v3019
        %v3021 = vrcp.pop %v3010
        %v3022 = vmul.f32 1.0, %v3021
        %3024 = vset.pattern.permute.xlu0 0
        %3025 = vperm.xlu0 %3024, %v3012
        %v3026 = vpop.permute.xlu0 %3025
        %3029 = vset.pattern.permute.xlu0 0
        %3030 = vperm.xlu0 %3029, %v3014
        %v3031 = vpop.permute.xlu0 %3030
        %3034 = vset.pattern.permute.xlu0 0
        %3035 = vperm.xlu0 %3034, %v3016
        %v3036 = vpop.permute.xlu0 %3035
        %3039 = vset.pattern.permute.xlu0 0
        %3040 = vperm.xlu0 %3039, %v3018
        %v3041 = vpop.permute.xlu0 %3040
        %3044 = vset.pattern.permute.xlu0 0
        %3045 = vperm.xlu0 %3044, %v3020
        %v3046 = vpop.permute.xlu0 %3045
        %3049 = vset.pattern.permute.xlu0 0
        %3050 = vperm.xlu0 %3049, %v3022
        %v3051 = vpop.permute.xlu0 %3050
        %v3053 = vmul.f32 %v2451, %v3026
        %v3054 = vmul.f32 %v2452, %v3026
        %v3055 = vmul.f32 %v2455, %v3031
        %v3056 = vmul.f32 %v2456, %v3031
        %v3057 = vmul.f32 %v2459, %v3036
        %v3058 = vmul.f32 %v2460, %v3036
        %v3059 = vmul.f32 %v2463, %v3041
        %v3060 = vmul.f32 %v2464, %v3041
        %v3061 = vmul.f32 %v2467, %v3046
        %v3062 = vmul.f32 %v2468, %v3046
        %v3063 = vmul.f32 %v2471, %v3051
        %v3064 = vmul.f32 %v2472, %v3051
        %v3065 = vmax.f32 %v2782, 0.0
        %v3066 = vmax.f32 %v2783, 0.0
        %v3067 = vmax.f32 %v3053, 0.0
        %v3068 = vmax.f32 %v3054, 0.0
        %v3069 = vmax.f32 %v2784, 0.0
        %v3070 = vmax.f32 %v2785, 0.0
        %v3071 = vmax.f32 %v3055, 0.0
        %v3072 = vmax.f32 %v3056, 0.0
        %v3073 = vmax.f32 %v2786, 0.0
        %v3074 = vmax.f32 %v2787, 0.0
        %v3075 = vmax.f32 %v3057, 0.0
        %v3076 = vmax.f32 %v3058, 0.0
        %v3077 = vmax.f32 %v2788, 0.0
        %v3078 = vmax.f32 %v2789, 0.0
        %v3079 = vmax.f32 %v3059, 0.0
        %v3080 = vmax.f32 %v3060, 0.0
        %v3081 = vmax.f32 %v2790, 0.0
        %v3082 = vmax.f32 %v2791, 0.0
        %v3083 = vmax.f32 %v3061, 0.0
        %v3084 = vmax.f32 %v3062, 0.0
        %v3085 = vmax.f32 %v2792, 0.0
        %v3086 = vmax.f32 %v2793, 0.0
        %v3087 = vmax.f32 %v3063, 0.0
        %v3088 = vmax.f32 %v3064, 0.0
        %v3089 = vmin.f32 %v3065, 6.0
        %v3090 = vmin.f32 %v3066, 6.0
        %v3091 = vmin.f32 %v3067, 6.0
        %v3092 = vmin.f32 %v3068, 6.0
        %v3093 = vmin.f32 %v3069, 6.0
        %v3094 = vmin.f32 %v3070, 6.0
        %v3095 = vmin.f32 %v3071, 6.0
        %v3096 = vmin.f32 %v3072, 6.0
        %v3097 = vmin.f32 %v3073, 6.0
        %v3098 = vmin.f32 %v3074, 6.0
        %v3099 = vmin.f32 %v3075, 6.0
        %v3100 = vmin.f32 %v3076, 6.0
        %v3101 = vmin.f32 %v3077, 6.0
        %v3102 = vmin.f32 %v3078, 6.0
        %v3103 = vmin.f32 %v3079, 6.0
        %v3104 = vmin.f32 %v3080, 6.0
        %v3105 = vmin.f32 %v3081, 6.0
        %v3106 = vmin.f32 %v3082, 6.0
        %v3107 = vmin.f32 %v3083, 6.0
        %v3108 = vmin.f32 %v3084, 6.0
        %v3109 = vmin.f32 %v3085, 6.0
        %v3110 = vmin.f32 %v3086, 6.0
        %v3111 = vmin.f32 %v3087, 6.0
        %v3112 = vmin.f32 %v3088, 6.0
        %v3113 = vld [vmem:[%s7] sm:$0xff]
        %v3114 = vld [vmem:[%s7 + $0x8] sm:$0xff]
        %v3115 = vld [vmem:[%s8] sm:$0xff]
        %v3116 = vld [vmem:[%s8 + $0x8] sm:$0xff]
        %3118 = vset.pattern.permute.xlu0 0
        %3119 = vperm.xlu0 %3118, %v3115
        %v3120 = vpop.permute.xlu0 %3119
        %3123 = vset.pattern.permute.xlu0 0
        %3124 = vperm.xlu0 %3123, %v3116
        %v3125 = vpop.permute.xlu0 %3124
        %v3128 = vsel %vm2499, %v3113, 0
        %v3131 = vsel %vm2499, %v3114, 0
        %3133 = vmatprep.subr.mxu0 %v3090
        %3134 = vmatpush1.msra.mxu0 %v3089
        %3135 = vmatprep.subr.mxu0 %v3094
        %3136 = vmatpush1.msra.mxu0 %v3093
        %3137 = vmatprep.subr.mxu0 %v3098
        %3138 = vmatpush1.msra.mxu0 %v3097
        %3139 = vmatprep.subr.mxu0 %v3102
        %3140 = vmatpush1.msra.mxu0 %v3101
        %3141 = vmatprep.subr.mxu0 %v3106
        %3142 = vmatpush1.msra.mxu0 %v3105
        %3143 = vmatprep.subr.mxu0 %v3110
        %3144 = vmatpush1.msra.mxu0 %v3109
        %3145 = vmatprep.subr.mxu0 0.0
        %3146 = vmatpush1.msra.mxu0 0.0
        %3147 = vmatprep.subr.mxu0 0.0
        %3148 = vmatpush1.msra.mxu0 0.0
        %3149 = vmatprep.subr.mxu0 0.0
        %3150 = vmatpush1.msra.mxu0 0.0
        %3151 = vmatprep.subr.mxu0 0.0
        %3152 = vmatpush1.msra.mxu0 0.0
        %3153 = vmatprep.subr.mxu0 0.0
        %3154 = vmatpush1.msra.mxu0 0.0
        %3155 = vmatprep.subr.mxu0 0.0
        %3156 = vmatpush1.msra.mxu0 0.0
        %3157 = vmatprep.subr.mxu0 0.0
        %3158 = vmatpush1.msra.mxu0 0.0
        %3159 = vmatprep.subr.mxu0 0.0
        %3160 = vmatpush1.msra.mxu0 0.0
        %3161 = vmatprep.subr.mxu0 0.0
        %3162 = vmatpush1.msra.mxu0 0.0
        %3163 = vmatprep.subr.mxu0 0.0
        %3164 = vmatpush1.msra.mxu0 0.0
        %3165 = vmatprep.subr.mxu0 0.0
        %3166 = vmatpush1.msra.mxu0 0.0
        %3167 = vmatprep.subr.mxu0 0.0
        %3168 = vmatpush1.msra.mxu0 0.0
        %3169 = vmatprep.subr.mxu0 0.0
        %3170 = vmatpush1.msra.mxu0 0.0
        %3171 = vmatprep.subr.mxu0 0.0
        %3172 = vmatpush1.msra.mxu0 0.0
        %3173 = vmatprep.subr.mxu0 0.0
        %3174 = vmatpush1.msra.mxu0 0.0
        %3175 = vmatprep.subr.mxu0 0.0
        %3176 = vmatpush1.msra.mxu0 0.0
        %3177 = vmatprep.subr.mxu0 0.0
        %3178 = vmatpush1.msra.mxu0 0.0
        %3179 = vmatprep.subr.mxu0 0.0
        %3180 = vmatpush1.msra.mxu0 0.0
        %3181 = vmatprep.subr.mxu0 0.0
        %3182 = vmatpush1.msra.mxu0 0.0
        %3183 = vmatprep.subr.mxu0 0.0
        %3184 = vmatpush1.msra.mxu0 0.0
        %3185 = vmatprep.subr.mxu0 0.0
        %3186 = vmatpush1.msra.mxu0 0.0
        %3187 = vmatprep.subr.mxu0 0.0
        %3188 = vmatpush1.msra.mxu0 0.0
        %3189 = vmatprep.subr.mxu0 0.0
        %3190 = vmatpush1.msra.mxu0 0.0
        %3191 = vmatprep.subr.mxu0 0.0
        %3192 = vmatpush1.msra.mxu0 0.0
        %3193 = vmatprep.subr.mxu0 0.0
        %3194 = vmatpush1.msra.mxu0 0.0
        %3195 = vmatprep.subr.mxu0 0.0
        %3196 = vmatpush1.msra.mxu0 0.0
        %3197 = vmatprep.mubr.f32.mxu0 0.0
        %3198 = vmatmul.mubr.f32.gmra.mrb[0].mxu0 %v3128
        %v3199 = vpop.f32.mrb[0].mxu0
        %v3200 = vadd.f32 %v3120, %v3199
        %v3201 = vpop.f32.mrb[0].mxu0
        %v3202 = vadd.f32 %v3120, %v3201
        %3203 = vmatprep.mubr.f32.mxu0 0.0
        %3204 = vmatmul.mubr.f32.gmra.mrb[0].mxu0 %v3131
        %v3205 = vpop.f32.mrb[0].mxu0
        %v3206 = vadd.f32 %v3125, %v3205
        %v3207 = vpop.f32.mrb[0].mxu0
        %v3208 = vadd.f32 %v3125, %v3207
        %3209 = vdwg.mxu0
        %3210 = vmatprep.subr.mxu0 %v3092
        %3211 = vmatpush1.msra.mxu0 %v3091
        %3212 = vmatprep.subr.mxu0 %v3096
        %3213 = vmatpush1.msra.mxu0 %v3095
        %3214 = vmatprep.subr.mxu0 %v3100
        %3215 = vmatpush1.msra.mxu0 %v3099
        %3216 = vmatprep.subr.mxu0 %v3104
        %3217 = vmatpush1.msra.mxu0 %v3103
        %3218 = vmatprep.subr.mxu0 %v3108
        %3219 = vmatpush1.msra.mxu0 %v3107
        %3220 = vmatprep.subr.mxu0 %v3112
        %3221 = vmatpush1.msra.mxu0 %v3111
        %3222 = vmatprep.subr.mxu0 0.0
        %3223 = vmatpush1.msra.mxu0 0.0
        %3224 = vmatprep.subr.mxu0 0.0
        %3225 = vmatpush1.msra.mxu0 0.0
        %3226 = vmatprep.subr.mxu0 0.0
        %3227 = vmatpush1.msra.mxu0 0.0
        %3228 = vmatprep.subr.mxu0 0.0
        %3229 = vmatpush1.msra.mxu0 0.0
        %3230 = vmatprep.subr.mxu0 0.0
        %3231 = vmatpush1.msra.mxu0 0.0
        %3232 = vmatprep.subr.mxu0 0.0
        %3233 = vmatpush1.msra.mxu0 0.0
        %3234 = vmatprep.subr.mxu0 0.0
        %3235 = vmatpush1.msra.mxu0 0.0
        %3236 = vmatprep.subr.mxu0 0.0
        %3237 = vmatpush1.msra.mxu0 0.0
        %3238 = vmatprep.subr.mxu0 0.0
        %3239 = vmatpush1.msra.mxu0 0.0
        %3240 = vmatprep.subr.mxu0 0.0
        %3241 = vmatpush1.msra.mxu0 0.0
        %3242 = vmatprep.subr.mxu0 0.0
        %3243 = vmatpush1.msra.mxu0 0.0
        %3244 = vmatprep.subr.mxu0 0.0
        %3245 = vmatpush1.msra.mxu0 0.0
        %3246 = vmatprep.subr.mxu0 0.0
        %3247 = vmatpush1.msra.mxu0 0.0
        %3248 = vmatprep.subr.mxu0 0.0
        %3249 = vmatpush1.msra.mxu0 0.0
        %3250 = vmatprep.subr.mxu0 0.0
        %3251 = vmatpush1.msra.mxu0 0.0
        %3252 = vmatprep.subr.mxu0 0.0
        %3253 = vmatpush1.msra.mxu0 0.0
        %3254 = vmatprep.subr.mxu0 0.0
        %3255 = vmatpush1.msra.mxu0 0.0
        %3256 = vmatprep.subr.mxu0 0.0
        %3257 = vmatpush1.msra.mxu0 0.0
        %3258 = vmatprep.subr.mxu0 0.0
        %3259 = vmatpush1.msra.mxu0 0.0
        %3260 = vmatprep.subr.mxu0 0.0
        %3261 = vmatpush1.msra.mxu0 0.0
        %3262 = vmatprep.subr.mxu0 0.0
        %3263 = vmatpush1.msra.mxu0 0.0
        %3264 = vmatprep.subr.mxu0 0.0
        %3265 = vmatpush1.msra.mxu0 0.0
        %3266 = vmatprep.subr.mxu0 0.0
        %3267 = vmatpush1.msra.mxu0 0.0
        %3268 = vmatprep.subr.mxu0 0.0
        %3269 = vmatpush1.msra.mxu0 0.0
        %3270 = vmatprep.subr.mxu0 0.0
        %3271 = vmatpush1.msra.mxu0 0.0
        %3272 = vmatprep.subr.mxu0 0.0
        %3273 = vmatpush1.msra.mxu0 0.0
        %3274 = vmatprep.mubr.f32.mxu0 0.0
        %3275 = vmatmul.mubr.f32.gmra.mrb[0].mxu0 %v3128
        %v3276 = vpop.f32.mrb[0].mxu0
        %v3277 = vadd.f32 %v3120, %v3276
        %v3278 = vpop.f32.mrb[0].mxu0
        %v3279 = vadd.f32 %v3120, %v3278
        %3280 = vmatprep.mubr.f32.mxu0 0.0
        %3281 = vmatmul.mubr.f32.gmra.mrb[0].mxu0 %v3131
        %v3282 = vpop.f32.mrb[0].mxu0
        %v3283 = vadd.f32 %v3125, %v3282
        %v3284 = vpop.f32.mrb[0].mxu0
        %v3285 = vadd.f32 %v3125, %v3284
        %3286 = vdwg.mxu0
        %v3287 = vadd.f32 %v3200, %v340
        %v3288 = vadd.f32 %v3202, %v341
        %v3289 = vadd.f32 %v3277, %v342
        %v3290 = vadd.f32 %v3279, %v343
        %3291 = vst [vmem:[%s326] sm:$0xff] %v3287
        %3292 = vst [vmem:[%s326 + $0x8] sm:$0xff] %v3288
        %3293 = vst [vmem:[%s326 + $0x10] sm:$0xff] %v3289
        %3294 = vst [vmem:[%s326 + $0x18] sm:$0xff] %v3290
        %3295 = vst [vmem:[%s326 + $0x20] sm:$0xff] %v3206
        %3296 = vst [vmem:[%s326 + $0x28] sm:$0xff] %v3208
        %3297 = vst [vmem:[%s326 + $0x30] sm:$0xff] %v3283
        %3298 = vst [vmem:[%s326 + $0x38] sm:$0xff] %v3285
        %s3299 = sand.u32 %s225, 1
        %s3300 = scalar_lea.sflag [#allocation3], %s3299
        %s3301 = sand.u32 %s225, 1
        %s3302 = smul.addr %s3301, 64
        %s3303 = scalar_lea.vmem [#allocation2], %s3302
        // Predicated region
        $region57: #{tpu_custom_call.1} parent=55 // pred_check
          %p3304 = pneg %p235
        $region58: #{tpu_custom_call.1} parent=55 // pred_check_branch
          %3306 = sbr.rel (%p3304) target = $region60
        $region59: #{tpu_custom_call.1} parent=55 // pred_region
          %s3307 = smul.u32 4, %s23
          %s3309 = ssub.s32 1024, 1024
          %3310 = vsyncadd %s3300, %s3309
          %s3311 = smul.addr %s3307, 128
          %s3312 = scalar_lea.hbm %s9, %s3311
          %s3313 = sshll.u32 %s3303, 4
          %s3314 = int_to_ptr.vmem [resolvable:$true] %s3313
          %3319 = dma.vmem_to_hbm [thread:$0]  %s3314, 1024, %s3312, %s3300, 512, 1024, 32
        $region60: #{tpu_custom_call.1} parent=55 // pred_fallthru
          _
      $region56: #{tpu_custom_call.1} parent=5 // pred_fallthru
        _
      %p3320 = scmp.le.s32.totalorder 2, %s18
      // Predicated region
      $region61: #{tpu_custom_call.1} parent=5 // pred_check
        %p3321 = pneg %p3320
      $region62: #{tpu_custom_call.1} parent=5 // pred_check_branch
        %3323 = sbr.rel (%p3321) target = $region64
      $region63: #{tpu_custom_call.1} parent=5 // pred_region
        %s3324 = ssub.s32 %s18, 2
        // Predicated region
        $region65: #{tpu_custom_call.1} parent=63 // pred_check
          %p3325 = pneg %p241
        $region66: #{tpu_custom_call.1} parent=63 // pred_check_branch
          %3327 = sbr.rel (%p3325) target = $region68
        $region67: #{tpu_custom_call.1} parent=63 // pred_region
          %s3328 = sand.u32 %s226, 1
          %s3329 = scalar_lea.sflag [#allocation3], %s3328
          %s3330 = sand.u32 %s226, 1
          %s3331 = smul.addr %s3330, 64
          %s3332 = scalar_lea.vmem [#allocation2], %s3331
          %3333 = dma.done %s3329, 1024
        $region68: #{tpu_custom_call.1} parent=63 // pred_fallthru
          _
      $region64: #{tpu_custom_call.1} parent=5 // pred_fallthru
        _
    $region6: #{tpu_custom_call.1} parent=1 // loop_footer
      %s22 = sadd.s32 1, %s18
    $region7: #{tpu_custom_call.1} parent=1 // loop_footer_branch
      %17 = sbr.rel target = $region3
    $region8: #{tpu_custom_call.1} parent=1 // loop_exit
      _
    %3334 = vsyncpa [#allocation3], 1
    %s3335 = scalar_lea.sflag [#allocation3], 1
    %3336 = vsyncpa %s3335, 1

</llo_original>
